<compile_context>
chip_gen: v7x
topology: tpu7x:2x2x1
jax: 0.10.0
libtpu: 0.0.40
codegen_flags: <defaults>
</compile_context>

<pallas_src>
import math

import jax
import jax.numpy as jnp
import numpy as np
from jax.experimental import pallas as pl
from jax.experimental.pallas import tpu as pltpu

SIGMA = 25.0  # class attribute ScoreSDETrainer.sigma


def score_sde_kernel(x0_ref, noise_ref, t_ref,
                     w1_ref, b1_ref, wt_ref, w2_ref, b2_ref,
                     per_sample_ref):
    """One batch tile of the ScoreSDE training loss.

    x0_ref, noise_ref : (TB, D) f32 pipelined tiles
    t_ref             : (TB, 1) f32 pipelined tile
    w1 (D,H) bf16 | b1 (1,H) f32 | wt (1,H) f32 | w2 (H,D) bf16 | b2 (1,D) f32
    per_sample_ref    : (TB, 1) f32 per-sample sum((pred*std + noise)^2)
    """
    log_sigma = math.log(SIGMA)

    t = t_ref[...]                                                   # (TB, 1)
    # marginal_prob_std: sqrt((sigma^(2t) - 1) / (2 * ln sigma)).
    # Kept as a (TB, 1) column; the VPU broadcasts it per-op, no (TB, D)
    # std tensor is ever materialized.
    std = jnp.sqrt((jnp.exp(2.0 * t * log_sigma) - 1.0) / (2.0 * log_sigma))

    x0 = x0_ref[...]                                                 # (TB, D)
    noise = noise_ref[...]                                           # (TB, D)

    # q_sample / predict_xt: x_t = x_0 + noise * expend_as(std, x_0)
    x_t = x0 + noise * std                                           # (TB, D)

    # model(x_t, t): time-conditioned 2-layer MLP (stand-in for the injected
    # nn.Module).  bf16 MXU operands, f32 accumulation.
    h = jnp.dot(x_t.astype(jnp.bfloat16), w1_ref[...],
                preferred_element_type=jnp.float32)                  # (TB, H)
    h = jnp.maximum(h + t * wt_ref[...] + b1_ref[...], 0.0)          # ReLU
    pred_noise = jnp.dot(h.astype(jnp.bfloat16), w2_ref[...],
                         preferred_element_type=jnp.float32) + b2_ref[...]

    # per-sample loss term: sum_{c,h,w} (pred_noise * std + noise)^2
    r = pred_noise * std + noise                                     # (TB, D)
    per_sample_ref[...] = jnp.sum(r * r, axis=1, keepdims=True)      # (TB, 1)


def score_sde_loss(x_0, noise, t, params, *, tb=128):
    """Batch-tiled Pallas ScoreSDE loss.

    tb: batch tile (MXU M dimension). 128 works on v5e/v6e/v7x; 256 is
    slightly better on v6e/v7x if B is large.
    """
    # TODO(synk): generate `noise` in-kernel (pltpu.prng_seed +
    # pltpu.stateful_normal) to halve the HBM input stream; it is hoisted out
    # here so the run can be validated bit-for-bit against a pure-JAX ref.
    B = x_0.shape[0]
    D = int(np.prod(x_0.shape[1:]))
    HID = params["w1"].shape[1]

    b_pad = max(tb, ((B + tb - 1) // tb) * tb)
    pad = b_pad - B
    num_tiles = b_pad // tb

    x0f = jnp.pad(x_0.reshape(B, D).astype(jnp.float32), ((0, pad), (0, 0)))
    nf = jnp.pad(noise.reshape(B, D).astype(jnp.float32), ((0, pad), (0, 0)))
    t2 = jnp.pad(t.reshape(B, 1).astype(jnp.float32), ((0, pad), (0, 0)))

    # bf16 weights for the MXU; biases / time-conditioning stay f32.
    w1 = params["w1"].astype(jnp.bfloat16)
    w2 = params["w2"].astype(jnp.bfloat16)
    b1 = params["b1"].astype(jnp.float32)
    wt = params["wt"].astype(jnp.float32)
    b2 = params["b2"].astype(jnp.float32)

    # TODO(synk): for large D / HID (real image score models) add K/N tiling
    # grid axes so w1/w2 need not be fully VMEM-resident.
    grid_spec = pltpu.PrefetchScalarGridSpec(
        num_scalar_prefetch=0,
        grid=(num_tiles,),
        in_specs=[
            pl.BlockSpec((tb, D), lambda i: (i, 0)),    # x0 tile (pipelined)
            pl.BlockSpec((tb, D), lambda i: (i, 0)),    # noise tile (pipelined)
            pl.BlockSpec((tb, 1), lambda i: (i, 0)),    # t tile
            pl.BlockSpec((D, HID), lambda i: (0, 0)),   # w1 (VMEM-resident)
            pl.BlockSpec((1, HID), lambda i: (0, 0)),   # b1
            pl.BlockSpec((1, HID), lambda i: (0, 0)),   # wt
            pl.BlockSpec((HID, D), lambda i: (0, 0)),   # w2 (VMEM-resident)
            pl.BlockSpec((1, D), lambda i: (0, 0)),     # b2
        ],
        out_specs=pl.BlockSpec((tb, 1), lambda i: (i, 0)),
    )

    per_sample = pl.pallas_call(
        score_sde_kernel,
        out_shape=jax.ShapeDtypeStruct((b_pad, 1), jnp.float32),
        grid_spec=grid_spec,
        compiler_params=pltpu.CompilerParams(
            dimension_semantics=("parallel",),   # batch tiles are independent
            vmem_limit_bytes=32 * 1024 * 1024,   # fits v5e/v6e/v7x budgets
        ),
    )(x0f, nf, t2, w1, b1, wt, w2, b2)

    # Drop padded rows; divide by the TRUE batch size (mean over batch of the
    # per-sample sums), matching torch.mean(torch.sum(..., dim=(1,2,3))).
    return jnp.sum(per_sample[:B, 0]) / B


def score_sde_loss_ref(x_0, noise, t, params):
    """Pure-JAX f32 reference mirroring the PyTorch forward (for validation)."""
    B = x_0.shape[0]
    D = int(np.prod(x_0.shape[1:]))
    x0f = x_0.reshape(B, D)
    nf = noise.reshape(B, D)
    std = jnp.sqrt((SIGMA ** (2.0 * t) - 1.0) / 2.0 / math.log(SIGMA)).reshape(B, 1)
    x_t = x0f + nf * std
    h = jnp.maximum(x_t @ params["w1"] + t.reshape(B, 1) * params["wt"] + params["b1"], 0.0)
    pred = h @ params["w2"] + params["b2"]
    r = pred * std + nf
    return jnp.mean(jnp.sum(r * r, axis=1))


if __name__ == "__main__":
    key = jax.random.PRNGKey(0)
    k_x, k_t, k_n, k_w1, k_wt, k_w2 = jax.random.split(key, 6)

    # Small shapes consistent with the module's NCHW image input.
    B, C, H, W = 2, 4, 16, 16
    D = C * H * W
    HID = 128
    eps = 1e-5

    x_0 = jax.random.normal(k_x, (B, C, H, W), dtype=jnp.float32)
    # t = rand(batch) * (1 - eps) + eps   (randomness hoisted out of the kernel)
    t = jax.random.uniform(k_t, (B,), dtype=jnp.float32) * (1.0 - eps) + eps
    # noise = randn_like(x_0)
    noise = jax.random.normal(k_n, (B, C, H, W), dtype=jnp.float32)

    # Deterministic synthetic parameters for the score model.
    # TODO(synk): the PyTorch module wraps an arbitrary injected `model`; a
    # time-conditioned 2-layer MLP is used as a concrete, deterministic stand-in.
    params = {
        "w1": 0.02 * jax.random.normal(k_w1, (D, HID), dtype=jnp.float32),
        "b1": jnp.zeros((1, HID), dtype=jnp.float32),
        "wt": 0.02 * jax.random.normal(k_wt, (1, HID), dtype=jnp.float32),
        "w2": 0.02 * jax.random.normal(k_w2, (HID, D), dtype=jnp.float32),
        "b2": jnp.zeros((1, D), dtype=jnp.float32),
    }

    loss = score_sde_loss(x_0, noise, t, params)
    jax.block_until_ready(loss)

    loss_ref = score_sde_loss_ref(x_0, noise, t, params)
    # Tolerance loosened vs the pure-f32 version because the kernel feeds the
    # MXU bf16 operands (f32 accumulation).
    np.testing.assert_allclose(np.asarray(loss), np.asarray(loss_ref),
                               rtol=5e-2, atol=1e-2)

    print("KERNEL_OK")
</pallas_src>

<mosaic_0001>
module attributes {stable_mosaic.version = 11 : i64} {
  func.func @score_sde_kernel(%arg0: i32, %arg1: memref<128x1024xf32, #tpu.memory_space<vmem>>, %arg2: memref<128x1024xf32, #tpu.memory_space<vmem>>, %arg3: memref<128x1xf32, #tpu.memory_space<vmem>>, %arg4: memref<1024x128xbf16, #tpu.memory_space<vmem>>, %arg5: memref<1x128xf32, #tpu.memory_space<vmem>>, %arg6: memref<1x128xf32, #tpu.memory_space<vmem>>, %arg7: memref<128x1024xbf16, #tpu.memory_space<vmem>>, %arg8: memref<1x1024xf32, #tpu.memory_space<vmem>>, %arg9: memref<128x1xf32, #tpu.memory_space<vmem>>) attributes {dimension_semantics = [#tpu.dimension_semantics<parallel>], iteration_bounds = array<i64: 1>, scalar_prefetch = 0 : i64, scratch_operands = 0 : i64, tpu.core_type = #tpu.core_type<tc>, window_params = [{transform_indices = @transform_0, window_bounds = array<i64: 128, 1024>}, {transform_indices = @transform_1, window_bounds = array<i64: 128, 1024>}, {transform_indices = @transform_2, window_bounds = array<i64: 128, 1>}, {pipeline_mode = #tpu.pipeline_mode<synchronous>, transform_indices = @transform_3, window_bounds = array<i64: 1024, 128>}, {pipeline_mode = #tpu.pipeline_mode<synchronous>, transform_indices = @transform_4, window_bounds = array<i64: 1, 128>}, {pipeline_mode = #tpu.pipeline_mode<synchronous>, transform_indices = @transform_5, window_bounds = array<i64: 1, 128>}, {pipeline_mode = #tpu.pipeline_mode<synchronous>, transform_indices = @transform_6, window_bounds = array<i64: 128, 1024>}, {pipeline_mode = #tpu.pipeline_mode<synchronous>, transform_indices = @transform_7, window_bounds = array<i64: 1, 1024>}, {transform_indices = @transform_8, window_bounds = array<i64: 128, 1>}]} {
    %c0 = arith.constant 0 : index
    %c0_0 = arith.constant 0 : index
    %0 = vector.load %arg3[%c0, %c0_0] : memref<128x1xf32, #tpu.memory_space<vmem>>, vector<128x1xf32>
    %cst = arith.constant 2.000000e+00 : f32
    %1 = vector.broadcast %cst : f32 to vector<128x1xf32>
    %2 = arith.mulf %1, %0 : vector<128x1xf32>
    %cst_1 = arith.constant 3.21887589 : f32
    %3 = vector.broadcast %cst_1 : f32 to vector<128x1xf32>
    %4 = arith.mulf %2, %3 : vector<128x1xf32>
    %5 = math.exp %4 : vector<128x1xf32>
    %cst_2 = arith.constant 1.000000e+00 : f32
    %6 = vector.broadcast %cst_2 : f32 to vector<128x1xf32>
    %7 = arith.subf %5, %6 : vector<128x1xf32>
    %cst_3 = arith.constant 6.43775177 : f32
    %8 = vector.broadcast %cst_3 : f32 to vector<128x1xf32>
    %9 = arith.divf %7, %8 : vector<128x1xf32>
    %10 = math.sqrt %9 : vector<128x1xf32>
    %c0_4 = arith.constant 0 : index
    %c0_5 = arith.constant 0 : index
    %11 = vector.load %arg1[%c0_4, %c0_5] : memref<128x1024xf32, #tpu.memory_space<vmem>>, vector<128x1024xf32>
    %c0_6 = arith.constant 0 : index
    %c0_7 = arith.constant 0 : index
    %12 = vector.load %arg2[%c0_6, %c0_7] : memref<128x1024xf32, #tpu.memory_space<vmem>>, vector<128x1024xf32>
    %13 = vector.broadcast %10 : vector<128x1xf32> to vector<128x1024xf32>
    %14 = arith.mulf %12, %13 : vector<128x1024xf32>
    %15 = arith.addf %11, %14 : vector<128x1024xf32>
    %16 = arith.truncf %15 : vector<128x1024xf32> to vector<128x1024xbf16>
    %c0_8 = arith.constant 0 : index
    %c0_9 = arith.constant 0 : index
    %17 = vector.load %arg4[%c0_8, %c0_9] : memref<1024x128xbf16, #tpu.memory_space<vmem>>, vector<1024x128xbf16>
    %cst_10 = arith.constant dense<0.000000e+00> : vector<128x128xf32>
    %18 = tpu.matmul %16, %17, %cst_10 {dimension_numbers = #tpu.dot_dimension_numbers<[1], [0], [0], [1], [0, 0, 1, 1], [], []>} : vector<128x1024xbf16>, vector<1024x128xbf16>, vector<128x128xf32> -> vector<128x128xf32>
    %c0_11 = arith.constant 0 : index
    %c0_12 = arith.constant 0 : index
    %19 = vector.load %arg6[%c0_11, %c0_12] : memref<1x128xf32, #tpu.memory_space<vmem>>, vector<1x128xf32>
    %20 = vector.broadcast %0 : vector<128x1xf32> to vector<128x128xf32>
    %21 = vector.broadcast %19 : vector<1x128xf32> to vector<128x128xf32>
    %22 = arith.mulf %20, %21 : vector<128x128xf32>
    %23 = arith.addf %18, %22 : vector<128x128xf32>
    %c0_13 = arith.constant 0 : index
    %c0_14 = arith.constant 0 : index
    %24 = vector.load %arg5[%c0_13, %c0_14] : memref<1x128xf32, #tpu.memory_space<vmem>>, vector<1x128xf32>
    %25 = vector.broadcast %24 : vector<1x128xf32> to vector<128x128xf32>
    %26 = arith.addf %23, %25 : vector<128x128xf32>
    %cst_15 = arith.constant 0.000000e+00 : f32
    %27 = vector.broadcast %cst_15 : f32 to vector<128x128xf32>
    %28 = arith.maximumf %26, %27 : vector<128x128xf32>
    %29 = arith.truncf %28 : vector<128x128xf32> to vector<128x128xbf16>
    %c0_16 = arith.constant 0 : index
    %c0_17 = arith.constant 0 : index
    %30 = vector.load %arg7[%c0_16, %c0_17] : memref<128x1024xbf16, #tpu.memory_space<vmem>>, vector<128x1024xbf16>
    %cst_18 = arith.constant dense<0.000000e+00> : vector<128x1024xf32>
    %31 = tpu.matmul %29, %30, %cst_18 {dimension_numbers = #tpu.dot_dimension_numbers<[1], [0], [0], [1], [0, 0, 1, 1], [], []>} : vector<128x128xbf16>, vector<128x1024xbf16>, vector<128x1024xf32> -> vector<128x1024xf32>
    %c0_19 = arith.constant 0 : index
    %c0_20 = arith.constant 0 : index
    %32 = vector.load %arg8[%c0_19, %c0_20] : memref<1x1024xf32, #tpu.memory_space<vmem>>, vector<1x1024xf32>
    %33 = vector.broadcast %32 : vector<1x1024xf32> to vector<128x1024xf32>
    %34 = arith.addf %31, %33 : vector<128x1024xf32>
    %35 = vector.broadcast %10 : vector<128x1xf32> to vector<128x1024xf32>
    %36 = arith.mulf %34, %35 : vector<128x1024xf32>
    %37 = arith.addf %36, %12 : vector<128x1024xf32>
    %38 = arith.mulf %37, %37 : vector<128x1024xf32>
    %cst_21 = arith.constant dense<0.000000e+00> : vector<128xf32>
    %39 = vector.multi_reduction <add>, %38, %cst_21 [1] : vector<128x1024xf32> to vector<128xf32>
    %40 = vector.shape_cast %39 : vector<128xf32> to vector<128x1xf32>
    %c0_22 = arith.constant 0 : index
    %c0_23 = arith.constant 0 : index
    %41 = vector.load %arg9[%c0_22, %c0_23] : memref<128x1xf32, #tpu.memory_space<vmem>>, vector<128x1xf32>
    tpu.vector_store %arg9[%c0_22, %c0_23], %40 {strides = array<i32>} : memref<128x1xf32, #tpu.memory_space<vmem>>, vector<128x1xf32>,
    return
  }
  func.func @transform_0(%arg0: i32) -> (i32, i32) {
    %c0_i32 = arith.constant 0 : i32
    %c0_i32_0 = arith.constant 0 : i32
    return %arg0, %c0_i32 : i32, i32
  }
  func.func @transform_1(%arg0: i32) -> (i32, i32) {
    %c0_i32 = arith.constant 0 : i32
    %c0_i32_0 = arith.constant 0 : i32
    return %arg0, %c0_i32 : i32, i32
  }
  func.func @transform_2(%arg0: i32) -> (i32, i32) {
    %c0_i32 = arith.constant 0 : i32
    %c0_i32_0 = arith.constant 0 : i32
    return %arg0, %c0_i32 : i32, i32
  }
  func.func @transform_3(%arg0: i32) -> (i32, i32) {
    %c0_i32 = arith.constant 0 : i32
    %c0_i32_0 = arith.constant 0 : i32
    %c0_i32_1 = arith.constant 0 : i32
    return %c0_i32, %c0_i32_0 : i32, i32
  }
  func.func @transform_4(%arg0: i32) -> (i32, i32) {
    %c0_i32 = arith.constant 0 : i32
    %c0_i32_0 = arith.constant 0 : i32
    %c0_i32_1 = arith.constant 0 : i32
    return %c0_i32, %c0_i32_0 : i32, i32
  }
  func.func @transform_5(%arg0: i32) -> (i32, i32) {
    %c0_i32 = arith.constant 0 : i32
    %c0_i32_0 = arith.constant 0 : i32
    %c0_i32_1 = arith.constant 0 : i32
    return %c0_i32, %c0_i32_0 : i32, i32
  }
  func.func @transform_6(%arg0: i32) -> (i32, i32) {
    %c0_i32 = arith.constant 0 : i32
    %c0_i32_0 = arith.constant 0 : i32
    %c0_i32_1 = arith.constant 0 : i32
    return %c0_i32, %c0_i32_0 : i32, i32
  }
  func.func @transform_7(%arg0: i32) -> (i32, i32) {
    %c0_i32 = arith.constant 0 : i32
    %c0_i32_0 = arith.constant 0 : i32
    %c0_i32_1 = arith.constant 0 : i32
    return %c0_i32, %c0_i32_0 : i32, i32
  }
  func.func @transform_8(%arg0: i32) -> (i32, i32) {
    %c0_i32 = arith.constant 0 : i32
    %c0_i32_0 = arith.constant 0 : i32
    return %arg0, %c0_i32 : i32, i32
  }
}

</mosaic_0001>

<llo_original>
// kernel: tpu_custom_call.1
$region0: #{tpu_custom_call.1}
  #allocation0 [shape = 'u32[]', space=smem, size = 0x4, offset = 0x4, fixed_abs, tag = 'smem constant byte address 0x4 - core index']
  #allocation1 [shape = 'u32[144,128]{1,0:T(1,128)}', space=vmem, size = 0x12000, scoped, tag = 'internal scratch']
  %s0 = inlined_call_operand.hbm [shape: f32[128,1024], index: 0, kind: input, shape index: {}]
  %s1 = inlined_call_operand.hbm [shape: f32[128,1024], index: 1, kind: input, shape index: {}]
  %s2 = inlined_call_operand.vmem [shape: f32[128,1], index: 2, kind: input, shape index: {}]
  %s3 = inlined_call_operand.hbm [shape: bf16[1024,128], index: 3, kind: input, shape index: {}]
  %s4 = inlined_call_operand.vmem [shape: f32[1,128], index: 4, kind: input, shape index: {}]
  %s5 = inlined_call_operand.vmem [shape: f32[1,128], index: 5, kind: input, shape index: {}]
  %s6 = inlined_call_operand.hbm [shape: bf16[128,1024], index: 6, kind: input, shape index: {}]
  %s7 = inlined_call_operand.vmem [shape: f32[1,1024], index: 7, kind: input, shape index: {}]
  %s8 = inlined_call_operand.vmem [shape: f32[128,1], index: 8, kind: output, shape index: {}]
  %s9 = sld [smem:[#allocation0]]
  $region58: #{tpu_custom_call.1} parent=0
    _
  %s11 = ssub.s32 1, %s9
  %s12 = scalar_select 0, %s11, %s9
  $region1: #{tpu_custom_call.1} parent=0
    #allocation2 [shape = 'u8[524288]{0}', space=vmem, size = 0x80000, scoped, tag = 'input window, operand 0, single buffered']
    #allocation3 [shape = 's32[1]{0}', space=sflag, size = 0x4, scoped, tag = 'scoped memory for tpu_custom_call.1']
    #allocation4 [shape = 'u8[524288]{0}', space=vmem, size = 0x80000, scoped, tag = 'input window, operand 1, single buffered']
    #allocation5 [shape = 's32[1]{0}', space=sflag, size = 0x4, scoped, tag = 'scoped memory for tpu_custom_call.1']
    #allocation6 [shape = 'u8[262144]{0}', space=vmem, size = 0x40000, scoped, tag = 'input window, operand 3, single buffered']
    #allocation7 [shape = 'u8[262144]{0}', space=vmem, size = 0x40000, scoped, tag = 'input window, operand 6, single buffered']
    #allocation8 [shape = 's32[1]{0}', space=sflag, size = 0x4, scoped, tag = 'scoped memory for tpu_custom_call.1']
    %13 = vsyncpa [#allocation3], 0
    %14 = vsyncpa [#allocation5], 0
    %15 = vsyncpa [#allocation8], 0
    // Predicated region
    $region2: #{tpu_custom_call.1} parent=1 // pred_check
      _
    $region3: #{tpu_custom_call.1} parent=1 // pred_check_branch
      %17 = sbr.rel (0) target = $region5
    $region4: #{tpu_custom_call.1} parent=1 // pred_region
      %s19 = ssub.s32 16384, 16384
      %20 = vsyncadd [#allocation3], %s19
      %s21 = sshll.u32 [#allocation2], 4
      %s22 = int_to_ptr.vmem [resolvable:$true] %s21
      %27 = dma.hbm_to_vmem [thread:$0]  %s0, 16384, %s22, [#allocation3], 1024, 1024, 64
    $region5: #{tpu_custom_call.1} parent=1 // pred_fallthru
      _
    // Predicated region
    $region6: #{tpu_custom_call.1} parent=1 // pred_check
      _
    $region7: #{tpu_custom_call.1} parent=1 // pred_check_branch
      %29 = sbr.rel (0) target = $region9
    $region8: #{tpu_custom_call.1} parent=1 // pred_region
      %s31 = ssub.s32 16384, 16384
      %32 = vsyncadd [#allocation5], %s31
      %s33 = sshll.u32 [#allocation4], 4
      %s34 = int_to_ptr.vmem [resolvable:$true] %s33
      %39 = dma.hbm_to_vmem [thread:$0]  %s1, 16384, %s34, [#allocation5], 1024, 1024, 64
    $region9: #{tpu_custom_call.1} parent=1 // pred_fallthru
      _
    // Predicated region
    $region10: #{tpu_custom_call.1} parent=1 // pred_check
      _
    $region11: #{tpu_custom_call.1} parent=1 // pred_check_branch
      %41 = sbr.rel (0) target = $region13
    $region12: #{tpu_custom_call.1} parent=1 // pred_region
      _
    $region13: #{tpu_custom_call.1} parent=1 // pred_fallthru
      _
    // Predicated region
    $region14: #{tpu_custom_call.1} parent=1 // pred_check
      _
    $region15: #{tpu_custom_call.1} parent=1 // pred_check_branch
      %43 = sbr.rel (0) target = $region17
    $region16: #{tpu_custom_call.1} parent=1 // pred_region
      %s45 = ssub.s32 8192, 8192
      %46 = vsyncadd [#allocation5], %s45
      %s47 = sshll.u32 [#allocation6], 4
      %s48 = int_to_ptr.vmem [resolvable:$true] %s47
      %53 = dma.hbm_to_vmem [thread:$0]  %s3, 8192, %s48, [#allocation5], 64, 64, 4
    $region17: #{tpu_custom_call.1} parent=1 // pred_fallthru
      _
    // Predicated region
    $region18: #{tpu_custom_call.1} parent=1 // pred_check
      _
    $region19: #{tpu_custom_call.1} parent=1 // pred_check_branch
      %55 = sbr.rel (0) target = $region21
    $region20: #{tpu_custom_call.1} parent=1 // pred_region
      _
    $region21: #{tpu_custom_call.1} parent=1 // pred_fallthru
      _
    // Predicated region
    $region22: #{tpu_custom_call.1} parent=1 // pred_check
      _
    $region23: #{tpu_custom_call.1} parent=1 // pred_check_branch
      %57 = sbr.rel (0) target = $region25
    $region24: #{tpu_custom_call.1} parent=1 // pred_region
      _
    $region25: #{tpu_custom_call.1} parent=1 // pred_fallthru
      _
    // Predicated region
    $region26: #{tpu_custom_call.1} parent=1 // pred_check
      _
    $region27: #{tpu_custom_call.1} parent=1 // pred_check_branch
      %59 = sbr.rel (0) target = $region29
    $region28: #{tpu_custom_call.1} parent=1 // pred_region
      %s61 = ssub.s32 8192, 8192
      %62 = vsyncadd [#allocation8], %s61
      %s63 = sshll.u32 [#allocation7], 4
      %s64 = int_to_ptr.vmem [resolvable:$true] %s63
      %69 = dma.hbm_to_vmem [thread:$0]  %s6, 8192, %s64, [#allocation8], 512, 512, 32
    $region29: #{tpu_custom_call.1} parent=1 // pred_fallthru
      _
    // Predicated region
    $region30: #{tpu_custom_call.1} parent=1 // pred_check
      _
    $region31: #{tpu_custom_call.1} parent=1 // pred_check_branch
      %71 = sbr.rel (0) target = $region33
    $region32: #{tpu_custom_call.1} parent=1 // pred_region
      _
    $region33: #{tpu_custom_call.1} parent=1 // pred_fallthru
      _
    // Predicated region
    $region34: #{tpu_custom_call.1} parent=1 // pred_check
      _
    $region35: #{tpu_custom_call.1} parent=1 // pred_check_branch
      %73 = sbr.rel (0) target = $region37
    $region36: #{tpu_custom_call.1} parent=1 // pred_region
      %74 = dma.done [#allocation3], 16384
    $region37: #{tpu_custom_call.1} parent=1 // pred_fallthru
      _
    // Predicated region
    $region38: #{tpu_custom_call.1} parent=1 // pred_check
      _
    $region39: #{tpu_custom_call.1} parent=1 // pred_check_branch
      %76 = sbr.rel (0) target = $region41
    $region40: #{tpu_custom_call.1} parent=1 // pred_region
      %77 = dma.done [#allocation5], 16384
    $region41: #{tpu_custom_call.1} parent=1 // pred_fallthru
      _
    // Predicated region
    $region42: #{tpu_custom_call.1} parent=1 // pred_check
      _
    $region43: #{tpu_custom_call.1} parent=1 // pred_check_branch
      %79 = sbr.rel (0) target = $region45
    $region44: #{tpu_custom_call.1} parent=1 // pred_region
      %80 = dma.done [#allocation5], 8192
    $region45: #{tpu_custom_call.1} parent=1 // pred_fallthru
      _
    // Predicated region
    $region46: #{tpu_custom_call.1} parent=1 // pred_check
      _
    $region47: #{tpu_custom_call.1} parent=1 // pred_check_branch
      %82 = sbr.rel (0) target = $region49
    $region48: #{tpu_custom_call.1} parent=1 // pred_region
      %83 = dma.done [#allocation8], 8192
    $region49: #{tpu_custom_call.1} parent=1 // pred_fallthru
      _
    %v85 = vld [vmem:[%s2] sm:$0xff]
    %v86 = vld [vmem:[%s2 + $0x8] sm:$0xff]
    %v87 = vld [vmem:[%s2 + $0x10] sm:$0xff]
    %v88 = vld [vmem:[%s2 + $0x18] sm:$0xff]
    %v89 = vld [vmem:[%s2 + $0x20] sm:$0xff]
    %v90 = vld [vmem:[%s2 + $0x28] sm:$0xff]
    %v91 = vld [vmem:[%s2 + $0x30] sm:$0xff]
    %v92 = vld [vmem:[%s2 + $0x38] sm:$0xff]
    %v93 = vld [vmem:[%s2 + $0x40] sm:$0xff]
    %v94 = vld [vmem:[%s2 + $0x48] sm:$0xff]
    %v95 = vld [vmem:[%s2 + $0x50] sm:$0xff]
    %v96 = vld [vmem:[%s2 + $0x58] sm:$0xff]
    %v97 = vld [vmem:[%s2 + $0x60] sm:$0xff]
    %v98 = vld [vmem:[%s2 + $0x68] sm:$0xff]
    %v99 = vld [vmem:[%s2 + $0x70] sm:$0xff]
    %v100 = vld [vmem:[%s2 + $0x78] sm:$0xff]
    %v101 = vmul.f32 %v85, 2.0
    %v102 = vmul.f32 %v86, 2.0
    %v103 = vmul.f32 %v87, 2.0
    %v104 = vmul.f32 %v88, 2.0
    %v105 = vmul.f32 %v89, 2.0
    %v106 = vmul.f32 %v90, 2.0
    %v107 = vmul.f32 %v91, 2.0
    %v108 = vmul.f32 %v92, 2.0
    %v109 = vmul.f32 %v93, 2.0
    %v110 = vmul.f32 %v94, 2.0
    %v111 = vmul.f32 %v95, 2.0
    %v112 = vmul.f32 %v96, 2.0
    %v113 = vmul.f32 %v97, 2.0
    %v114 = vmul.f32 %v98, 2.0
    %v115 = vmul.f32 %v99, 2.0
    %v116 = vmul.f32 %v100, 2.0
    %v117 = vmul.f32 %v101, 3.218876
    %v118 = vmul.f32 %v102, 3.218876
    %v119 = vmul.f32 %v103, 3.218876
    %v120 = vmul.f32 %v104, 3.218876
    %v121 = vmul.f32 %v105, 3.218876
    %v122 = vmul.f32 %v106, 3.218876
    %v123 = vmul.f32 %v107, 3.218876
    %v124 = vmul.f32 %v108, 3.218876
    %v125 = vmul.f32 %v109, 3.218876
    %v126 = vmul.f32 %v110, 3.218876
    %v127 = vmul.f32 %v111, 3.218876
    %v128 = vmul.f32 %v112, 3.218876
    %v129 = vmul.f32 %v113, 3.218876
    %v130 = vmul.f32 %v114, 3.218876
    %v131 = vmul.f32 %v115, 3.218876
    %v132 = vmul.f32 %v116, 3.218876
    %v133 = vmul.f32 %v117, 1.442695
    %v134 = vpow.pop %v133
    %v135 = vmul.f32 %v118, 1.442695
    %v136 = vpow.pop %v135
    %v137 = vmul.f32 %v119, 1.442695
    %v138 = vpow.pop %v137
    %v139 = vmul.f32 %v120, 1.442695
    %v140 = vpow.pop %v139
    %v141 = vmul.f32 %v121, 1.442695
    %v142 = vpow.pop %v141
    %v143 = vmul.f32 %v122, 1.442695
    %v144 = vpow.pop %v143
    %v145 = vmul.f32 %v123, 1.442695
    %v146 = vpow.pop %v145
    %v147 = vmul.f32 %v124, 1.442695
    %v148 = vpow.pop %v147
    %v149 = vmul.f32 %v125, 1.442695
    %v150 = vpow.pop %v149
    %v151 = vmul.f32 %v126, 1.442695
    %v152 = vpow.pop %v151
    %v153 = vmul.f32 %v127, 1.442695
    %v154 = vpow.pop %v153
    %v155 = vmul.f32 %v128, 1.442695
    %v156 = vpow.pop %v155
    %v157 = vmul.f32 %v129, 1.442695
    %v158 = vpow.pop %v157
    %v159 = vmul.f32 %v130, 1.442695
    %v160 = vpow.pop %v159
    %v161 = vmul.f32 %v131, 1.442695
    %v162 = vpow.pop %v161
    %v163 = vmul.f32 %v132, 1.442695
    %v164 = vpow.pop %v163
    %v165 = vsub.f32 %v134, 1.0
    %v166 = vsub.f32 %v136, 1.0
    %v167 = vsub.f32 %v138, 1.0
    %v168 = vsub.f32 %v140, 1.0
    %v169 = vsub.f32 %v142, 1.0
    %v170 = vsub.f32 %v144, 1.0
    %v171 = vsub.f32 %v146, 1.0
    %v172 = vsub.f32 %v148, 1.0
    %v173 = vsub.f32 %v150, 1.0
    %v174 = vsub.f32 %v152, 1.0
    %v175 = vsub.f32 %v154, 1.0
    %v176 = vsub.f32 %v156, 1.0
    %v177 = vsub.f32 %v158, 1.0
    %v178 = vsub.f32 %v160, 1.0
    %v179 = vsub.f32 %v162, 1.0
    %v180 = vsub.f32 %v164, 1.0
    %v181 = vrcp.pop 6.437752
    %v182 = vmul.f32 %v165, %v181
    %v183 = vmul.f32 %v166, %v181
    %v184 = vmul.f32 %v167, %v181
    %v185 = vmul.f32 %v168, %v181
    %v186 = vmul.f32 %v169, %v181
    %v187 = vmul.f32 %v170, %v181
    %v188 = vmul.f32 %v171, %v181
    %v189 = vmul.f32 %v172, %v181
    %v190 = vmul.f32 %v173, %v181
    %v191 = vmul.f32 %v174, %v181
    %v192 = vmul.f32 %v175, %v181
    %v193 = vmul.f32 %v176, %v181
    %v194 = vmul.f32 %v177, %v181
    %v195 = vmul.f32 %v178, %v181
    %v196 = vmul.f32 %v179, %v181
    %v197 = vmul.f32 %v180, %v181
    %v198 = vrsqrt.pop %v182
    %v199 = vmul.f32 %v182, %v198
    %vm200 = vcmp.eq.f32.partialorder %v182, inf
    %v201 = vsel %vm200, %v182, %v199
    %vm202 = vcmp.eq.f32.partialorder %v182, 0.0
    %v203 = vand.u32 %v182, 2147483648
    %v204 = vsel %vm202, %v203, %v201
    %v205 = vrsqrt.pop %v183
    %v206 = vmul.f32 %v183, %v205
    %vm207 = vcmp.eq.f32.partialorder %v183, inf
    %v208 = vsel %vm207, %v183, %v206
    %vm209 = vcmp.eq.f32.partialorder %v183, 0.0
    %v210 = vand.u32 %v183, 2147483648
    %v211 = vsel %vm209, %v210, %v208
    %v212 = vrsqrt.pop %v184
    %v213 = vmul.f32 %v184, %v212
    %vm214 = vcmp.eq.f32.partialorder %v184, inf
    %v215 = vsel %vm214, %v184, %v213
    %vm216 = vcmp.eq.f32.partialorder %v184, 0.0
    %v217 = vand.u32 %v184, 2147483648
    %v218 = vsel %vm216, %v217, %v215
    %v219 = vrsqrt.pop %v185
    %v220 = vmul.f32 %v185, %v219
    %vm221 = vcmp.eq.f32.partialorder %v185, inf
    %v222 = vsel %vm221, %v185, %v220
    %vm223 = vcmp.eq.f32.partialorder %v185, 0.0
    %v224 = vand.u32 %v185, 2147483648
    %v225 = vsel %vm223, %v224, %v222
    %v226 = vrsqrt.pop %v186
    %v227 = vmul.f32 %v186, %v226
    %vm228 = vcmp.eq.f32.partialorder %v186, inf
    %v229 = vsel %vm228, %v186, %v227
    %vm230 = vcmp.eq.f32.partialorder %v186, 0.0
    %v231 = vand.u32 %v186, 2147483648
    %v232 = vsel %vm230, %v231, %v229
    %v233 = vrsqrt.pop %v187
    %v234 = vmul.f32 %v187, %v233
    %vm235 = vcmp.eq.f32.partialorder %v187, inf
    %v236 = vsel %vm235, %v187, %v234
    %vm237 = vcmp.eq.f32.partialorder %v187, 0.0
    %v238 = vand.u32 %v187, 2147483648
    %v239 = vsel %vm237, %v238, %v236
    %v240 = vrsqrt.pop %v188
    %v241 = vmul.f32 %v188, %v240
    %vm242 = vcmp.eq.f32.partialorder %v188, inf
    %v243 = vsel %vm242, %v188, %v241
    %vm244 = vcmp.eq.f32.partialorder %v188, 0.0
    %v245 = vand.u32 %v188, 2147483648
    %v246 = vsel %vm244, %v245, %v243
    %v247 = vrsqrt.pop %v189
    %v248 = vmul.f32 %v189, %v247
    %vm249 = vcmp.eq.f32.partialorder %v189, inf
    %v250 = vsel %vm249, %v189, %v248
    %vm251 = vcmp.eq.f32.partialorder %v189, 0.0
    %v252 = vand.u32 %v189, 2147483648
    %v253 = vsel %vm251, %v252, %v250
    %v254 = vrsqrt.pop %v190
    %v255 = vmul.f32 %v190, %v254
    %vm256 = vcmp.eq.f32.partialorder %v190, inf
    %v257 = vsel %vm256, %v190, %v255
    %vm258 = vcmp.eq.f32.partialorder %v190, 0.0
    %v259 = vand.u32 %v190, 2147483648
    %v260 = vsel %vm258, %v259, %v257
    %v261 = vrsqrt.pop %v191
    %v262 = vmul.f32 %v191, %v261
    %vm263 = vcmp.eq.f32.partialorder %v191, inf
    %v264 = vsel %vm263, %v191, %v262
    %vm265 = vcmp.eq.f32.partialorder %v191, 0.0
    %v266 = vand.u32 %v191, 2147483648
    %v267 = vsel %vm265, %v266, %v264
    %v268 = vrsqrt.pop %v192
    %v269 = vmul.f32 %v192, %v268
    %vm270 = vcmp.eq.f32.partialorder %v192, inf
    %v271 = vsel %vm270, %v192, %v269
    %vm272 = vcmp.eq.f32.partialorder %v192, 0.0
    %v273 = vand.u32 %v192, 2147483648
    %v274 = vsel %vm272, %v273, %v271
    %v275 = vrsqrt.pop %v193
    %v276 = vmul.f32 %v193, %v275
    %vm277 = vcmp.eq.f32.partialorder %v193, inf
    %v278 = vsel %vm277, %v193, %v276
    %vm279 = vcmp.eq.f32.partialorder %v193, 0.0
    %v280 = vand.u32 %v193, 2147483648
    %v281 = vsel %vm279, %v280, %v278
    %v282 = vrsqrt.pop %v194
    %v283 = vmul.f32 %v194, %v282
    %vm284 = vcmp.eq.f32.partialorder %v194, inf
    %v285 = vsel %vm284, %v194, %v283
    %vm286 = vcmp.eq.f32.partialorder %v194, 0.0
    %v287 = vand.u32 %v194, 2147483648
    %v288 = vsel %vm286, %v287, %v285
    %v289 = vrsqrt.pop %v195
    %v290 = vmul.f32 %v195, %v289
    %vm291 = vcmp.eq.f32.partialorder %v195, inf
    %v292 = vsel %vm291, %v195, %v290
    %vm293 = vcmp.eq.f32.partialorder %v195, 0.0
    %v294 = vand.u32 %v195, 2147483648
    %v295 = vsel %vm293, %v294, %v292
    %v296 = vrsqrt.pop %v196
    %v297 = vmul.f32 %v196, %v296
    %vm298 = vcmp.eq.f32.partialorder %v196, inf
    %v299 = vsel %vm298, %v196, %v297
    %vm300 = vcmp.eq.f32.partialorder %v196, 0.0
    %v301 = vand.u32 %v196, 2147483648
    %v302 = vsel %vm300, %v301, %v299
    %v303 = vrsqrt.pop %v197
    %v304 = vmul.f32 %v197, %v303
    %vm305 = vcmp.eq.f32.partialorder %v197, inf
    %v306 = vsel %vm305, %v197, %v304
    %vm307 = vcmp.eq.f32.partialorder %v197, 0.0
    %v308 = vand.u32 %v197, 2147483648
    %v309 = vsel %vm307, %v308, %v306
    %v310 = vld [vmem:[#allocation2] sm:$0xff]
    %v311 = vld [vmem:[#allocation2 + $0x8] sm:$0xff]
    %v312 = vld [vmem:[#allocation2 + $0x10] sm:$0xff]
    %v313 = vld [vmem:[#allocation2 + $0x18] sm:$0xff]
    %v314 = vld [vmem:[#allocation2 + $0x20] sm:$0xff]
    %v315 = vld [vmem:[#allocation2 + $0x28] sm:$0xff]
    %v316 = vld [vmem:[#allocation2 + $0x30] sm:$0xff]
    %v317 = vld [vmem:[#allocation2 + $0x38] sm:$0xff]
    %v318 = vld [vmem:[#allocation2 + $0x40] sm:$0xff]
    %v319 = vld [vmem:[#allocation2 + $0x48] sm:$0xff]
    %v320 = vld [vmem:[#allocation2 + $0x50] sm:$0xff]
    %v321 = vld [vmem:[#allocation2 + $0x58] sm:$0xff]
    %v322 = vld [vmem:[#allocation2 + $0x60] sm:$0xff]
    %v323 = vld [vmem:[#allocation2 + $0x68] sm:$0xff]
    %v324 = vld [vmem:[#allocation2 + $0x70] sm:$0xff]
    %v325 = vld [vmem:[#allocation2 + $0x78] sm:$0xff]
    %v326 = vld [vmem:[#allocation2 + $0x80] sm:$0xff]
    %v327 = vld [vmem:[#allocation2 + $0x88] sm:$0xff]
    %v328 = vld [vmem:[#allocation2 + $0x90] sm:$0xff]
    %v329 = vld [vmem:[#allocation2 + $0x98] sm:$0xff]
    %v330 = vld [vmem:[#allocation2 + $0xa0] sm:$0xff]
    %v331 = vld [vmem:[#allocation2 + $0xa8] sm:$0xff]
    %v332 = vld [vmem:[#allocation2 + $0xb0] sm:$0xff]
    %v333 = vld [vmem:[#allocation2 + $0xb8] sm:$0xff]
    %v334 = vld [vmem:[#allocation2 + $0xc0] sm:$0xff]
    %v335 = vld [vmem:[#allocation2 + $0xc8] sm:$0xff]
    %v336 = vld [vmem:[#allocation2 + $0xd0] sm:$0xff]
    %v337 = vld [vmem:[#allocation2 + $0xd8] sm:$0xff]
    %v338 = vld [vmem:[#allocation2 + $0xe0] sm:$0xff]
    %v339 = vld [vmem:[#allocation2 + $0xe8] sm:$0xff]
    %v340 = vld [vmem:[#allocation2 + $0xf0] sm:$0xff]
    %v341 = vld [vmem:[#allocation2 + $0xf8] sm:$0xff]
    %v342 = vld [vmem:[#allocation2 + $0x100] sm:$0xff]
    %v343 = vld [vmem:[#allocation2 + $0x108] sm:$0xff]
    %v344 = vld [vmem:[#allocation2 + $0x110] sm:$0xff]
    %v345 = vld [vmem:[#allocation2 + $0x118] sm:$0xff]
    %v346 = vld [vmem:[#allocation2 + $0x120] sm:$0xff]
    %v347 = vld [vmem:[#allocation2 + $0x128] sm:$0xff]
    %v348 = vld [vmem:[#allocation2 + $0x130] sm:$0xff]
    %v349 = vld [vmem:[#allocation2 + $0x138] sm:$0xff]
    %v350 = vld [vmem:[#allocation2 + $0x140] sm:$0xff]
    %v351 = vld [vmem:[#allocation2 + $0x148] sm:$0xff]
    %v352 = vld [vmem:[#allocation2 + $0x150] sm:$0xff]
    %v353 = vld [vmem:[#allocation2 + $0x158] sm:$0xff]
    %v354 = vld [vmem:[#allocation2 + $0x160] sm:$0xff]
    %v355 = vld [vmem:[#allocation2 + $0x168] sm:$0xff]
    %v356 = vld [vmem:[#allocation2 + $0x170] sm:$0xff]
    %v357 = vld [vmem:[#allocation2 + $0x178] sm:$0xff]
    %v358 = vld [vmem:[#allocation2 + $0x180] sm:$0xff]
    %v359 = vld [vmem:[#allocation2 + $0x188] sm:$0xff]
    %v360 = vld [vmem:[#allocation2 + $0x190] sm:$0xff]
    %v361 = vld [vmem:[#allocation2 + $0x198] sm:$0xff]
    %v362 = vld [vmem:[#allocation2 + $0x1a0] sm:$0xff]
    %v363 = vld [vmem:[#allocation2 + $0x1a8] sm:$0xff]
    %v364 = vld [vmem:[#allocation2 + $0x1b0] sm:$0xff]
    %v365 = vld [vmem:[#allocation2 + $0x1b8] sm:$0xff]
    %v366 = vld [vmem:[#allocation2 + $0x1c0] sm:$0xff]
    %v367 = vld [vmem:[#allocation2 + $0x1c8] sm:$0xff]
    %v368 = vld [vmem:[#allocation2 + $0x1d0] sm:$0xff]
    %v369 = vld [vmem:[#allocation2 + $0x1d8] sm:$0xff]
    %v370 = vld [vmem:[#allocation2 + $0x1e0] sm:$0xff]
    %v371 = vld [vmem:[#allocation2 + $0x1e8] sm:$0xff]
    %v372 = vld [vmem:[#allocation2 + $0x1f0] sm:$0xff]
    %v373 = vld [vmem:[#allocation2 + $0x1f8] sm:$0xff]
    %v374 = vld [vmem:[#allocation2 + $0x200] sm:$0xff]
    %v375 = vld [vmem:[#allocation2 + $0x208] sm:$0xff]
    %v376 = vld [vmem:[#allocation2 + $0x210] sm:$0xff]
    %v377 = vld [vmem:[#allocation2 + $0x218] sm:$0xff]
    %v378 = vld [vmem:[#allocation2 + $0x220] sm:$0xff]
    %v379 = vld [vmem:[#allocation2 + $0x228] sm:$0xff]
    %v380 = vld [vmem:[#allocation2 + $0x230] sm:$0xff]
    %v381 = vld [vmem:[#allocation2 + $0x238] sm:$0xff]
    %v382 = vld [vmem:[#allocation2 + $0x240] sm:$0xff]
    %v383 = vld [vmem:[#allocation2 + $0x248] sm:$0xff]
    %v384 = vld [vmem:[#allocation2 + $0x250] sm:$0xff]
    %v385 = vld [vmem:[#allocation2 + $0x258] sm:$0xff]
    %v386 = vld [vmem:[#allocation2 + $0x260] sm:$0xff]
    %v387 = vld [vmem:[#allocation2 + $0x268] sm:$0xff]
    %v388 = vld [vmem:[#allocation2 + $0x270] sm:$0xff]
    %v389 = vld [vmem:[#allocation2 + $0x278] sm:$0xff]
    %v390 = vld [vmem:[#allocation2 + $0x280] sm:$0xff]
    %v391 = vld [vmem:[#allocation2 + $0x288] sm:$0xff]
    %v392 = vld [vmem:[#allocation2 + $0x290] sm:$0xff]
    %v393 = vld [vmem:[#allocation2 + $0x298] sm:$0xff]
    %v394 = vld [vmem:[#allocation2 + $0x2a0] sm:$0xff]
    %v395 = vld [vmem:[#allocation2 + $0x2a8] sm:$0xff]
    %v396 = vld [vmem:[#allocation2 + $0x2b0] sm:$0xff]
    %v397 = vld [vmem:[#allocation2 + $0x2b8] sm:$0xff]
    %v398 = vld [vmem:[#allocation2 + $0x2c0] sm:$0xff]
    %v399 = vld [vmem:[#allocation2 + $0x2c8] sm:$0xff]
    %v400 = vld [vmem:[#allocation2 + $0x2d0] sm:$0xff]
    %v401 = vld [vmem:[#allocation2 + $0x2d8] sm:$0xff]
    %v402 = vld [vmem:[#allocation2 + $0x2e0] sm:$0xff]
    %v403 = vld [vmem:[#allocation2 + $0x2e8] sm:$0xff]
    %v404 = vld [vmem:[#allocation2 + $0x2f0] sm:$0xff]
    %v405 = vld [vmem:[#allocation2 + $0x2f8] sm:$0xff]
    %v406 = vld [vmem:[#allocation2 + $0x300] sm:$0xff]
    %v407 = vld [vmem:[#allocation2 + $0x308] sm:$0xff]
    %v408 = vld [vmem:[#allocation2 + $0x310] sm:$0xff]
    %v409 = vld [vmem:[#allocation2 + $0x318] sm:$0xff]
    %v410 = vld [vmem:[#allocation2 + $0x320] sm:$0xff]
    %v411 = vld [vmem:[#allocation2 + $0x328] sm:$0xff]
    %v412 = vld [vmem:[#allocation2 + $0x330] sm:$0xff]
    %v413 = vld [vmem:[#allocation2 + $0x338] sm:$0xff]
    %v414 = vld [vmem:[#allocation2 + $0x340] sm:$0xff]
    %v415 = vld [vmem:[#allocation2 + $0x348] sm:$0xff]
    %v416 = vld [vmem:[#allocation2 + $0x350] sm:$0xff]
    %v417 = vld [vmem:[#allocation2 + $0x358] sm:$0xff]
    %v418 = vld [vmem:[#allocation2 + $0x360] sm:$0xff]
    %v419 = vld [vmem:[#allocation2 + $0x368] sm:$0xff]
    %v420 = vld [vmem:[#allocation2 + $0x370] sm:$0xff]
    %v421 = vld [vmem:[#allocation2 + $0x378] sm:$0xff]
    %v422 = vld [vmem:[#allocation2 + $0x380] sm:$0xff]
    %v423 = vld [vmem:[#allocation2 + $0x388] sm:$0xff]
    %v424 = vld [vmem:[#allocation2 + $0x390] sm:$0xff]
    %v425 = vld [vmem:[#allocation2 + $0x398] sm:$0xff]
    %v426 = vld [vmem:[#allocation2 + $0x3a0] sm:$0xff]
    %v427 = vld [vmem:[#allocation2 + $0x3a8] sm:$0xff]
    %v428 = vld [vmem:[#allocation2 + $0x3b0] sm:$0xff]
    %v429 = vld [vmem:[#allocation2 + $0x3b8] sm:$0xff]
    %v430 = vld [vmem:[#allocation2 + $0x3c0] sm:$0xff]
    %v431 = vld [vmem:[#allocation2 + $0x3c8] sm:$0xff]
    %v432 = vld [vmem:[#allocation2 + $0x3d0] sm:$0xff]
    %v433 = vld [vmem:[#allocation2 + $0x3d8] sm:$0xff]
    %v434 = vld [vmem:[#allocation2 + $0x3e0] sm:$0xff]
    %v435 = vld [vmem:[#allocation2 + $0x3e8] sm:$0xff]
    %v436 = vld [vmem:[#allocation2 + $0x3f0] sm:$0xff]
    %v437 = vld [vmem:[#allocation2 + $0x3f8] sm:$0xff]
    %v438 = vld [vmem:[#allocation4] sm:$0xff]
    %v439 = vld [vmem:[#allocation4 + $0x8] sm:$0xff]
    %v440 = vld [vmem:[#allocation4 + $0x10] sm:$0xff]
    %v441 = vld [vmem:[#allocation4 + $0x18] sm:$0xff]
    %v442 = vld [vmem:[#allocation4 + $0x20] sm:$0xff]
    %v443 = vld [vmem:[#allocation4 + $0x28] sm:$0xff]
    %v444 = vld [vmem:[#allocation4 + $0x30] sm:$0xff]
    %v445 = vld [vmem:[#allocation4 + $0x38] sm:$0xff]
    %v446 = vld [vmem:[#allocation4 + $0x40] sm:$0xff]
    %v447 = vld [vmem:[#allocation4 + $0x48] sm:$0xff]
    %v448 = vld [vmem:[#allocation4 + $0x50] sm:$0xff]
    %v449 = vld [vmem:[#allocation4 + $0x58] sm:$0xff]
    %v450 = vld [vmem:[#allocation4 + $0x60] sm:$0xff]
    %v451 = vld [vmem:[#allocation4 + $0x68] sm:$0xff]
    %v452 = vld [vmem:[#allocation4 + $0x70] sm:$0xff]
    %v453 = vld [vmem:[#allocation4 + $0x78] sm:$0xff]
    %v454 = vld [vmem:[#allocation4 + $0x80] sm:$0xff]
    %v455 = vld [vmem:[#allocation4 + $0x88] sm:$0xff]
    %v456 = vld [vmem:[#allocation4 + $0x90] sm:$0xff]
    %v457 = vld [vmem:[#allocation4 + $0x98] sm:$0xff]
    %v458 = vld [vmem:[#allocation4 + $0xa0] sm:$0xff]
    %v459 = vld [vmem:[#allocation4 + $0xa8] sm:$0xff]
    %v460 = vld [vmem:[#allocation4 + $0xb0] sm:$0xff]
    %v461 = vld [vmem:[#allocation4 + $0xb8] sm:$0xff]
    %v462 = vld [vmem:[#allocation4 + $0xc0] sm:$0xff]
    %v463 = vld [vmem:[#allocation4 + $0xc8] sm:$0xff]
    %v464 = vld [vmem:[#allocation4 + $0xd0] sm:$0xff]
    %v465 = vld [vmem:[#allocation4 + $0xd8] sm:$0xff]
    %v466 = vld [vmem:[#allocation4 + $0xe0] sm:$0xff]
    %v467 = vld [vmem:[#allocation4 + $0xe8] sm:$0xff]
    %v468 = vld [vmem:[#allocation4 + $0xf0] sm:$0xff]
    %v469 = vld [vmem:[#allocation4 + $0xf8] sm:$0xff]
    %v470 = vld [vmem:[#allocation4 + $0x100] sm:$0xff]
    %v471 = vld [vmem:[#allocation4 + $0x108] sm:$0xff]
    %v472 = vld [vmem:[#allocation4 + $0x110] sm:$0xff]
    %v473 = vld [vmem:[#allocation4 + $0x118] sm:$0xff]
    %v474 = vld [vmem:[#allocation4 + $0x120] sm:$0xff]
    %v475 = vld [vmem:[#allocation4 + $0x128] sm:$0xff]
    %v476 = vld [vmem:[#allocation4 + $0x130] sm:$0xff]
    %v477 = vld [vmem:[#allocation4 + $0x138] sm:$0xff]
    %v478 = vld [vmem:[#allocation4 + $0x140] sm:$0xff]
    %v479 = vld [vmem:[#allocation4 + $0x148] sm:$0xff]
    %v480 = vld [vmem:[#allocation4 + $0x150] sm:$0xff]
    %v481 = vld [vmem:[#allocation4 + $0x158] sm:$0xff]
    %v482 = vld [vmem:[#allocation4 + $0x160] sm:$0xff]
    %v483 = vld [vmem:[#allocation4 + $0x168] sm:$0xff]
    %v484 = vld [vmem:[#allocation4 + $0x170] sm:$0xff]
    %v485 = vld [vmem:[#allocation4 + $0x178] sm:$0xff]
    %v486 = vld [vmem:[#allocation4 + $0x180] sm:$0xff]
    %v487 = vld [vmem:[#allocation4 + $0x188] sm:$0xff]
    %v488 = vld [vmem:[#allocation4 + $0x190] sm:$0xff]
    %v489 = vld [vmem:[#allocation4 + $0x198] sm:$0xff]
    %v490 = vld [vmem:[#allocation4 + $0x1a0] sm:$0xff]
    %v491 = vld [vmem:[#allocation4 + $0x1a8] sm:$0xff]
    %v492 = vld [vmem:[#allocation4 + $0x1b0] sm:$0xff]
    %v493 = vld [vmem:[#allocation4 + $0x1b8] sm:$0xff]
    %v494 = vld [vmem:[#allocation4 + $0x1c0] sm:$0xff]
    %v495 = vld [vmem:[#allocation4 + $0x1c8] sm:$0xff]
    %v496 = vld [vmem:[#allocation4 + $0x1d0] sm:$0xff]
    %v497 = vld [vmem:[#allocation4 + $0x1d8] sm:$0xff]
    %v498 = vld [vmem:[#allocation4 + $0x1e0] sm:$0xff]
    %v499 = vld [vmem:[#allocation4 + $0x1e8] sm:$0xff]
    %v500 = vld [vmem:[#allocation4 + $0x1f0] sm:$0xff]
    %v501 = vld [vmem:[#allocation4 + $0x1f8] sm:$0xff]
    %v502 = vld [vmem:[#allocation4 + $0x200] sm:$0xff]
    %v503 = vld [vmem:[#allocation4 + $0x208] sm:$0xff]
    %v504 = vld [vmem:[#allocation4 + $0x210] sm:$0xff]
    %v505 = vld [vmem:[#allocation4 + $0x218] sm:$0xff]
    %v506 = vld [vmem:[#allocation4 + $0x220] sm:$0xff]
    %v507 = vld [vmem:[#allocation4 + $0x228] sm:$0xff]
    %v508 = vld [vmem:[#allocation4 + $0x230] sm:$0xff]
    %v509 = vld [vmem:[#allocation4 + $0x238] sm:$0xff]
    %v510 = vld [vmem:[#allocation4 + $0x240] sm:$0xff]
    %v511 = vld [vmem:[#allocation4 + $0x248] sm:$0xff]
    %v512 = vld [vmem:[#allocation4 + $0x250] sm:$0xff]
    %v513 = vld [vmem:[#allocation4 + $0x258] sm:$0xff]
    %v514 = vld [vmem:[#allocation4 + $0x260] sm:$0xff]
    %v515 = vld [vmem:[#allocation4 + $0x268] sm:$0xff]
    %v516 = vld [vmem:[#allocation4 + $0x270] sm:$0xff]
    %v517 = vld [vmem:[#allocation4 + $0x278] sm:$0xff]
    %v518 = vld [vmem:[#allocation4 + $0x280] sm:$0xff]
    %v519 = vld [vmem:[#allocation4 + $0x288] sm:$0xff]
    %v520 = vld [vmem:[#allocation4 + $0x290] sm:$0xff]
    %v521 = vld [vmem:[#allocation4 + $0x298] sm:$0xff]
    %v522 = vld [vmem:[#allocation4 + $0x2a0] sm:$0xff]
    %v523 = vld [vmem:[#allocation4 + $0x2a8] sm:$0xff]
    %v524 = vld [vmem:[#allocation4 + $0x2b0] sm:$0xff]
    %v525 = vld [vmem:[#allocation4 + $0x2b8] sm:$0xff]
    %v526 = vld [vmem:[#allocation4 + $0x2c0] sm:$0xff]
    %v527 = vld [vmem:[#allocation4 + $0x2c8] sm:$0xff]
    %v528 = vld [vmem:[#allocation4 + $0x2d0] sm:$0xff]
    %v529 = vld [vmem:[#allocation4 + $0x2d8] sm:$0xff]
    %v530 = vld [vmem:[#allocation4 + $0x2e0] sm:$0xff]
    %v531 = vld [vmem:[#allocation4 + $0x2e8] sm:$0xff]
    %v532 = vld [vmem:[#allocation4 + $0x2f0] sm:$0xff]
    %v533 = vld [vmem:[#allocation4 + $0x2f8] sm:$0xff]
    %v534 = vld [vmem:[#allocation4 + $0x300] sm:$0xff]
    %v535 = vld [vmem:[#allocation4 + $0x308] sm:$0xff]
    %v536 = vld [vmem:[#allocation4 + $0x310] sm:$0xff]
    %v537 = vld [vmem:[#allocation4 + $0x318] sm:$0xff]
    %v538 = vld [vmem:[#allocation4 + $0x320] sm:$0xff]
    %v539 = vld [vmem:[#allocation4 + $0x328] sm:$0xff]
    %v540 = vld [vmem:[#allocation4 + $0x330] sm:$0xff]
    %v541 = vld [vmem:[#allocation4 + $0x338] sm:$0xff]
    %v542 = vld [vmem:[#allocation4 + $0x340] sm:$0xff]
    %v543 = vld [vmem:[#allocation4 + $0x348] sm:$0xff]
    %v544 = vld [vmem:[#allocation4 + $0x350] sm:$0xff]
    %v545 = vld [vmem:[#allocation4 + $0x358] sm:$0xff]
    %v546 = vld [vmem:[#allocation4 + $0x360] sm:$0xff]
    %v547 = vld [vmem:[#allocation4 + $0x368] sm:$0xff]
    %v548 = vld [vmem:[#allocation4 + $0x370] sm:$0xff]
    %v549 = vld [vmem:[#allocation4 + $0x378] sm:$0xff]
    %v550 = vld [vmem:[#allocation4 + $0x380] sm:$0xff]
    %v551 = vld [vmem:[#allocation4 + $0x388] sm:$0xff]
    %v552 = vld [vmem:[#allocation4 + $0x390] sm:$0xff]
    %v553 = vld [vmem:[#allocation4 + $0x398] sm:$0xff]
    %v554 = vld [vmem:[#allocation4 + $0x3a0] sm:$0xff]
    %v555 = vld [vmem:[#allocation4 + $0x3a8] sm:$0xff]
    %v556 = vld [vmem:[#allocation4 + $0x3b0] sm:$0xff]
    %v557 = vld [vmem:[#allocation4 + $0x3b8] sm:$0xff]
    %v558 = vld [vmem:[#allocation4 + $0x3c0] sm:$0xff]
    %v559 = vld [vmem:[#allocation4 + $0x3c8] sm:$0xff]
    %v560 = vld [vmem:[#allocation4 + $0x3d0] sm:$0xff]
    %v561 = vld [vmem:[#allocation4 + $0x3d8] sm:$0xff]
    %v562 = vld [vmem:[#allocation4 + $0x3e0] sm:$0xff]
    %v563 = vld [vmem:[#allocation4 + $0x3e8] sm:$0xff]
    %v564 = vld [vmem:[#allocation4 + $0x3f0] sm:$0xff]
    %v565 = vld [vmem:[#allocation4 + $0x3f8] sm:$0xff]
    %567 = vset.pattern.permute.xlu0 0
    %568 = vperm.xlu0 %567, %v204
    %v569 = vpop.permute.xlu0 %568
    %572 = vset.pattern.permute.xlu0 0
    %573 = vperm.xlu0 %572, %v211
    %v574 = vpop.permute.xlu0 %573
    %577 = vset.pattern.permute.xlu0 0
    %578 = vperm.xlu0 %577, %v218
    %v579 = vpop.permute.xlu0 %578
    %582 = vset.pattern.permute.xlu0 0
    %583 = vperm.xlu0 %582, %v225
    %v584 = vpop.permute.xlu0 %583
    %587 = vset.pattern.permute.xlu0 0
    %588 = vperm.xlu0 %587, %v232
    %v589 = vpop.permute.xlu0 %588
    %592 = vset.pattern.permute.xlu0 0
    %593 = vperm.xlu0 %592, %v239
    %v594 = vpop.permute.xlu0 %593
    %597 = vset.pattern.permute.xlu0 0
    %598 = vperm.xlu0 %597, %v246
    %v599 = vpop.permute.xlu0 %598
    %602 = vset.pattern.permute.xlu0 0
    %603 = vperm.xlu0 %602, %v253
    %v604 = vpop.permute.xlu0 %603
    %607 = vset.pattern.permute.xlu0 0
    %608 = vperm.xlu0 %607, %v260
    %v609 = vpop.permute.xlu0 %608
    %612 = vset.pattern.permute.xlu0 0
    %613 = vperm.xlu0 %612, %v267
    %v614 = vpop.permute.xlu0 %613
    %617 = vset.pattern.permute.xlu0 0
    %618 = vperm.xlu0 %617, %v274
    %v619 = vpop.permute.xlu0 %618
    %622 = vset.pattern.permute.xlu0 0
    %623 = vperm.xlu0 %622, %v281
    %v624 = vpop.permute.xlu0 %623
    %627 = vset.pattern.permute.xlu0 0
    %628 = vperm.xlu0 %627, %v288
    %v629 = vpop.permute.xlu0 %628
    %632 = vset.pattern.permute.xlu0 0
    %633 = vperm.xlu0 %632, %v295
    %v634 = vpop.permute.xlu0 %633
    %637 = vset.pattern.permute.xlu0 0
    %638 = vperm.xlu0 %637, %v302
    %v639 = vpop.permute.xlu0 %638
    %642 = vset.pattern.permute.xlu0 0
    %643 = vperm.xlu0 %642, %v309
    %v644 = vpop.permute.xlu0 %643
    %v646 = vmul.f32 %v438, %v569
    %v647 = vmul.f32 %v439, %v569
    %v648 = vmul.f32 %v440, %v569
    %v649 = vmul.f32 %v441, %v569
    %v650 = vmul.f32 %v442, %v569
    %v651 = vmul.f32 %v443, %v569
    %v652 = vmul.f32 %v444, %v569
    %v653 = vmul.f32 %v445, %v569
    %v654 = vmul.f32 %v446, %v574
    %v655 = vmul.f32 %v447, %v574
    %v656 = vmul.f32 %v448, %v574
    %v657 = vmul.f32 %v449, %v574
    %v658 = vmul.f32 %v450, %v574
    %v659 = vmul.f32 %v451, %v574
    %v660 = vmul.f32 %v452, %v574
    %v661 = vmul.f32 %v453, %v574
    %v662 = vmul.f32 %v454, %v579
    %v663 = vmul.f32 %v455, %v579
    %v664 = vmul.f32 %v456, %v579
    %v665 = vmul.f32 %v457, %v579
    %v666 = vmul.f32 %v458, %v579
    %v667 = vmul.f32 %v459, %v579
    %v668 = vmul.f32 %v460, %v579
    %v669 = vmul.f32 %v461, %v579
    %v670 = vmul.f32 %v462, %v584
    %v671 = vmul.f32 %v463, %v584
    %v672 = vmul.f32 %v464, %v584
    %v673 = vmul.f32 %v465, %v584
    %v674 = vmul.f32 %v466, %v584
    %v675 = vmul.f32 %v467, %v584
    %v676 = vmul.f32 %v468, %v584
    %v677 = vmul.f32 %v469, %v584
    %v678 = vmul.f32 %v470, %v589
    %v679 = vmul.f32 %v471, %v589
    %v680 = vmul.f32 %v472, %v589
    %v681 = vmul.f32 %v473, %v589
    %v682 = vmul.f32 %v474, %v589
    %v683 = vmul.f32 %v475, %v589
    %v684 = vmul.f32 %v476, %v589
    %v685 = vmul.f32 %v477, %v589
    %v686 = vmul.f32 %v478, %v594
    %v687 = vmul.f32 %v479, %v594
    %v688 = vmul.f32 %v480, %v594
    %v689 = vmul.f32 %v481, %v594
    %v690 = vmul.f32 %v482, %v594
    %v691 = vmul.f32 %v483, %v594
    %v692 = vmul.f32 %v484, %v594
    %v693 = vmul.f32 %v485, %v594
    %v694 = vmul.f32 %v486, %v599
    %v695 = vmul.f32 %v487, %v599
    %v696 = vmul.f32 %v488, %v599
    %v697 = vmul.f32 %v489, %v599
    %v698 = vmul.f32 %v490, %v599
    %v699 = vmul.f32 %v491, %v599
    %v700 = vmul.f32 %v492, %v599
    %v701 = vmul.f32 %v493, %v599
    %v702 = vmul.f32 %v494, %v604
    %v703 = vmul.f32 %v495, %v604
    %v704 = vmul.f32 %v496, %v604
    %v705 = vmul.f32 %v497, %v604
    %v706 = vmul.f32 %v498, %v604
    %v707 = vmul.f32 %v499, %v604
    %v708 = vmul.f32 %v500, %v604
    %v709 = vmul.f32 %v501, %v604
    %v710 = vmul.f32 %v502, %v609
    %v711 = vmul.f32 %v503, %v609
    %v712 = vmul.f32 %v504, %v609
    %v713 = vmul.f32 %v505, %v609
    %v714 = vmul.f32 %v506, %v609
    %v715 = vmul.f32 %v507, %v609
    %v716 = vmul.f32 %v508, %v609
    %v717 = vmul.f32 %v509, %v609
    %v718 = vmul.f32 %v510, %v614
    %v719 = vmul.f32 %v511, %v614
    %v720 = vmul.f32 %v512, %v614
    %v721 = vmul.f32 %v513, %v614
    %v722 = vmul.f32 %v514, %v614
    %v723 = vmul.f32 %v515, %v614
    %v724 = vmul.f32 %v516, %v614
    %v725 = vmul.f32 %v517, %v614
    %v726 = vmul.f32 %v518, %v619
    %v727 = vmul.f32 %v519, %v619
    %v728 = vmul.f32 %v520, %v619
    %v729 = vmul.f32 %v521, %v619
    %v730 = vmul.f32 %v522, %v619
    %v731 = vmul.f32 %v523, %v619
    %v732 = vmul.f32 %v524, %v619
    %v733 = vmul.f32 %v525, %v619
    %v734 = vmul.f32 %v526, %v624
    %v735 = vmul.f32 %v527, %v624
    %v736 = vmul.f32 %v528, %v624
    %v737 = vmul.f32 %v529, %v624
    %v738 = vmul.f32 %v530, %v624
    %v739 = vmul.f32 %v531, %v624
    %v740 = vmul.f32 %v532, %v624
    %v741 = vmul.f32 %v533, %v624
    %v742 = vmul.f32 %v534, %v629
    %v743 = vmul.f32 %v535, %v629
    %v744 = vmul.f32 %v536, %v629
    %v745 = vmul.f32 %v537, %v629
    %v746 = vmul.f32 %v538, %v629
    %v747 = vmul.f32 %v539, %v629
    %v748 = vmul.f32 %v540, %v629
    %v749 = vmul.f32 %v541, %v629
    %v750 = vmul.f32 %v542, %v634
    %v751 = vmul.f32 %v543, %v634
    %v752 = vmul.f32 %v544, %v634
    %v753 = vmul.f32 %v545, %v634
    %v754 = vmul.f32 %v546, %v634
    %v755 = vmul.f32 %v547, %v634
    %v756 = vmul.f32 %v548, %v634
    %v757 = vmul.f32 %v549, %v634
    %v758 = vmul.f32 %v550, %v639
    %v759 = vmul.f32 %v551, %v639
    %v760 = vmul.f32 %v552, %v639
    %v761 = vmul.f32 %v553, %v639
    %v762 = vmul.f32 %v554, %v639
    %v763 = vmul.f32 %v555, %v639
    %v764 = vmul.f32 %v556, %v639
    %v765 = vmul.f32 %v557, %v639
    %v766 = vmul.f32 %v558, %v644
    %v767 = vmul.f32 %v559, %v644
    %v768 = vmul.f32 %v560, %v644
    %v769 = vmul.f32 %v561, %v644
    %v770 = vmul.f32 %v562, %v644
    %v771 = vmul.f32 %v563, %v644
    %v772 = vmul.f32 %v564, %v644
    %v773 = vmul.f32 %v565, %v644
    %v774 = vadd.f32 %v310, %v646
    %v775 = vadd.f32 %v311, %v647
    %v776 = vadd.f32 %v312, %v648
    %v777 = vadd.f32 %v313, %v649
    %v778 = vadd.f32 %v314, %v650
    %v779 = vadd.f32 %v315, %v651
    %v780 = vadd.f32 %v316, %v652
    %v781 = vadd.f32 %v317, %v653
    %v782 = vadd.f32 %v318, %v654
    %v783 = vadd.f32 %v319, %v655
    %v784 = vadd.f32 %v320, %v656
    %v785 = vadd.f32 %v321, %v657
    %v786 = vadd.f32 %v322, %v658
    %v787 = vadd.f32 %v323, %v659
    %v788 = vadd.f32 %v324, %v660
    %v789 = vadd.f32 %v325, %v661
    %v790 = vadd.f32 %v326, %v662
    %v791 = vadd.f32 %v327, %v663
    %v792 = vadd.f32 %v328, %v664
    %v793 = vadd.f32 %v329, %v665
    %v794 = vadd.f32 %v330, %v666
    %v795 = vadd.f32 %v331, %v667
    %v796 = vadd.f32 %v332, %v668
    %v797 = vadd.f32 %v333, %v669
    %v798 = vadd.f32 %v334, %v670
    %v799 = vadd.f32 %v335, %v671
    %v800 = vadd.f32 %v336, %v672
    %v801 = vadd.f32 %v337, %v673
    %v802 = vadd.f32 %v338, %v674
    %v803 = vadd.f32 %v339, %v675
    %v804 = vadd.f32 %v340, %v676
    %v805 = vadd.f32 %v341, %v677
    %v806 = vadd.f32 %v342, %v678
    %v807 = vadd.f32 %v343, %v679
    %v808 = vadd.f32 %v344, %v680
    %v809 = vadd.f32 %v345, %v681
    %v810 = vadd.f32 %v346, %v682
    %v811 = vadd.f32 %v347, %v683
    %v812 = vadd.f32 %v348, %v684
    %v813 = vadd.f32 %v349, %v685
    %v814 = vadd.f32 %v350, %v686
    %v815 = vadd.f32 %v351, %v687
    %v816 = vadd.f32 %v352, %v688
    %v817 = vadd.f32 %v353, %v689
    %v818 = vadd.f32 %v354, %v690
    %v819 = vadd.f32 %v355, %v691
    %v820 = vadd.f32 %v356, %v692
    %v821 = vadd.f32 %v357, %v693
    %v822 = vadd.f32 %v358, %v694
    %v823 = vadd.f32 %v359, %v695
    %v824 = vadd.f32 %v360, %v696
    %v825 = vadd.f32 %v361, %v697
    %v826 = vadd.f32 %v362, %v698
    %v827 = vadd.f32 %v363, %v699
    %v828 = vadd.f32 %v364, %v700
    %v829 = vadd.f32 %v365, %v701
    %v830 = vadd.f32 %v366, %v702
    %v831 = vadd.f32 %v367, %v703
    %v832 = vadd.f32 %v368, %v704
    %v833 = vadd.f32 %v369, %v705
    %v834 = vadd.f32 %v370, %v706
    %v835 = vadd.f32 %v371, %v707
    %v836 = vadd.f32 %v372, %v708
    %v837 = vadd.f32 %v373, %v709
    %v838 = vadd.f32 %v374, %v710
    %v839 = vadd.f32 %v375, %v711
    %v840 = vadd.f32 %v376, %v712
    %v841 = vadd.f32 %v377, %v713
    %v842 = vadd.f32 %v378, %v714
    %v843 = vadd.f32 %v379, %v715
    %v844 = vadd.f32 %v380, %v716
    %v845 = vadd.f32 %v381, %v717
    %v846 = vadd.f32 %v382, %v718
    %v847 = vadd.f32 %v383, %v719
    %v848 = vadd.f32 %v384, %v720
    %v849 = vadd.f32 %v385, %v721
    %v850 = vadd.f32 %v386, %v722
    %v851 = vadd.f32 %v387, %v723
    %v852 = vadd.f32 %v388, %v724
    %v853 = vadd.f32 %v389, %v725
    %v854 = vadd.f32 %v390, %v726
    %v855 = vadd.f32 %v391, %v727
    %v856 = vadd.f32 %v392, %v728
    %v857 = vadd.f32 %v393, %v729
    %v858 = vadd.f32 %v394, %v730
    %v859 = vadd.f32 %v395, %v731
    %v860 = vadd.f32 %v396, %v732
    %v861 = vadd.f32 %v397, %v733
    %v862 = vadd.f32 %v398, %v734
    %v863 = vadd.f32 %v399, %v735
    %v864 = vadd.f32 %v400, %v736
    %v865 = vadd.f32 %v401, %v737
    %v866 = vadd.f32 %v402, %v738
    %v867 = vadd.f32 %v403, %v739
    %v868 = vadd.f32 %v404, %v740
    %v869 = vadd.f32 %v405, %v741
    %v870 = vadd.f32 %v406, %v742
    %v871 = vadd.f32 %v407, %v743
    %v872 = vadd.f32 %v408, %v744
    %v873 = vadd.f32 %v409, %v745
    %v874 = vadd.f32 %v410, %v746
    %v875 = vadd.f32 %v411, %v747
    %v876 = vadd.f32 %v412, %v748
    %v877 = vadd.f32 %v413, %v749
    %v878 = vadd.f32 %v414, %v750
    %v879 = vadd.f32 %v415, %v751
    %v880 = vadd.f32 %v416, %v752
    %v881 = vadd.f32 %v417, %v753
    %v882 = vadd.f32 %v418, %v754
    %v883 = vadd.f32 %v419, %v755
    %v884 = vadd.f32 %v420, %v756
    %v885 = vadd.f32 %v421, %v757
    %v886 = vadd.f32 %v422, %v758
    %v887 = vadd.f32 %v423, %v759
    %v888 = vadd.f32 %v424, %v760
    %v889 = vadd.f32 %v425, %v761
    %v890 = vadd.f32 %v426, %v762
    %v891 = vadd.f32 %v427, %v763
    %v892 = vadd.f32 %v428, %v764
    %v893 = vadd.f32 %v429, %v765
    %v894 = vadd.f32 %v430, %v766
    %v895 = vadd.f32 %v431, %v767
    %v896 = vadd.f32 %v432, %v768
    %v897 = vadd.f32 %v433, %v769
    %v898 = vadd.f32 %v434, %v770
    %v899 = vadd.f32 %v435, %v771
    %v900 = vadd.f32 %v436, %v772
    %v901 = vadd.f32 %v437, %v773
    %v902 = vpack.c.bf16 %v782, %v774
    %v903 = vpack.c.bf16 %v783, %v775
    %v904 = vpack.c.bf16 %v784, %v776
    %v905 = vpack.c.bf16 %v785, %v777
    %v906 = vpack.c.bf16 %v786, %v778
    %v907 = vpack.c.bf16 %v787, %v779
    %v908 = vpack.c.bf16 %v788, %v780
    %v909 = vpack.c.bf16 %v789, %v781
    %v910 = vpack.c.bf16 %v798, %v790
    %v911 = vpack.c.bf16 %v799, %v791
    %v912 = vpack.c.bf16 %v800, %v792
    %v913 = vpack.c.bf16 %v801, %v793
    %v914 = vpack.c.bf16 %v802, %v794
    %v915 = vpack.c.bf16 %v803, %v795
    %v916 = vpack.c.bf16 %v804, %v796
    %v917 = vpack.c.bf16 %v805, %v797
    %v918 = vpack.c.bf16 %v814, %v806
    %v919 = vpack.c.bf16 %v815, %v807
    %v920 = vpack.c.bf16 %v816, %v808
    %v921 = vpack.c.bf16 %v817, %v809
    %v922 = vpack.c.bf16 %v818, %v810
    %v923 = vpack.c.bf16 %v819, %v811
    %v924 = vpack.c.bf16 %v820, %v812
    %v925 = vpack.c.bf16 %v821, %v813
    %v926 = vpack.c.bf16 %v830, %v822
    %v927 = vpack.c.bf16 %v831, %v823
    %v928 = vpack.c.bf16 %v832, %v824
    %v929 = vpack.c.bf16 %v833, %v825
    %v930 = vpack.c.bf16 %v834, %v826
    %v931 = vpack.c.bf16 %v835, %v827
    %v932 = vpack.c.bf16 %v836, %v828
    %v933 = vpack.c.bf16 %v837, %v829
    %v934 = vpack.c.bf16 %v846, %v838
    %v935 = vpack.c.bf16 %v847, %v839
    %v936 = vpack.c.bf16 %v848, %v840
    %v937 = vpack.c.bf16 %v849, %v841
    %v938 = vpack.c.bf16 %v850, %v842
    %v939 = vpack.c.bf16 %v851, %v843
    %v940 = vpack.c.bf16 %v852, %v844
    %v941 = vpack.c.bf16 %v853, %v845
    %v942 = vpack.c.bf16 %v862, %v854
    %v943 = vpack.c.bf16 %v863, %v855
    %v944 = vpack.c.bf16 %v864, %v856
    %v945 = vpack.c.bf16 %v865, %v857
    %v946 = vpack.c.bf16 %v866, %v858
    %v947 = vpack.c.bf16 %v867, %v859
    %v948 = vpack.c.bf16 %v868, %v860
    %v949 = vpack.c.bf16 %v869, %v861
    %v950 = vpack.c.bf16 %v878, %v870
    %v951 = vpack.c.bf16 %v879, %v871
    %v952 = vpack.c.bf16 %v880, %v872
    %v953 = vpack.c.bf16 %v881, %v873
    %v954 = vpack.c.bf16 %v882, %v874
    %v955 = vpack.c.bf16 %v883, %v875
    %v956 = vpack.c.bf16 %v884, %v876
    %v957 = vpack.c.bf16 %v885, %v877
    %v958 = vpack.c.bf16 %v894, %v886
    %v959 = vpack.c.bf16 %v895, %v887
    %v960 = vpack.c.bf16 %v896, %v888
    %v961 = vpack.c.bf16 %v897, %v889
    %v962 = vpack.c.bf16 %v898, %v890
    %v963 = vpack.c.bf16 %v899, %v891
    %v964 = vpack.c.bf16 %v900, %v892
    %v965 = vpack.c.bf16 %v901, %v893
    %v966 = vld [vmem:[#allocation6] sm:$0xf]
    %v967 = vld [vmem:[#allocation6 + $0x4] sm:$0xf]
    %v968 = vld [vmem:[#allocation6 + $0x8] sm:$0xf]
    %v969 = vld [vmem:[#allocation6 + $0xc] sm:$0xf]
    %v970 = vld [vmem:[#allocation6 + $0x10] sm:$0xf]
    %v971 = vld [vmem:[#allocation6 + $0x14] sm:$0xf]
    %v972 = vld [vmem:[#allocation6 + $0x18] sm:$0xf]
    %v973 = vld [vmem:[#allocation6 + $0x1c] sm:$0xf]
    %v974 = vld [vmem:[#allocation6 + $0x20] sm:$0xf]
    %v975 = vld [vmem:[#allocation6 + $0x24] sm:$0xf]
    %v976 = vld [vmem:[#allocation6 + $0x28] sm:$0xf]
    %v977 = vld [vmem:[#allocation6 + $0x2c] sm:$0xf]
    %v978 = vld [vmem:[#allocation6 + $0x30] sm:$0xf]
    %v979 = vld [vmem:[#allocation6 + $0x34] sm:$0xf]
    %v980 = vld [vmem:[#allocation6 + $0x38] sm:$0xf]
    %v981 = vld [vmem:[#allocation6 + $0x3c] sm:$0xf]
    %v982 = vld [vmem:[#allocation6 + $0x40] sm:$0xf]
    %v983 = vld [vmem:[#allocation6 + $0x44] sm:$0xf]
    %v984 = vld [vmem:[#allocation6 + $0x48] sm:$0xf]
    %v985 = vld [vmem:[#allocation6 + $0x4c] sm:$0xf]
    %v986 = vld [vmem:[#allocation6 + $0x50] sm:$0xf]
    %v987 = vld [vmem:[#allocation6 + $0x54] sm:$0xf]
    %v988 = vld [vmem:[#allocation6 + $0x58] sm:$0xf]
    %v989 = vld [vmem:[#allocation6 + $0x5c] sm:$0xf]
    %v990 = vld [vmem:[#allocation6 + $0x60] sm:$0xf]
    %v991 = vld [vmem:[#allocation6 + $0x64] sm:$0xf]
    %v992 = vld [vmem:[#allocation6 + $0x68] sm:$0xf]
    %v993 = vld [vmem:[#allocation6 + $0x6c] sm:$0xf]
    %v994 = vld [vmem:[#allocation6 + $0x70] sm:$0xf]
    %v995 = vld [vmem:[#allocation6 + $0x74] sm:$0xf]
    %v996 = vld [vmem:[#allocation6 + $0x78] sm:$0xf]
    %v997 = vld [vmem:[#allocation6 + $0x7c] sm:$0xf]
    %v998 = vld [vmem:[#allocation6 + $0x80] sm:$0xf]
    %v999 = vld [vmem:[#allocation6 + $0x84] sm:$0xf]
    %v1000 = vld [vmem:[#allocation6 + $0x88] sm:$0xf]
    %v1001 = vld [vmem:[#allocation6 + $0x8c] sm:$0xf]
    %v1002 = vld [vmem:[#allocation6 + $0x90] sm:$0xf]
    %v1003 = vld [vmem:[#allocation6 + $0x94] sm:$0xf]
    %v1004 = vld [vmem:[#allocation6 + $0x98] sm:$0xf]
    %v1005 = vld [vmem:[#allocation6 + $0x9c] sm:$0xf]
    %v1006 = vld [vmem:[#allocation6 + $0xa0] sm:$0xf]
    %v1007 = vld [vmem:[#allocation6 + $0xa4] sm:$0xf]
    %v1008 = vld [vmem:[#allocation6 + $0xa8] sm:$0xf]
    %v1009 = vld [vmem:[#allocation6 + $0xac] sm:$0xf]
    %v1010 = vld [vmem:[#allocation6 + $0xb0] sm:$0xf]
    %v1011 = vld [vmem:[#allocation6 + $0xb4] sm:$0xf]
    %v1012 = vld [vmem:[#allocation6 + $0xb8] sm:$0xf]
    %v1013 = vld [vmem:[#allocation6 + $0xbc] sm:$0xf]
    %v1014 = vld [vmem:[#allocation6 + $0xc0] sm:$0xf]
    %v1015 = vld [vmem:[#allocation6 + $0xc4] sm:$0xf]
    %v1016 = vld [vmem:[#allocation6 + $0xc8] sm:$0xf]
    %v1017 = vld [vmem:[#allocation6 + $0xcc] sm:$0xf]
    %v1018 = vld [vmem:[#allocation6 + $0xd0] sm:$0xf]
    %v1019 = vld [vmem:[#allocation6 + $0xd4] sm:$0xf]
    %v1020 = vld [vmem:[#allocation6 + $0xd8] sm:$0xf]
    %v1021 = vld [vmem:[#allocation6 + $0xdc] sm:$0xf]
    %v1022 = vld [vmem:[#allocation6 + $0xe0] sm:$0xf]
    %v1023 = vld [vmem:[#allocation6 + $0xe4] sm:$0xf]
    %v1024 = vld [vmem:[#allocation6 + $0xe8] sm:$0xf]
    %v1025 = vld [vmem:[#allocation6 + $0xec] sm:$0xf]
    %v1026 = vld [vmem:[#allocation6 + $0xf0] sm:$0xf]
    %v1027 = vld [vmem:[#allocation6 + $0xf4] sm:$0xf]
    %v1028 = vld [vmem:[#allocation6 + $0xf8] sm:$0xf]
    %v1029 = vld [vmem:[#allocation6 + $0xfc] sm:$0xf]
    %v1030 = vld [vmem:[#allocation6 + $0x100] sm:$0xf]
    %v1031 = vld [vmem:[#allocation6 + $0x104] sm:$0xf]
    %v1032 = vld [vmem:[#allocation6 + $0x108] sm:$0xf]
    %v1033 = vld [vmem:[#allocation6 + $0x10c] sm:$0xf]
    %v1034 = vld [vmem:[#allocation6 + $0x110] sm:$0xf]
    %v1035 = vld [vmem:[#allocation6 + $0x114] sm:$0xf]
    %v1036 = vld [vmem:[#allocation6 + $0x118] sm:$0xf]
    %v1037 = vld [vmem:[#allocation6 + $0x11c] sm:$0xf]
    %v1038 = vld [vmem:[#allocation6 + $0x120] sm:$0xf]
    %v1039 = vld [vmem:[#allocation6 + $0x124] sm:$0xf]
    %v1040 = vld [vmem:[#allocation6 + $0x128] sm:$0xf]
    %v1041 = vld [vmem:[#allocation6 + $0x12c] sm:$0xf]
    %v1042 = vld [vmem:[#allocation6 + $0x130] sm:$0xf]
    %v1043 = vld [vmem:[#allocation6 + $0x134] sm:$0xf]
    %v1044 = vld [vmem:[#allocation6 + $0x138] sm:$0xf]
    %v1045 = vld [vmem:[#allocation6 + $0x13c] sm:$0xf]
    %v1046 = vld [vmem:[#allocation6 + $0x140] sm:$0xf]
    %v1047 = vld [vmem:[#allocation6 + $0x144] sm:$0xf]
    %v1048 = vld [vmem:[#allocation6 + $0x148] sm:$0xf]
    %v1049 = vld [vmem:[#allocation6 + $0x14c] sm:$0xf]
    %v1050 = vld [vmem:[#allocation6 + $0x150] sm:$0xf]
    %v1051 = vld [vmem:[#allocation6 + $0x154] sm:$0xf]
    %v1052 = vld [vmem:[#allocation6 + $0x158] sm:$0xf]
    %v1053 = vld [vmem:[#allocation6 + $0x15c] sm:$0xf]
    %v1054 = vld [vmem:[#allocation6 + $0x160] sm:$0xf]
    %v1055 = vld [vmem:[#allocation6 + $0x164] sm:$0xf]
    %v1056 = vld [vmem:[#allocation6 + $0x168] sm:$0xf]
    %v1057 = vld [vmem:[#allocation6 + $0x16c] sm:$0xf]
    %v1058 = vld [vmem:[#allocation6 + $0x170] sm:$0xf]
    %v1059 = vld [vmem:[#allocation6 + $0x174] sm:$0xf]
    %v1060 = vld [vmem:[#allocation6 + $0x178] sm:$0xf]
    %v1061 = vld [vmem:[#allocation6 + $0x17c] sm:$0xf]
    %v1062 = vld [vmem:[#allocation6 + $0x180] sm:$0xf]
    %v1063 = vld [vmem:[#allocation6 + $0x184] sm:$0xf]
    %v1064 = vld [vmem:[#allocation6 + $0x188] sm:$0xf]
    %v1065 = vld [vmem:[#allocation6 + $0x18c] sm:$0xf]
    %v1066 = vld [vmem:[#allocation6 + $0x190] sm:$0xf]
    %v1067 = vld [vmem:[#allocation6 + $0x194] sm:$0xf]
    %v1068 = vld [vmem:[#allocation6 + $0x198] sm:$0xf]
    %v1069 = vld [vmem:[#allocation6 + $0x19c] sm:$0xf]
    %v1070 = vld [vmem:[#allocation6 + $0x1a0] sm:$0xf]
    %v1071 = vld [vmem:[#allocation6 + $0x1a4] sm:$0xf]
    %v1072 = vld [vmem:[#allocation6 + $0x1a8] sm:$0xf]
    %v1073 = vld [vmem:[#allocation6 + $0x1ac] sm:$0xf]
    %v1074 = vld [vmem:[#allocation6 + $0x1b0] sm:$0xf]
    %v1075 = vld [vmem:[#allocation6 + $0x1b4] sm:$0xf]
    %v1076 = vld [vmem:[#allocation6 + $0x1b8] sm:$0xf]
    %v1077 = vld [vmem:[#allocation6 + $0x1bc] sm:$0xf]
    %v1078 = vld [vmem:[#allocation6 + $0x1c0] sm:$0xf]
    %v1079 = vld [vmem:[#allocation6 + $0x1c4] sm:$0xf]
    %v1080 = vld [vmem:[#allocation6 + $0x1c8] sm:$0xf]
    %v1081 = vld [vmem:[#allocation6 + $0x1cc] sm:$0xf]
    %v1082 = vld [vmem:[#allocation6 + $0x1d0] sm:$0xf]
    %v1083 = vld [vmem:[#allocation6 + $0x1d4] sm:$0xf]
    %v1084 = vld [vmem:[#allocation6 + $0x1d8] sm:$0xf]
    %v1085 = vld [vmem:[#allocation6 + $0x1dc] sm:$0xf]
    %v1086 = vld [vmem:[#allocation6 + $0x1e0] sm:$0xf]
    %v1087 = vld [vmem:[#allocation6 + $0x1e4] sm:$0xf]
    %v1088 = vld [vmem:[#allocation6 + $0x1e8] sm:$0xf]
    %v1089 = vld [vmem:[#allocation6 + $0x1ec] sm:$0xf]
    %v1090 = vld [vmem:[#allocation6 + $0x1f0] sm:$0xf]
    %v1091 = vld [vmem:[#allocation6 + $0x1f4] sm:$0xf]
    %v1092 = vld [vmem:[#allocation6 + $0x1f8] sm:$0xf]
    %v1093 = vld [vmem:[#allocation6 + $0x1fc] sm:$0xf]
    %v1094 = vld [vmem:[%s5] sm:$0x1]
    %1096 = vset.pattern.permute.xlu0 0
    %1097 = vperm.xlu0 %1096, %v85
    %v1098 = vpop.permute.xlu0 %1097
    %1101 = vset.pattern.permute.xlu0 0
    %1102 = vperm.xlu0 %1101, %v86
    %v1103 = vpop.permute.xlu0 %1102
    %1106 = vset.pattern.permute.xlu0 0
    %1107 = vperm.xlu0 %1106, %v87
    %v1108 = vpop.permute.xlu0 %1107
    %1111 = vset.pattern.permute.xlu0 0
    %1112 = vperm.xlu0 %1111, %v88
    %v1113 = vpop.permute.xlu0 %1112
    %1116 = vset.pattern.permute.xlu0 0
    %1117 = vperm.xlu0 %1116, %v89
    %v1118 = vpop.permute.xlu0 %1117
    %1121 = vset.pattern.permute.xlu0 0
    %1122 = vperm.xlu0 %1121, %v90
    %v1123 = vpop.permute.xlu0 %1122
    %1126 = vset.pattern.permute.xlu0 0
    %1127 = vperm.xlu0 %1126, %v91
    %v1128 = vpop.permute.xlu0 %1127
    %1131 = vset.pattern.permute.xlu0 0
    %1132 = vperm.xlu0 %1131, %v92
    %v1133 = vpop.permute.xlu0 %1132
    %1136 = vset.pattern.permute.xlu0 0
    %1137 = vperm.xlu0 %1136, %v93
    %v1138 = vpop.permute.xlu0 %1137
    %1141 = vset.pattern.permute.xlu0 0
    %1142 = vperm.xlu0 %1141, %v94
    %v1143 = vpop.permute.xlu0 %1142
    %1146 = vset.pattern.permute.xlu0 0
    %1147 = vperm.xlu0 %1146, %v95
    %v1148 = vpop.permute.xlu0 %1147
    %1151 = vset.pattern.permute.xlu0 0
    %1152 = vperm.xlu0 %1151, %v96
    %v1153 = vpop.permute.xlu0 %1152
    %1156 = vset.pattern.permute.xlu0 0
    %1157 = vperm.xlu0 %1156, %v97
    %v1158 = vpop.permute.xlu0 %1157
    %1161 = vset.pattern.permute.xlu0 0
    %1162 = vperm.xlu0 %1161, %v98
    %v1163 = vpop.permute.xlu0 %1162
    %1166 = vset.pattern.permute.xlu0 0
    %1167 = vperm.xlu0 %1166, %v99
    %v1168 = vpop.permute.xlu0 %1167
    %1171 = vset.pattern.permute.xlu0 0
    %1172 = vperm.xlu0 %1171, %v100
    %v1173 = vpop.permute.xlu0 %1172
    %v1176 = vlaneseq
    %v1177 = vshrl.u32 %v1176, 7
    %v1178 = vsub.s32 0, %v1177
    %v1179 = vrot.slane %v1094, %v1178
    %v1181 = vmul.f32 %v1098, %v1179
    %v1182 = vmul.f32 %v1103, %v1179
    %v1183 = vmul.f32 %v1108, %v1179
    %v1184 = vmul.f32 %v1113, %v1179
    %v1185 = vmul.f32 %v1118, %v1179
    %v1186 = vmul.f32 %v1123, %v1179
    %v1187 = vmul.f32 %v1128, %v1179
    %v1188 = vmul.f32 %v1133, %v1179
    %v1189 = vmul.f32 %v1138, %v1179
    %v1190 = vmul.f32 %v1143, %v1179
    %v1191 = vmul.f32 %v1148, %v1179
    %v1192 = vmul.f32 %v1153, %v1179
    %v1193 = vmul.f32 %v1158, %v1179
    %v1194 = vmul.f32 %v1163, %v1179
    %v1195 = vmul.f32 %v1168, %v1179
    %v1196 = vmul.f32 %v1173, %v1179
    %v1325 = vunpack.c.l.b16 %v966
    %v1326 = vunpack.c.l.b16 %v967
    %v1327 = vunpack.c.l.b16 %v968
    %v1328 = vunpack.c.l.b16 %v969
    %v1329 = vunpack.c.l.b16 %v970
    %v1330 = vunpack.c.l.b16 %v971
    %v1331 = vunpack.c.l.b16 %v972
    %v1332 = vunpack.c.l.b16 %v973
    %v1333 = vunpack.c.l.b16 %v974
    %v1334 = vunpack.c.l.b16 %v975
    %v1335 = vunpack.c.l.b16 %v976
    %v1336 = vunpack.c.l.b16 %v977
    %v1337 = vunpack.c.l.b16 %v978
    %v1338 = vunpack.c.l.b16 %v979
    %v1339 = vunpack.c.l.b16 %v980
    %v1340 = vunpack.c.l.b16 %v981
    %v1341 = vunpack.c.l.b16 %v982
    %v1342 = vunpack.c.l.b16 %v983
    %v1343 = vunpack.c.l.b16 %v984
    %v1344 = vunpack.c.l.b16 %v985
    %v1345 = vunpack.c.l.b16 %v986
    %v1346 = vunpack.c.l.b16 %v987
    %v1347 = vunpack.c.l.b16 %v988
    %v1348 = vunpack.c.l.b16 %v989
    %v1349 = vunpack.c.l.b16 %v990
    %v1350 = vunpack.c.l.b16 %v991
    %v1351 = vunpack.c.l.b16 %v992
    %v1352 = vunpack.c.l.b16 %v993
    %v1353 = vunpack.c.l.b16 %v994
    %v1354 = vunpack.c.l.b16 %v995
    %v1355 = vunpack.c.l.b16 %v996
    %v1356 = vunpack.c.l.b16 %v997
    %v1357 = vunpack.c.l.b16 %v998
    %v1358 = vunpack.c.l.b16 %v999
    %v1359 = vunpack.c.l.b16 %v1000
    %v1360 = vunpack.c.l.b16 %v1001
    %v1361 = vunpack.c.l.b16 %v1002
    %v1362 = vunpack.c.l.b16 %v1003
    %v1363 = vunpack.c.l.b16 %v1004
    %v1364 = vunpack.c.l.b16 %v1005
    %v1365 = vunpack.c.l.b16 %v1006
    %v1366 = vunpack.c.l.b16 %v1007
    %v1367 = vunpack.c.l.b16 %v1008
    %v1368 = vunpack.c.l.b16 %v1009
    %v1369 = vunpack.c.l.b16 %v1010
    %v1370 = vunpack.c.l.b16 %v1011
    %v1371 = vunpack.c.l.b16 %v1012
    %v1372 = vunpack.c.l.b16 %v1013
    %v1373 = vunpack.c.l.b16 %v1014
    %v1374 = vunpack.c.l.b16 %v1015
    %v1375 = vunpack.c.l.b16 %v1016
    %v1376 = vunpack.c.l.b16 %v1017
    %v1377 = vunpack.c.l.b16 %v1018
    %v1378 = vunpack.c.l.b16 %v1019
    %v1379 = vunpack.c.l.b16 %v1020
    %v1380 = vunpack.c.l.b16 %v1021
    %v1381 = vunpack.c.l.b16 %v1022
    %v1382 = vunpack.c.l.b16 %v1023
    %v1383 = vunpack.c.l.b16 %v1024
    %v1384 = vunpack.c.l.b16 %v1025
    %v1385 = vunpack.c.l.b16 %v1026
    %v1386 = vunpack.c.l.b16 %v1027
    %v1387 = vunpack.c.l.b16 %v1028
    %v1388 = vunpack.c.l.b16 %v1029
    %v1389 = vunpack.c.l.b16 %v1030
    %v1390 = vunpack.c.l.b16 %v1031
    %v1391 = vunpack.c.l.b16 %v1032
    %v1392 = vunpack.c.l.b16 %v1033
    %v1393 = vunpack.c.l.b16 %v1034
    %v1394 = vunpack.c.l.b16 %v1035
    %v1395 = vunpack.c.l.b16 %v1036
    %v1396 = vunpack.c.l.b16 %v1037
    %v1397 = vunpack.c.l.b16 %v1038
    %v1398 = vunpack.c.l.b16 %v1039
    %v1399 = vunpack.c.l.b16 %v1040
    %v1400 = vunpack.c.l.b16 %v1041
    %v1401 = vunpack.c.l.b16 %v1042
    %v1402 = vunpack.c.l.b16 %v1043
    %v1403 = vunpack.c.l.b16 %v1044
    %v1404 = vunpack.c.l.b16 %v1045
    %v1405 = vunpack.c.l.b16 %v1046
    %v1406 = vunpack.c.l.b16 %v1047
    %v1407 = vunpack.c.l.b16 %v1048
    %v1408 = vunpack.c.l.b16 %v1049
    %v1409 = vunpack.c.l.b16 %v1050
    %v1410 = vunpack.c.l.b16 %v1051
    %v1411 = vunpack.c.l.b16 %v1052
    %v1412 = vunpack.c.l.b16 %v1053
    %v1413 = vunpack.c.l.b16 %v1054
    %v1414 = vunpack.c.l.b16 %v1055
    %v1415 = vunpack.c.l.b16 %v1056
    %v1416 = vunpack.c.l.b16 %v1057
    %v1417 = vunpack.c.l.b16 %v1058
    %v1418 = vunpack.c.l.b16 %v1059
    %v1419 = vunpack.c.l.b16 %v1060
    %v1420 = vunpack.c.l.b16 %v1061
    %v1421 = vunpack.c.l.b16 %v1062
    %v1422 = vunpack.c.l.b16 %v1063
    %v1423 = vunpack.c.l.b16 %v1064
    %v1424 = vunpack.c.l.b16 %v1065
    %v1425 = vunpack.c.l.b16 %v1066
    %v1426 = vunpack.c.l.b16 %v1067
    %v1427 = vunpack.c.l.b16 %v1068
    %v1428 = vunpack.c.l.b16 %v1069
    %v1429 = vunpack.c.l.b16 %v1070
    %v1430 = vunpack.c.l.b16 %v1071
    %v1431 = vunpack.c.l.b16 %v1072
    %v1432 = vunpack.c.l.b16 %v1073
    %v1433 = vunpack.c.l.b16 %v1074
    %v1434 = vunpack.c.l.b16 %v1075
    %v1435 = vunpack.c.l.b16 %v1076
    %v1436 = vunpack.c.l.b16 %v1077
    %v1437 = vunpack.c.l.b16 %v1078
    %v1438 = vunpack.c.l.b16 %v1079
    %v1439 = vunpack.c.l.b16 %v1080
    %v1440 = vunpack.c.l.b16 %v1081
    %v1441 = vunpack.c.l.b16 %v1082
    %v1442 = vunpack.c.l.b16 %v1083
    %v1443 = vunpack.c.l.b16 %v1084
    %v1444 = vunpack.c.l.b16 %v1085
    %v1445 = vunpack.c.l.b16 %v1086
    %v1446 = vunpack.c.l.b16 %v1087
    %v1447 = vunpack.c.l.b16 %v1088
    %v1448 = vunpack.c.l.b16 %v1089
    %v1449 = vunpack.c.l.b16 %v1090
    %v1450 = vunpack.c.l.b16 %v1091
    %v1451 = vunpack.c.l.b16 %v1092
    %v1452 = vunpack.c.l.b16 %v1093
    %v1453 = vpack.c.b16 %v1326, %v1325
    %v1454 = vpack.c.b16 %v1328, %v1327
    %v1455 = vpack.c.b16 %v1330, %v1329
    %v1456 = vpack.c.b16 %v1332, %v1331
    %v1457 = vpack.c.b16 %v1334, %v1333
    %v1458 = vpack.c.b16 %v1336, %v1335
    %v1459 = vpack.c.b16 %v1338, %v1337
    %v1460 = vpack.c.b16 %v1340, %v1339
    %v1461 = vpack.c.b16 %v1342, %v1341
    %v1462 = vpack.c.b16 %v1344, %v1343
    %v1463 = vpack.c.b16 %v1346, %v1345
    %v1464 = vpack.c.b16 %v1348, %v1347
    %v1465 = vpack.c.b16 %v1350, %v1349
    %v1466 = vpack.c.b16 %v1352, %v1351
    %v1467 = vpack.c.b16 %v1354, %v1353
    %v1468 = vpack.c.b16 %v1356, %v1355
    %v1469 = vpack.c.b16 %v1358, %v1357
    %v1470 = vpack.c.b16 %v1360, %v1359
    %v1471 = vpack.c.b16 %v1362, %v1361
    %v1472 = vpack.c.b16 %v1364, %v1363
    %v1473 = vpack.c.b16 %v1366, %v1365
    %v1474 = vpack.c.b16 %v1368, %v1367
    %v1475 = vpack.c.b16 %v1370, %v1369
    %v1476 = vpack.c.b16 %v1372, %v1371
    %v1477 = vpack.c.b16 %v1374, %v1373
    %v1478 = vpack.c.b16 %v1376, %v1375
    %v1479 = vpack.c.b16 %v1378, %v1377
    %v1480 = vpack.c.b16 %v1380, %v1379
    %v1481 = vpack.c.b16 %v1382, %v1381
    %v1482 = vpack.c.b16 %v1384, %v1383
    %v1483 = vpack.c.b16 %v1386, %v1385
    %v1484 = vpack.c.b16 %v1388, %v1387
    %v1485 = vpack.c.b16 %v1390, %v1389
    %v1486 = vpack.c.b16 %v1392, %v1391
    %v1487 = vpack.c.b16 %v1394, %v1393
    %v1488 = vpack.c.b16 %v1396, %v1395
    %v1489 = vpack.c.b16 %v1398, %v1397
    %v1490 = vpack.c.b16 %v1400, %v1399
    %v1491 = vpack.c.b16 %v1402, %v1401
    %v1492 = vpack.c.b16 %v1404, %v1403
    %v1493 = vpack.c.b16 %v1406, %v1405
    %v1494 = vpack.c.b16 %v1408, %v1407
    %v1495 = vpack.c.b16 %v1410, %v1409
    %v1496 = vpack.c.b16 %v1412, %v1411
    %v1497 = vpack.c.b16 %v1414, %v1413
    %v1498 = vpack.c.b16 %v1416, %v1415
    %v1499 = vpack.c.b16 %v1418, %v1417
    %v1500 = vpack.c.b16 %v1420, %v1419
    %v1501 = vpack.c.b16 %v1422, %v1421
    %v1502 = vpack.c.b16 %v1424, %v1423
    %v1503 = vpack.c.b16 %v1426, %v1425
    %v1504 = vpack.c.b16 %v1428, %v1427
    %v1505 = vpack.c.b16 %v1430, %v1429
    %v1506 = vpack.c.b16 %v1432, %v1431
    %v1507 = vpack.c.b16 %v1434, %v1433
    %v1508 = vpack.c.b16 %v1436, %v1435
    %v1509 = vpack.c.b16 %v1438, %v1437
    %v1510 = vpack.c.b16 %v1440, %v1439
    %v1511 = vpack.c.b16 %v1442, %v1441
    %v1512 = vpack.c.b16 %v1444, %v1443
    %v1513 = vpack.c.b16 %v1446, %v1445
    %v1514 = vpack.c.b16 %v1448, %v1447
    %v1515 = vpack.c.b16 %v1450, %v1449
    %v1516 = vpack.c.b16 %v1452, %v1451
    %1581 = vmatprep.subr.bf16.mxu0 0
    %1582 = vmatpush1.bf16.msra.mxu0 %v1453
    %1583 = vmatprep.subr.bf16.mxu0 0
    %1584 = vmatpush1.bf16.msra.mxu0 %v1454
    %1585 = vmatprep.subr.bf16.mxu0 0
    %1586 = vmatpush1.bf16.msra.mxu0 %v1455
    %1587 = vmatprep.subr.bf16.mxu0 0
    %1588 = vmatpush1.bf16.msra.mxu0 %v1456
    %1589 = vmatprep.subr.bf16.mxu0 0
    %1590 = vmatpush1.bf16.msra.mxu0 %v1457
    %1591 = vmatprep.subr.bf16.mxu0 0
    %1592 = vmatpush1.bf16.msra.mxu0 %v1458
    %1593 = vmatprep.subr.bf16.mxu0 0
    %1594 = vmatpush1.bf16.msra.mxu0 %v1459
    %1595 = vmatprep.subr.bf16.mxu0 0
    %1596 = vmatpush1.bf16.msra.mxu0 %v1460
    %1597 = vmatprep.subr.bf16.mxu0 0
    %1598 = vmatpush1.bf16.msra.mxu0 %v1461
    %1599 = vmatprep.subr.bf16.mxu0 0
    %1600 = vmatpush1.bf16.msra.mxu0 %v1462
    %1601 = vmatprep.subr.bf16.mxu0 0
    %1602 = vmatpush1.bf16.msra.mxu0 %v1463
    %1603 = vmatprep.subr.bf16.mxu0 0
    %1604 = vmatpush1.bf16.msra.mxu0 %v1464
    %1605 = vmatprep.subr.bf16.mxu0 0
    %1606 = vmatpush1.bf16.msra.mxu0 %v1465
    %1607 = vmatprep.subr.bf16.mxu0 0
    %1608 = vmatpush1.bf16.msra.mxu0 %v1466
    %1609 = vmatprep.subr.bf16.mxu0 0
    %1610 = vmatpush1.bf16.msra.mxu0 %v1467
    %1611 = vmatprep.subr.bf16.mxu0 0
    %1612 = vmatpush1.bf16.msra.mxu0 %v1468
    %1613 = vmatprep.mubr.bf16.mxu0 %v903
    %1614 = vmatmul.mubr.bf16.gmra.mrb[0].mxu0 %v902
    %v1615 = vpop.f32.mrb[0].mxu0
    %v1616 = vadd.f32 %v1181, %v1615
    %v1617 = vpop.f32.mrb[0].mxu0
    %v1618 = vpop.f32.mrb[0].mxu0
    %v1619 = vadd.f32 %v1182, %v1618
    %v1620 = vpop.f32.mrb[0].mxu0
    %1621 = vmatprep.mubr.bf16.mxu0 %v911
    %1622 = vmatmul.mubr.bf16.gmra.mrb[0].mxu0 %v910
    %v1623 = vpop.f32.mrb[0].mxu0
    %v1624 = vadd.f32 %v1183, %v1623
    %v1625 = vpop.f32.mrb[0].mxu0
    %v1626 = vpop.f32.mrb[0].mxu0
    %v1627 = vadd.f32 %v1184, %v1626
    %v1628 = vpop.f32.mrb[0].mxu0
    %1629 = vmatprep.mubr.bf16.mxu0 %v919
    %1630 = vmatmul.mubr.bf16.gmra.mrb[0].mxu0 %v918
    %v1631 = vpop.f32.mrb[0].mxu0
    %v1632 = vadd.f32 %v1185, %v1631
    %v1633 = vpop.f32.mrb[0].mxu0
    %v1634 = vpop.f32.mrb[0].mxu0
    %v1635 = vadd.f32 %v1186, %v1634
    %v1636 = vpop.f32.mrb[0].mxu0
    %1637 = vmatprep.mubr.bf16.mxu0 %v927
    %1638 = vmatmul.mubr.bf16.gmra.mrb[0].mxu0 %v926
    %v1639 = vpop.f32.mrb[0].mxu0
    %v1640 = vadd.f32 %v1187, %v1639
    %v1641 = vpop.f32.mrb[0].mxu0
    %v1642 = vpop.f32.mrb[0].mxu0
    %v1643 = vadd.f32 %v1188, %v1642
    %v1644 = vpop.f32.mrb[0].mxu0
    %1645 = vmatprep.mubr.bf16.mxu0 %v935
    %1646 = vmatmul.mubr.bf16.gmra.mrb[0].mxu0 %v934
    %v1647 = vpop.f32.mrb[0].mxu0
    %v1648 = vadd.f32 %v1189, %v1647
    %v1649 = vpop.f32.mrb[0].mxu0
    %v1650 = vpop.f32.mrb[0].mxu0
    %v1651 = vadd.f32 %v1190, %v1650
    %v1652 = vpop.f32.mrb[0].mxu0
    %1653 = vmatprep.mubr.bf16.mxu0 %v943
    %1654 = vmatmul.mubr.bf16.gmra.mrb[0].mxu0 %v942
    %v1655 = vpop.f32.mrb[0].mxu0
    %v1656 = vadd.f32 %v1191, %v1655
    %v1657 = vpop.f32.mrb[0].mxu0
    %v1658 = vpop.f32.mrb[0].mxu0
    %v1659 = vadd.f32 %v1192, %v1658
    %v1660 = vpop.f32.mrb[0].mxu0
    %1661 = vmatprep.mubr.bf16.mxu0 %v951
    %1662 = vmatmul.mubr.bf16.gmra.mrb[0].mxu0 %v950
    %v1663 = vpop.f32.mrb[0].mxu0
    %v1664 = vadd.f32 %v1193, %v1663
    %v1665 = vpop.f32.mrb[0].mxu0
    %v1666 = vpop.f32.mrb[0].mxu0
    %v1667 = vadd.f32 %v1194, %v1666
    %v1668 = vpop.f32.mrb[0].mxu0
    %1669 = vmatprep.mubr.bf16.mxu0 %v959
    %1670 = vmatmul.mubr.bf16.gmra.mrb[0].mxu0 %v958
    %v1671 = vpop.f32.mrb[0].mxu0
    %v1672 = vadd.f32 %v1195, %v1671
    %v1673 = vpop.f32.mrb[0].mxu0
    %v1674 = vpop.f32.mrb[0].mxu0
    %v1675 = vadd.f32 %v1196, %v1674
    %v1676 = vpop.f32.mrb[0].mxu0
    %1677 = vdwg.mxu0
    %1678 = vmatprep.subr.bf16.mxu0 0
    %1679 = vmatpush1.bf16.msra.mxu0 %v1469
    %1680 = vmatprep.subr.bf16.mxu0 0
    %1681 = vmatpush1.bf16.msra.mxu0 %v1470
    %1682 = vmatprep.subr.bf16.mxu0 0
    %1683 = vmatpush1.bf16.msra.mxu0 %v1471
    %1684 = vmatprep.subr.bf16.mxu0 0
    %1685 = vmatpush1.bf16.msra.mxu0 %v1472
    %1686 = vmatprep.subr.bf16.mxu0 0
    %1687 = vmatpush1.bf16.msra.mxu0 %v1473
    %1688 = vmatprep.subr.bf16.mxu0 0
    %1689 = vmatpush1.bf16.msra.mxu0 %v1474
    %1690 = vmatprep.subr.bf16.mxu0 0
    %1691 = vmatpush1.bf16.msra.mxu0 %v1475
    %1692 = vmatprep.subr.bf16.mxu0 0
    %1693 = vmatpush1.bf16.msra.mxu0 %v1476
    %1694 = vmatprep.subr.bf16.mxu0 0
    %1695 = vmatpush1.bf16.msra.mxu0 %v1477
    %1696 = vmatprep.subr.bf16.mxu0 0
    %1697 = vmatpush1.bf16.msra.mxu0 %v1478
    %1698 = vmatprep.subr.bf16.mxu0 0
    %1699 = vmatpush1.bf16.msra.mxu0 %v1479
    %1700 = vmatprep.subr.bf16.mxu0 0
    %1701 = vmatpush1.bf16.msra.mxu0 %v1480
    %1702 = vmatprep.subr.bf16.mxu0 0
    %1703 = vmatpush1.bf16.msra.mxu0 %v1481
    %1704 = vmatprep.subr.bf16.mxu0 0
    %1705 = vmatpush1.bf16.msra.mxu0 %v1482
    %1706 = vmatprep.subr.bf16.mxu0 0
    %1707 = vmatpush1.bf16.msra.mxu0 %v1483
    %1708 = vmatprep.subr.bf16.mxu0 0
    %1709 = vmatpush1.bf16.msra.mxu0 %v1484
    %1710 = vmatprep.mubr.bf16.mxu0 %v905
    %1711 = vmatmul.mubr.bf16.gmra.mrb[0].mxu0 %v904
    %v1712 = vpop.f32.mrb[0].mxu0
    %v1713 = vadd.f32 %v1616, %v1712
    %v1714 = vpop.f32.mrb[0].mxu0
    %v1715 = vpop.f32.mrb[0].mxu0
    %v1716 = vadd.f32 %v1619, %v1715
    %v1717 = vpop.f32.mrb[0].mxu0
    %1718 = vmatprep.mubr.bf16.mxu0 %v913
    %1719 = vmatmul.mubr.bf16.gmra.mrb[0].mxu0 %v912
    %v1720 = vpop.f32.mrb[0].mxu0
    %v1721 = vadd.f32 %v1624, %v1720
    %v1722 = vpop.f32.mrb[0].mxu0
    %v1723 = vpop.f32.mrb[0].mxu0
    %v1724 = vadd.f32 %v1627, %v1723
    %v1725 = vpop.f32.mrb[0].mxu0
    %1726 = vmatprep.mubr.bf16.mxu0 %v921
    %1727 = vmatmul.mubr.bf16.gmra.mrb[0].mxu0 %v920
    %v1728 = vpop.f32.mrb[0].mxu0
    %v1729 = vadd.f32 %v1632, %v1728
    %v1730 = vpop.f32.mrb[0].mxu0
    %v1731 = vpop.f32.mrb[0].mxu0
    %v1732 = vadd.f32 %v1635, %v1731
    %v1733 = vpop.f32.mrb[0].mxu0
    %1734 = vmatprep.mubr.bf16.mxu0 %v929
    %1735 = vmatmul.mubr.bf16.gmra.mrb[0].mxu0 %v928
    %v1736 = vpop.f32.mrb[0].mxu0
    %v1737 = vadd.f32 %v1640, %v1736
    %v1738 = vpop.f32.mrb[0].mxu0
    %v1739 = vpop.f32.mrb[0].mxu0
    %v1740 = vadd.f32 %v1643, %v1739
    %v1741 = vpop.f32.mrb[0].mxu0
    %1742 = vmatprep.mubr.bf16.mxu0 %v937
    %1743 = vmatmul.mubr.bf16.gmra.mrb[0].mxu0 %v936
    %v1744 = vpop.f32.mrb[0].mxu0
    %v1745 = vadd.f32 %v1648, %v1744
    %v1746 = vpop.f32.mrb[0].mxu0
    %v1747 = vpop.f32.mrb[0].mxu0
    %v1748 = vadd.f32 %v1651, %v1747
    %v1749 = vpop.f32.mrb[0].mxu0
    %1750 = vmatprep.mubr.bf16.mxu0 %v945
    %1751 = vmatmul.mubr.bf16.gmra.mrb[0].mxu0 %v944
    %v1752 = vpop.f32.mrb[0].mxu0
    %v1753 = vadd.f32 %v1656, %v1752
    %v1754 = vpop.f32.mrb[0].mxu0
    %v1755 = vpop.f32.mrb[0].mxu0
    %v1756 = vadd.f32 %v1659, %v1755
    %v1757 = vpop.f32.mrb[0].mxu0
    %1758 = vmatprep.mubr.bf16.mxu0 %v953
    %1759 = vmatmul.mubr.bf16.gmra.mrb[0].mxu0 %v952
    %v1760 = vpop.f32.mrb[0].mxu0
    %v1761 = vadd.f32 %v1664, %v1760
    %v1762 = vpop.f32.mrb[0].mxu0
    %v1763 = vpop.f32.mrb[0].mxu0
    %v1764 = vadd.f32 %v1667, %v1763
    %v1765 = vpop.f32.mrb[0].mxu0
    %1766 = vmatprep.mubr.bf16.mxu0 %v961
    %1767 = vmatmul.mubr.bf16.gmra.mrb[0].mxu0 %v960
    %v1768 = vpop.f32.mrb[0].mxu0
    %v1769 = vadd.f32 %v1672, %v1768
    %v1770 = vpop.f32.mrb[0].mxu0
    %v1771 = vpop.f32.mrb[0].mxu0
    %v1772 = vadd.f32 %v1675, %v1771
    %v1773 = vpop.f32.mrb[0].mxu0
    %1774 = vdwg.mxu0
    %1775 = vmatprep.subr.bf16.mxu0 0
    %1776 = vmatpush1.bf16.msra.mxu0 %v1485
    %1777 = vmatprep.subr.bf16.mxu0 0
    %1778 = vmatpush1.bf16.msra.mxu0 %v1486
    %1779 = vmatprep.subr.bf16.mxu0 0
    %1780 = vmatpush1.bf16.msra.mxu0 %v1487
    %1781 = vmatprep.subr.bf16.mxu0 0
    %1782 = vmatpush1.bf16.msra.mxu0 %v1488
    %1783 = vmatprep.subr.bf16.mxu0 0
    %1784 = vmatpush1.bf16.msra.mxu0 %v1489
    %1785 = vmatprep.subr.bf16.mxu0 0
    %1786 = vmatpush1.bf16.msra.mxu0 %v1490
    %1787 = vmatprep.subr.bf16.mxu0 0
    %1788 = vmatpush1.bf16.msra.mxu0 %v1491
    %1789 = vmatprep.subr.bf16.mxu0 0
    %1790 = vmatpush1.bf16.msra.mxu0 %v1492
    %1791 = vmatprep.subr.bf16.mxu0 0
    %1792 = vmatpush1.bf16.msra.mxu0 %v1493
    %1793 = vmatprep.subr.bf16.mxu0 0
    %1794 = vmatpush1.bf16.msra.mxu0 %v1494
    %1795 = vmatprep.subr.bf16.mxu0 0
    %1796 = vmatpush1.bf16.msra.mxu0 %v1495
    %1797 = vmatprep.subr.bf16.mxu0 0
    %1798 = vmatpush1.bf16.msra.mxu0 %v1496
    %1799 = vmatprep.subr.bf16.mxu0 0
    %1800 = vmatpush1.bf16.msra.mxu0 %v1497
    %1801 = vmatprep.subr.bf16.mxu0 0
    %1802 = vmatpush1.bf16.msra.mxu0 %v1498
    %1803 = vmatprep.subr.bf16.mxu0 0
    %1804 = vmatpush1.bf16.msra.mxu0 %v1499
    %1805 = vmatprep.subr.bf16.mxu0 0
    %1806 = vmatpush1.bf16.msra.mxu0 %v1500
    %1807 = vmatprep.mubr.bf16.mxu0 %v907
    %1808 = vmatmul.mubr.bf16.gmra.mrb[0].mxu0 %v906
    %v1809 = vpop.f32.mrb[0].mxu0
    %v1810 = vadd.f32 %v1713, %v1809
    %v1811 = vpop.f32.mrb[0].mxu0
    %v1812 = vpop.f32.mrb[0].mxu0
    %v1813 = vadd.f32 %v1716, %v1812
    %v1814 = vpop.f32.mrb[0].mxu0
    %1815 = vmatprep.mubr.bf16.mxu0 %v915
    %1816 = vmatmul.mubr.bf16.gmra.mrb[0].mxu0 %v914
    %v1817 = vpop.f32.mrb[0].mxu0
    %v1818 = vadd.f32 %v1721, %v1817
    %v1819 = vpop.f32.mrb[0].mxu0
    %v1820 = vpop.f32.mrb[0].mxu0
    %v1821 = vadd.f32 %v1724, %v1820
    %v1822 = vpop.f32.mrb[0].mxu0
    %1823 = vmatprep.mubr.bf16.mxu0 %v923
    %1824 = vmatmul.mubr.bf16.gmra.mrb[0].mxu0 %v922
    %v1825 = vpop.f32.mrb[0].mxu0
    %v1826 = vadd.f32 %v1729, %v1825
    %v1827 = vpop.f32.mrb[0].mxu0
    %v1828 = vpop.f32.mrb[0].mxu0
    %v1829 = vadd.f32 %v1732, %v1828
    %v1830 = vpop.f32.mrb[0].mxu0
    %1831 = vmatprep.mubr.bf16.mxu0 %v931
    %1832 = vmatmul.mubr.bf16.gmra.mrb[0].mxu0 %v930
    %v1833 = vpop.f32.mrb[0].mxu0
    %v1834 = vadd.f32 %v1737, %v1833
    %v1835 = vpop.f32.mrb[0].mxu0
    %v1836 = vpop.f32.mrb[0].mxu0
    %v1837 = vadd.f32 %v1740, %v1836
    %v1838 = vpop.f32.mrb[0].mxu0
    %1839 = vmatprep.mubr.bf16.mxu0 %v939
    %1840 = vmatmul.mubr.bf16.gmra.mrb[0].mxu0 %v938
    %v1841 = vpop.f32.mrb[0].mxu0
    %v1842 = vadd.f32 %v1745, %v1841
    %v1843 = vpop.f32.mrb[0].mxu0
    %v1844 = vpop.f32.mrb[0].mxu0
    %v1845 = vadd.f32 %v1748, %v1844
    %v1846 = vpop.f32.mrb[0].mxu0
    %1847 = vmatprep.mubr.bf16.mxu0 %v947
    %1848 = vmatmul.mubr.bf16.gmra.mrb[0].mxu0 %v946
    %v1849 = vpop.f32.mrb[0].mxu0
    %v1850 = vadd.f32 %v1753, %v1849
    %v1851 = vpop.f32.mrb[0].mxu0
    %v1852 = vpop.f32.mrb[0].mxu0
    %v1853 = vadd.f32 %v1756, %v1852
    %v1854 = vpop.f32.mrb[0].mxu0
    %1855 = vmatprep.mubr.bf16.mxu0 %v955
    %1856 = vmatmul.mubr.bf16.gmra.mrb[0].mxu0 %v954
    %v1857 = vpop.f32.mrb[0].mxu0
    %v1858 = vadd.f32 %v1761, %v1857
    %v1859 = vpop.f32.mrb[0].mxu0
    %v1860 = vpop.f32.mrb[0].mxu0
    %v1861 = vadd.f32 %v1764, %v1860
    %v1862 = vpop.f32.mrb[0].mxu0
    %1863 = vmatprep.mubr.bf16.mxu0 %v963
    %1864 = vmatmul.mubr.bf16.gmra.mrb[0].mxu0 %v962
    %v1865 = vpop.f32.mrb[0].mxu0
    %v1866 = vadd.f32 %v1769, %v1865
    %v1867 = vpop.f32.mrb[0].mxu0
    %v1868 = vpop.f32.mrb[0].mxu0
    %v1869 = vadd.f32 %v1772, %v1868
    %v1870 = vpop.f32.mrb[0].mxu0
    %1871 = vdwg.mxu0
    %1872 = vmatprep.subr.bf16.mxu0 0
    %1873 = vmatpush1.bf16.msra.mxu0 %v1501
    %1874 = vmatprep.subr.bf16.mxu0 0
    %1875 = vmatpush1.bf16.msra.mxu0 %v1502
    %1876 = vmatprep.subr.bf16.mxu0 0
    %1877 = vmatpush1.bf16.msra.mxu0 %v1503
    %1878 = vmatprep.subr.bf16.mxu0 0
    %1879 = vmatpush1.bf16.msra.mxu0 %v1504
    %1880 = vmatprep.subr.bf16.mxu0 0
    %1881 = vmatpush1.bf16.msra.mxu0 %v1505
    %1882 = vmatprep.subr.bf16.mxu0 0
    %1883 = vmatpush1.bf16.msra.mxu0 %v1506
    %1884 = vmatprep.subr.bf16.mxu0 0
    %1885 = vmatpush1.bf16.msra.mxu0 %v1507
    %1886 = vmatprep.subr.bf16.mxu0 0
    %1887 = vmatpush1.bf16.msra.mxu0 %v1508
    %1888 = vmatprep.subr.bf16.mxu0 0
    %1889 = vmatpush1.bf16.msra.mxu0 %v1509
    %1890 = vmatprep.subr.bf16.mxu0 0
    %1891 = vmatpush1.bf16.msra.mxu0 %v1510
    %1892 = vmatprep.subr.bf16.mxu0 0
    %1893 = vmatpush1.bf16.msra.mxu0 %v1511
    %1894 = vmatprep.subr.bf16.mxu0 0
    %1895 = vmatpush1.bf16.msra.mxu0 %v1512
    %1896 = vmatprep.subr.bf16.mxu0 0
    %1897 = vmatpush1.bf16.msra.mxu0 %v1513
    %1898 = vmatprep.subr.bf16.mxu0 0
    %1899 = vmatpush1.bf16.msra.mxu0 %v1514
    %1900 = vmatprep.subr.bf16.mxu0 0
    %1901 = vmatpush1.bf16.msra.mxu0 %v1515
    %1902 = vmatprep.subr.bf16.mxu0 0
    %1903 = vmatpush1.bf16.msra.mxu0 %v1516
    %1904 = vmatprep.mubr.bf16.mxu0 %v909
    %1905 = vmatmul.mubr.bf16.gmra.mrb[0].mxu0 %v908
    %v1906 = vpop.f32.mrb[0].mxu0
    %v1907 = vadd.f32 %v1810, %v1906
    %v1908 = vpop.f32.mrb[0].mxu0
    %v1909 = vpop.f32.mrb[0].mxu0
    %v1910 = vadd.f32 %v1813, %v1909
    %v1911 = vpop.f32.mrb[0].mxu0
    %1912 = vmatprep.mubr.bf16.mxu0 %v917
    %1913 = vmatmul.mubr.bf16.gmra.mrb[0].mxu0 %v916
    %v1914 = vpop.f32.mrb[0].mxu0
    %v1915 = vadd.f32 %v1818, %v1914
    %v1916 = vpop.f32.mrb[0].mxu0
    %v1917 = vpop.f32.mrb[0].mxu0
    %v1918 = vadd.f32 %v1821, %v1917
    %v1919 = vpop.f32.mrb[0].mxu0
    %1920 = vmatprep.mubr.bf16.mxu0 %v925
    %1921 = vmatmul.mubr.bf16.gmra.mrb[0].mxu0 %v924
    %v1922 = vpop.f32.mrb[0].mxu0
    %v1923 = vadd.f32 %v1826, %v1922
    %v1924 = vpop.f32.mrb[0].mxu0
    %v1925 = vpop.f32.mrb[0].mxu0
    %v1926 = vadd.f32 %v1829, %v1925
    %v1927 = vpop.f32.mrb[0].mxu0
    %1928 = vmatprep.mubr.bf16.mxu0 %v933
    %1929 = vmatmul.mubr.bf16.gmra.mrb[0].mxu0 %v932
    %v1930 = vpop.f32.mrb[0].mxu0
    %v1931 = vadd.f32 %v1834, %v1930
    %v1932 = vpop.f32.mrb[0].mxu0
    %v1933 = vpop.f32.mrb[0].mxu0
    %v1934 = vadd.f32 %v1837, %v1933
    %v1935 = vpop.f32.mrb[0].mxu0
    %1936 = vmatprep.mubr.bf16.mxu0 %v941
    %1937 = vmatmul.mubr.bf16.gmra.mrb[0].mxu0 %v940
    %v1938 = vpop.f32.mrb[0].mxu0
    %v1939 = vadd.f32 %v1842, %v1938
    %v1940 = vpop.f32.mrb[0].mxu0
    %v1941 = vpop.f32.mrb[0].mxu0
    %v1942 = vadd.f32 %v1845, %v1941
    %v1943 = vpop.f32.mrb[0].mxu0
    %1944 = vmatprep.mubr.bf16.mxu0 %v949
    %1945 = vmatmul.mubr.bf16.gmra.mrb[0].mxu0 %v948
    %v1946 = vpop.f32.mrb[0].mxu0
    %v1947 = vadd.f32 %v1850, %v1946
    %v1948 = vpop.f32.mrb[0].mxu0
    %v1949 = vpop.f32.mrb[0].mxu0
    %v1950 = vadd.f32 %v1853, %v1949
    %v1951 = vpop.f32.mrb[0].mxu0
    %1952 = vmatprep.mubr.bf16.mxu0 %v957
    %1953 = vmatmul.mubr.bf16.gmra.mrb[0].mxu0 %v956
    %v1954 = vpop.f32.mrb[0].mxu0
    %v1955 = vadd.f32 %v1858, %v1954
    %v1956 = vpop.f32.mrb[0].mxu0
    %v1957 = vpop.f32.mrb[0].mxu0
    %v1958 = vadd.f32 %v1861, %v1957
    %v1959 = vpop.f32.mrb[0].mxu0
    %1960 = vmatprep.mubr.bf16.mxu0 %v965
    %1961 = vmatmul.mubr.bf16.gmra.mrb[0].mxu0 %v964
    %v1962 = vpop.f32.mrb[0].mxu0
    %v1963 = vadd.f32 %v1866, %v1962
    %v1964 = vpop.f32.mrb[0].mxu0
    %v1965 = vpop.f32.mrb[0].mxu0
    %v1966 = vadd.f32 %v1869, %v1965
    %v1967 = vpop.f32.mrb[0].mxu0
    %1968 = vdwg.mxu0
    %v1969 = vld [vmem:[%s4] sm:$0x1]
    %v1971 = vlaneseq
    %v1972 = vshrl.u32 %v1971, 7
    %v1973 = vsub.s32 0, %v1972
    %v1974 = vrot.slane %v1969, %v1973
    %v1976 = vadd.f32 %v1907, %v1974
    %v1977 = vadd.f32 %v1910, %v1974
    %v1978 = vadd.f32 %v1915, %v1974
    %v1979 = vadd.f32 %v1918, %v1974
    %v1980 = vadd.f32 %v1923, %v1974
    %v1981 = vadd.f32 %v1926, %v1974
    %v1982 = vadd.f32 %v1931, %v1974
    %v1983 = vadd.f32 %v1934, %v1974
    %v1984 = vadd.f32 %v1939, %v1974
    %v1985 = vadd.f32 %v1942, %v1974
    %v1986 = vadd.f32 %v1947, %v1974
    %v1987 = vadd.f32 %v1950, %v1974
    %v1988 = vadd.f32 %v1955, %v1974
    %v1989 = vadd.f32 %v1958, %v1974
    %v1990 = vadd.f32 %v1963, %v1974
    %v1991 = vadd.f32 %v1966, %v1974
    %v1992 = vmax.f32 %v1976, 0.0
    %v1993 = vmax.f32 %v1977, 0.0
    %v1994 = vmax.f32 %v1978, 0.0
    %v1995 = vmax.f32 %v1979, 0.0
    %v1996 = vmax.f32 %v1980, 0.0
    %v1997 = vmax.f32 %v1981, 0.0
    %v1998 = vmax.f32 %v1982, 0.0
    %v1999 = vmax.f32 %v1983, 0.0
    %v2000 = vmax.f32 %v1984, 0.0
    %v2001 = vmax.f32 %v1985, 0.0
    %v2002 = vmax.f32 %v1986, 0.0
    %v2003 = vmax.f32 %v1987, 0.0
    %v2004 = vmax.f32 %v1988, 0.0
    %v2005 = vmax.f32 %v1989, 0.0
    %v2006 = vmax.f32 %v1990, 0.0
    %v2007 = vmax.f32 %v1991, 0.0
    %v2008 = vpack.c.bf16 %v1993, %v1992
    %v2009 = vpack.c.bf16 %v1995, %v1994
    %v2010 = vpack.c.bf16 %v1997, %v1996
    %v2011 = vpack.c.bf16 %v1999, %v1998
    %v2012 = vpack.c.bf16 %v2001, %v2000
    %v2013 = vpack.c.bf16 %v2003, %v2002
    %v2014 = vpack.c.bf16 %v2005, %v2004
    %v2015 = vpack.c.bf16 %v2007, %v2006
    %v2016 = vld [vmem:[#allocation7] sm:$0xff]
    %v2017 = vld [vmem:[#allocation7 + $0x8] sm:$0xff]
    %v2018 = vld [vmem:[#allocation7 + $0x10] sm:$0xff]
    %v2019 = vld [vmem:[#allocation7 + $0x18] sm:$0xff]
    %v2020 = vld [vmem:[#allocation7 + $0x20] sm:$0xff]
    %v2021 = vld [vmem:[#allocation7 + $0x28] sm:$0xff]
    %v2022 = vld [vmem:[#allocation7 + $0x30] sm:$0xff]
    %v2023 = vld [vmem:[#allocation7 + $0x38] sm:$0xff]
    %v2024 = vld [vmem:[#allocation7 + $0x40] sm:$0xff]
    %v2025 = vld [vmem:[#allocation7 + $0x48] sm:$0xff]
    %v2026 = vld [vmem:[#allocation7 + $0x50] sm:$0xff]
    %v2027 = vld [vmem:[#allocation7 + $0x58] sm:$0xff]
    %v2028 = vld [vmem:[#allocation7 + $0x60] sm:$0xff]
    %v2029 = vld [vmem:[#allocation7 + $0x68] sm:$0xff]
    %v2030 = vld [vmem:[#allocation7 + $0x70] sm:$0xff]
    %v2031 = vld [vmem:[#allocation7 + $0x78] sm:$0xff]
    %v2032 = vld [vmem:[#allocation7 + $0x80] sm:$0xff]
    %v2033 = vld [vmem:[#allocation7 + $0x88] sm:$0xff]
    %v2034 = vld [vmem:[#allocation7 + $0x90] sm:$0xff]
    %v2035 = vld [vmem:[#allocation7 + $0x98] sm:$0xff]
    %v2036 = vld [vmem:[#allocation7 + $0xa0] sm:$0xff]
    %v2037 = vld [vmem:[#allocation7 + $0xa8] sm:$0xff]
    %v2038 = vld [vmem:[#allocation7 + $0xb0] sm:$0xff]
    %v2039 = vld [vmem:[#allocation7 + $0xb8] sm:$0xff]
    %v2040 = vld [vmem:[#allocation7 + $0xc0] sm:$0xff]
    %v2041 = vld [vmem:[#allocation7 + $0xc8] sm:$0xff]
    %v2042 = vld [vmem:[#allocation7 + $0xd0] sm:$0xff]
    %v2043 = vld [vmem:[#allocation7 + $0xd8] sm:$0xff]
    %v2044 = vld [vmem:[#allocation7 + $0xe0] sm:$0xff]
    %v2045 = vld [vmem:[#allocation7 + $0xe8] sm:$0xff]
    %v2046 = vld [vmem:[#allocation7 + $0xf0] sm:$0xff]
    %v2047 = vld [vmem:[#allocation7 + $0xf8] sm:$0xff]
    %v2048 = vld [vmem:[#allocation7 + $0x100] sm:$0xff]
    %v2049 = vld [vmem:[#allocation7 + $0x108] sm:$0xff]
    %v2050 = vld [vmem:[#allocation7 + $0x110] sm:$0xff]
    %v2051 = vld [vmem:[#allocation7 + $0x118] sm:$0xff]
    %v2052 = vld [vmem:[#allocation7 + $0x120] sm:$0xff]
    %v2053 = vld [vmem:[#allocation7 + $0x128] sm:$0xff]
    %v2054 = vld [vmem:[#allocation7 + $0x130] sm:$0xff]
    %v2055 = vld [vmem:[#allocation7 + $0x138] sm:$0xff]
    %v2056 = vld [vmem:[#allocation7 + $0x140] sm:$0xff]
    %v2057 = vld [vmem:[#allocation7 + $0x148] sm:$0xff]
    %v2058 = vld [vmem:[#allocation7 + $0x150] sm:$0xff]
    %v2059 = vld [vmem:[#allocation7 + $0x158] sm:$0xff]
    %v2060 = vld [vmem:[#allocation7 + $0x160] sm:$0xff]
    %v2061 = vld [vmem:[#allocation7 + $0x168] sm:$0xff]
    %v2062 = vld [vmem:[#allocation7 + $0x170] sm:$0xff]
    %v2063 = vld [vmem:[#allocation7 + $0x178] sm:$0xff]
    %v2064 = vld [vmem:[#allocation7 + $0x180] sm:$0xff]
    %v2065 = vld [vmem:[#allocation7 + $0x188] sm:$0xff]
    %v2066 = vld [vmem:[#allocation7 + $0x190] sm:$0xff]
    %v2067 = vld [vmem:[#allocation7 + $0x198] sm:$0xff]
    %v2068 = vld [vmem:[#allocation7 + $0x1a0] sm:$0xff]
    %v2069 = vld [vmem:[#allocation7 + $0x1a8] sm:$0xff]
    %v2070 = vld [vmem:[#allocation7 + $0x1b0] sm:$0xff]
    %v2071 = vld [vmem:[#allocation7 + $0x1b8] sm:$0xff]
    %v2072 = vld [vmem:[#allocation7 + $0x1c0] sm:$0xff]
    %v2073 = vld [vmem:[#allocation7 + $0x1c8] sm:$0xff]
    %v2074 = vld [vmem:[#allocation7 + $0x1d0] sm:$0xff]
    %v2075 = vld [vmem:[#allocation7 + $0x1d8] sm:$0xff]
    %v2076 = vld [vmem:[#allocation7 + $0x1e0] sm:$0xff]
    %v2077 = vld [vmem:[#allocation7 + $0x1e8] sm:$0xff]
    %v2078 = vld [vmem:[#allocation7 + $0x1f0] sm:$0xff]
    %v2079 = vld [vmem:[#allocation7 + $0x1f8] sm:$0xff]
    %v2080 = vld [vmem:[%s7] sm:$0xff]
    %v2082 = vlaneseq
    %v2083 = vshrl.u32 %v2082, 7
    %v2084 = vsub.s32 0, %v2083
    %v2085 = vrot.slane %v2080, %v2084
    %v2086 = vlaneseq
    %v2087 = vshrl.u32 %v2086, 7
    %v2088 = vsub.s32 1, %v2087
    %v2089 = vrot.slane %v2080, %v2088
    %v2090 = vlaneseq
    %v2091 = vshrl.u32 %v2090, 7
    %v2092 = vsub.s32 2, %v2091
    %v2093 = vrot.slane %v2080, %v2092
    %v2094 = vlaneseq
    %v2095 = vshrl.u32 %v2094, 7
    %v2096 = vsub.s32 3, %v2095
    %v2097 = vrot.slane %v2080, %v2096
    %v2098 = vlaneseq
    %v2099 = vshrl.u32 %v2098, 7
    %v2100 = vsub.s32 4, %v2099
    %v2101 = vrot.slane %v2080, %v2100
    %v2102 = vlaneseq
    %v2103 = vshrl.u32 %v2102, 7
    %v2104 = vsub.s32 5, %v2103
    %v2105 = vrot.slane %v2080, %v2104
    %v2106 = vlaneseq
    %v2107 = vshrl.u32 %v2106, 7
    %v2108 = vsub.s32 6, %v2107
    %v2109 = vrot.slane %v2080, %v2108
    %v2110 = vlaneseq
    %v2111 = vshrl.u32 %v2110, 7
    %v2112 = vsub.s32 7, %v2111
    %v2113 = vrot.slane %v2080, %v2112
    %v2186 = vunpack.c.l.b16 %v2016
    %v2187 = vunpack.c.h.b16 %v2016
    %v2188 = vunpack.c.l.b16 %v2017
    %v2189 = vunpack.c.h.b16 %v2017
    %v2190 = vunpack.c.l.b16 %v2018
    %v2191 = vunpack.c.h.b16 %v2018
    %v2192 = vunpack.c.l.b16 %v2019
    %v2193 = vunpack.c.h.b16 %v2019
    %v2194 = vunpack.c.l.b16 %v2020
    %v2195 = vunpack.c.h.b16 %v2020
    %v2196 = vunpack.c.l.b16 %v2021
    %v2197 = vunpack.c.h.b16 %v2021
    %v2198 = vunpack.c.l.b16 %v2022
    %v2199 = vunpack.c.h.b16 %v2022
    %v2200 = vunpack.c.l.b16 %v2023
    %v2201 = vunpack.c.h.b16 %v2023
    %v2202 = vunpack.c.l.b16 %v2024
    %v2203 = vunpack.c.h.b16 %v2024
    %v2204 = vunpack.c.l.b16 %v2025
    %v2205 = vunpack.c.h.b16 %v2025
    %v2206 = vunpack.c.l.b16 %v2026
    %v2207 = vunpack.c.h.b16 %v2026
    %v2208 = vunpack.c.l.b16 %v2027
    %v2209 = vunpack.c.h.b16 %v2027
    %v2210 = vunpack.c.l.b16 %v2028
    %v2211 = vunpack.c.h.b16 %v2028
    %v2212 = vunpack.c.l.b16 %v2029
    %v2213 = vunpack.c.h.b16 %v2029
    %v2214 = vunpack.c.l.b16 %v2030
    %v2215 = vunpack.c.h.b16 %v2030
    %v2216 = vunpack.c.l.b16 %v2031
    %v2217 = vunpack.c.h.b16 %v2031
    %v2218 = vunpack.c.l.b16 %v2032
    %v2219 = vunpack.c.h.b16 %v2032
    %v2220 = vunpack.c.l.b16 %v2033
    %v2221 = vunpack.c.h.b16 %v2033
    %v2222 = vunpack.c.l.b16 %v2034
    %v2223 = vunpack.c.h.b16 %v2034
    %v2224 = vunpack.c.l.b16 %v2035
    %v2225 = vunpack.c.h.b16 %v2035
    %v2226 = vunpack.c.l.b16 %v2036
    %v2227 = vunpack.c.h.b16 %v2036
    %v2228 = vunpack.c.l.b16 %v2037
    %v2229 = vunpack.c.h.b16 %v2037
    %v2230 = vunpack.c.l.b16 %v2038
    %v2231 = vunpack.c.h.b16 %v2038
    %v2232 = vunpack.c.l.b16 %v2039
    %v2233 = vunpack.c.h.b16 %v2039
    %v2234 = vunpack.c.l.b16 %v2040
    %v2235 = vunpack.c.h.b16 %v2040
    %v2236 = vunpack.c.l.b16 %v2041
    %v2237 = vunpack.c.h.b16 %v2041
    %v2238 = vunpack.c.l.b16 %v2042
    %v2239 = vunpack.c.h.b16 %v2042
    %v2240 = vunpack.c.l.b16 %v2043
    %v2241 = vunpack.c.h.b16 %v2043
    %v2242 = vunpack.c.l.b16 %v2044
    %v2243 = vunpack.c.h.b16 %v2044
    %v2244 = vunpack.c.l.b16 %v2045
    %v2245 = vunpack.c.h.b16 %v2045
    %v2246 = vunpack.c.l.b16 %v2046
    %v2247 = vunpack.c.h.b16 %v2046
    %v2248 = vunpack.c.l.b16 %v2047
    %v2249 = vunpack.c.h.b16 %v2047
    %v2250 = vunpack.c.l.b16 %v2048
    %v2251 = vunpack.c.h.b16 %v2048
    %v2252 = vunpack.c.l.b16 %v2049
    %v2253 = vunpack.c.h.b16 %v2049
    %v2254 = vunpack.c.l.b16 %v2050
    %v2255 = vunpack.c.h.b16 %v2050
    %v2256 = vunpack.c.l.b16 %v2051
    %v2257 = vunpack.c.h.b16 %v2051
    %v2258 = vunpack.c.l.b16 %v2052
    %v2259 = vunpack.c.h.b16 %v2052
    %v2260 = vunpack.c.l.b16 %v2053
    %v2261 = vunpack.c.h.b16 %v2053
    %v2262 = vunpack.c.l.b16 %v2054
    %v2263 = vunpack.c.h.b16 %v2054
    %v2264 = vunpack.c.l.b16 %v2055
    %v2265 = vunpack.c.h.b16 %v2055
    %v2266 = vunpack.c.l.b16 %v2056
    %v2267 = vunpack.c.h.b16 %v2056
    %v2268 = vunpack.c.l.b16 %v2057
    %v2269 = vunpack.c.h.b16 %v2057
    %v2270 = vunpack.c.l.b16 %v2058
    %v2271 = vunpack.c.h.b16 %v2058
    %v2272 = vunpack.c.l.b16 %v2059
    %v2273 = vunpack.c.h.b16 %v2059
    %v2274 = vunpack.c.l.b16 %v2060
    %v2275 = vunpack.c.h.b16 %v2060
    %v2276 = vunpack.c.l.b16 %v2061
    %v2277 = vunpack.c.h.b16 %v2061
    %v2278 = vunpack.c.l.b16 %v2062
    %v2279 = vunpack.c.h.b16 %v2062
    %v2280 = vunpack.c.l.b16 %v2063
    %v2281 = vunpack.c.h.b16 %v2063
    %v2282 = vunpack.c.l.b16 %v2064
    %v2283 = vunpack.c.h.b16 %v2064
    %v2284 = vunpack.c.l.b16 %v2065
    %v2285 = vunpack.c.h.b16 %v2065
    %v2286 = vunpack.c.l.b16 %v2066
    %v2287 = vunpack.c.h.b16 %v2066
    %v2288 = vunpack.c.l.b16 %v2067
    %v2289 = vunpack.c.h.b16 %v2067
    %v2290 = vunpack.c.l.b16 %v2068
    %v2291 = vunpack.c.h.b16 %v2068
    %v2292 = vunpack.c.l.b16 %v2069
    %v2293 = vunpack.c.h.b16 %v2069
    %v2294 = vunpack.c.l.b16 %v2070
    %v2295 = vunpack.c.h.b16 %v2070
    %v2296 = vunpack.c.l.b16 %v2071
    %v2297 = vunpack.c.h.b16 %v2071
    %v2298 = vunpack.c.l.b16 %v2072
    %v2299 = vunpack.c.h.b16 %v2072
    %v2300 = vunpack.c.l.b16 %v2073
    %v2301 = vunpack.c.h.b16 %v2073
    %v2302 = vunpack.c.l.b16 %v2074
    %v2303 = vunpack.c.h.b16 %v2074
    %v2304 = vunpack.c.l.b16 %v2075
    %v2305 = vunpack.c.h.b16 %v2075
    %v2306 = vunpack.c.l.b16 %v2076
    %v2307 = vunpack.c.h.b16 %v2076
    %v2308 = vunpack.c.l.b16 %v2077
    %v2309 = vunpack.c.h.b16 %v2077
    %v2310 = vunpack.c.l.b16 %v2078
    %v2311 = vunpack.c.h.b16 %v2078
    %v2312 = vunpack.c.l.b16 %v2079
    %v2313 = vunpack.c.h.b16 %v2079
    %v2314 = vpack.c.b16 %v2194, %v2186
    %v2315 = vpack.c.b16 %v2195, %v2187
    %v2316 = vpack.c.b16 %v2196, %v2188
    %v2317 = vpack.c.b16 %v2197, %v2189
    %v2318 = vpack.c.b16 %v2198, %v2190
    %v2319 = vpack.c.b16 %v2199, %v2191
    %v2320 = vpack.c.b16 %v2200, %v2192
    %v2321 = vpack.c.b16 %v2201, %v2193
    %v2322 = vpack.c.b16 %v2210, %v2202
    %v2323 = vpack.c.b16 %v2211, %v2203
    %v2324 = vpack.c.b16 %v2212, %v2204
    %v2325 = vpack.c.b16 %v2213, %v2205
    %v2326 = vpack.c.b16 %v2214, %v2206
    %v2327 = vpack.c.b16 %v2215, %v2207
    %v2328 = vpack.c.b16 %v2216, %v2208
    %v2329 = vpack.c.b16 %v2217, %v2209
    %v2330 = vpack.c.b16 %v2226, %v2218
    %v2331 = vpack.c.b16 %v2227, %v2219
    %v2332 = vpack.c.b16 %v2228, %v2220
    %v2333 = vpack.c.b16 %v2229, %v2221
    %v2334 = vpack.c.b16 %v2230, %v2222
    %v2335 = vpack.c.b16 %v2231, %v2223
    %v2336 = vpack.c.b16 %v2232, %v2224
    %v2337 = vpack.c.b16 %v2233, %v2225
    %v2338 = vpack.c.b16 %v2242, %v2234
    %v2339 = vpack.c.b16 %v2243, %v2235
    %v2340 = vpack.c.b16 %v2244, %v2236
    %v2341 = vpack.c.b16 %v2245, %v2237
    %v2342 = vpack.c.b16 %v2246, %v2238
    %v2343 = vpack.c.b16 %v2247, %v2239
    %v2344 = vpack.c.b16 %v2248, %v2240
    %v2345 = vpack.c.b16 %v2249, %v2241
    %v2346 = vpack.c.b16 %v2258, %v2250
    %v2347 = vpack.c.b16 %v2259, %v2251
    %v2348 = vpack.c.b16 %v2260, %v2252
    %v2349 = vpack.c.b16 %v2261, %v2253
    %v2350 = vpack.c.b16 %v2262, %v2254
    %v2351 = vpack.c.b16 %v2263, %v2255
    %v2352 = vpack.c.b16 %v2264, %v2256
    %v2353 = vpack.c.b16 %v2265, %v2257
    %v2354 = vpack.c.b16 %v2274, %v2266
    %v2355 = vpack.c.b16 %v2275, %v2267
    %v2356 = vpack.c.b16 %v2276, %v2268
    %v2357 = vpack.c.b16 %v2277, %v2269
    %v2358 = vpack.c.b16 %v2278, %v2270
    %v2359 = vpack.c.b16 %v2279, %v2271
    %v2360 = vpack.c.b16 %v2280, %v2272
    %v2361 = vpack.c.b16 %v2281, %v2273
    %v2362 = vpack.c.b16 %v2290, %v2282
    %v2363 = vpack.c.b16 %v2291, %v2283
    %v2364 = vpack.c.b16 %v2292, %v2284
    %v2365 = vpack.c.b16 %v2293, %v2285
    %v2366 = vpack.c.b16 %v2294, %v2286
    %v2367 = vpack.c.b16 %v2295, %v2287
    %v2368 = vpack.c.b16 %v2296, %v2288
    %v2369 = vpack.c.b16 %v2297, %v2289
    %v2370 = vpack.c.b16 %v2306, %v2298
    %v2371 = vpack.c.b16 %v2307, %v2299
    %v2372 = vpack.c.b16 %v2308, %v2300
    %v2373 = vpack.c.b16 %v2309, %v2301
    %v2374 = vpack.c.b16 %v2310, %v2302
    %v2375 = vpack.c.b16 %v2311, %v2303
    %v2376 = vpack.c.b16 %v2312, %v2304
    %v2377 = vpack.c.b16 %v2313, %v2305
    %2442 = vmatprep.subr.bf16.mxu0 %v2315
    %2443 = vmatpush1.bf16.msra.mxu0 %v2314
    %2444 = vmatprep.subr.bf16.mxu0 %v2323
    %2445 = vmatpush1.bf16.msra.mxu0 %v2322
    %2446 = vmatprep.subr.bf16.mxu0 %v2331
    %2447 = vmatpush1.bf16.msra.mxu0 %v2330
    %2448 = vmatprep.subr.bf16.mxu0 %v2339
    %2449 = vmatpush1.bf16.msra.mxu0 %v2338
    %2450 = vmatprep.subr.bf16.mxu0 %v2347
    %2451 = vmatpush1.bf16.msra.mxu0 %v2346
    %2452 = vmatprep.subr.bf16.mxu0 %v2355
    %2453 = vmatpush1.bf16.msra.mxu0 %v2354
    %2454 = vmatprep.subr.bf16.mxu0 %v2363
    %2455 = vmatpush1.bf16.msra.mxu0 %v2362
    %2456 = vmatprep.subr.bf16.mxu0 %v2371
    %2457 = vmatpush1.bf16.msra.mxu0 %v2370
    %2458 = vmatprep.subr.bf16.mxu0 0
    %2459 = vmatpush1.bf16.msra.mxu0 0
    %2460 = vmatprep.subr.bf16.mxu0 0
    %2461 = vmatpush1.bf16.msra.mxu0 0
    %2462 = vmatprep.subr.bf16.mxu0 0
    %2463 = vmatpush1.bf16.msra.mxu0 0
    %2464 = vmatprep.subr.bf16.mxu0 0
    %2465 = vmatpush1.bf16.msra.mxu0 0
    %2466 = vmatprep.subr.bf16.mxu0 0
    %2467 = vmatpush1.bf16.msra.mxu0 0
    %2468 = vmatprep.subr.bf16.mxu0 0
    %2469 = vmatpush1.bf16.msra.mxu0 0
    %2470 = vmatprep.subr.bf16.mxu0 0
    %2471 = vmatpush1.bf16.msra.mxu0 0
    %2472 = vmatprep.subr.bf16.mxu0 0
    %2473 = vmatpush1.bf16.msra.mxu0 0
    %2474 = vmatprep.mubr.bf16.mxu0 0
    %2475 = vmatmul.mubr.bf16.gmra.mrb[0].mxu0 %v2008
    %v2476 = vpop.f32.mrb[0].mxu0
    %v2477 = vadd.f32 %v2085, %v2476
    %v2478 = vpop.f32.mrb[0].mxu0
    %v2479 = vadd.f32 %v2089, %v2478
    %v2480 = vpop.f32.mrb[0].mxu0
    %v2481 = vadd.f32 %v2085, %v2480
    %v2482 = vpop.f32.mrb[0].mxu0
    %v2483 = vadd.f32 %v2089, %v2482
    %2484 = vmatprep.mubr.bf16.mxu0 0
    %2485 = vmatmul.mubr.bf16.gmra.mrb[0].mxu0 %v2009
    %v2486 = vpop.f32.mrb[0].mxu0
    %v2487 = vadd.f32 %v2085, %v2486
    %v2488 = vpop.f32.mrb[0].mxu0
    %v2489 = vadd.f32 %v2089, %v2488
    %v2490 = vpop.f32.mrb[0].mxu0
    %v2491 = vadd.f32 %v2085, %v2490
    %v2492 = vpop.f32.mrb[0].mxu0
    %v2493 = vadd.f32 %v2089, %v2492
    %2494 = vmatprep.mubr.bf16.mxu0 0
    %2495 = vmatmul.mubr.bf16.gmra.mrb[0].mxu0 %v2010
    %v2496 = vpop.f32.mrb[0].mxu0
    %v2497 = vadd.f32 %v2085, %v2496
    %v2498 = vpop.f32.mrb[0].mxu0
    %v2499 = vadd.f32 %v2089, %v2498
    %v2500 = vpop.f32.mrb[0].mxu0
    %v2501 = vadd.f32 %v2085, %v2500
    %v2502 = vpop.f32.mrb[0].mxu0
    %v2503 = vadd.f32 %v2089, %v2502
    %2504 = vmatprep.mubr.bf16.mxu0 0
    %2505 = vmatmul.mubr.bf16.gmra.mrb[0].mxu0 %v2011
    %v2506 = vpop.f32.mrb[0].mxu0
    %v2507 = vadd.f32 %v2085, %v2506
    %v2508 = vpop.f32.mrb[0].mxu0
    %v2509 = vadd.f32 %v2089, %v2508
    %v2510 = vpop.f32.mrb[0].mxu0
    %v2511 = vadd.f32 %v2085, %v2510
    %v2512 = vpop.f32.mrb[0].mxu0
    %v2513 = vadd.f32 %v2089, %v2512
    %2514 = vmatprep.mubr.bf16.mxu0 0
    %2515 = vmatmul.mubr.bf16.gmra.mrb[0].mxu0 %v2012
    %v2516 = vpop.f32.mrb[0].mxu0
    %v2517 = vadd.f32 %v2085, %v2516
    %v2518 = vpop.f32.mrb[0].mxu0
    %v2519 = vadd.f32 %v2089, %v2518
    %v2520 = vpop.f32.mrb[0].mxu0
    %v2521 = vadd.f32 %v2085, %v2520
    %v2522 = vpop.f32.mrb[0].mxu0
    %v2523 = vadd.f32 %v2089, %v2522
    %2524 = vmatprep.mubr.bf16.mxu0 0
    %2525 = vmatmul.mubr.bf16.gmra.mrb[0].mxu0 %v2013
    %v2526 = vpop.f32.mrb[0].mxu0
    %v2527 = vadd.f32 %v2085, %v2526
    %v2528 = vpop.f32.mrb[0].mxu0
    %v2529 = vadd.f32 %v2089, %v2528
    %v2530 = vpop.f32.mrb[0].mxu0
    %v2531 = vadd.f32 %v2085, %v2530
    %v2532 = vpop.f32.mrb[0].mxu0
    %v2533 = vadd.f32 %v2089, %v2532
    %2534 = vmatprep.mubr.bf16.mxu0 0
    %2535 = vmatmul.mubr.bf16.gmra.mrb[0].mxu0 %v2014
    %v2536 = vpop.f32.mrb[0].mxu0
    %v2537 = vadd.f32 %v2085, %v2536
    %v2538 = vpop.f32.mrb[0].mxu0
    %v2539 = vadd.f32 %v2089, %v2538
    %v2540 = vpop.f32.mrb[0].mxu0
    %v2541 = vadd.f32 %v2085, %v2540
    %v2542 = vpop.f32.mrb[0].mxu0
    %v2543 = vadd.f32 %v2089, %v2542
    %2544 = vmatprep.mubr.bf16.mxu0 0
    %2545 = vmatmul.mubr.bf16.gmra.mrb[0].mxu0 %v2015
    %v2546 = vpop.f32.mrb[0].mxu0
    %v2547 = vadd.f32 %v2085, %v2546
    %v2548 = vpop.f32.mrb[0].mxu0
    %v2549 = vadd.f32 %v2089, %v2548
    %v2550 = vpop.f32.mrb[0].mxu0
    %v2551 = vadd.f32 %v2085, %v2550
    %v2552 = vpop.f32.mrb[0].mxu0
    %v2553 = vadd.f32 %v2089, %v2552
    %2554 = vdwg.mxu0
    %2555 = vmatprep.subr.bf16.mxu0 %v2317
    %2556 = vmatpush1.bf16.msra.mxu0 %v2316
    %2557 = vmatprep.subr.bf16.mxu0 %v2325
    %2558 = vmatpush1.bf16.msra.mxu0 %v2324
    %2559 = vmatprep.subr.bf16.mxu0 %v2333
    %2560 = vmatpush1.bf16.msra.mxu0 %v2332
    %2561 = vmatprep.subr.bf16.mxu0 %v2341
    %2562 = vmatpush1.bf16.msra.mxu0 %v2340
    %2563 = vmatprep.subr.bf16.mxu0 %v2349
    %2564 = vmatpush1.bf16.msra.mxu0 %v2348
    %2565 = vmatprep.subr.bf16.mxu0 %v2357
    %2566 = vmatpush1.bf16.msra.mxu0 %v2356
    %2567 = vmatprep.subr.bf16.mxu0 %v2365
    %2568 = vmatpush1.bf16.msra.mxu0 %v2364
    %2569 = vmatprep.subr.bf16.mxu0 %v2373
    %2570 = vmatpush1.bf16.msra.mxu0 %v2372
    %2571 = vmatprep.subr.bf16.mxu0 0
    %2572 = vmatpush1.bf16.msra.mxu0 0
    %2573 = vmatprep.subr.bf16.mxu0 0
    %2574 = vmatpush1.bf16.msra.mxu0 0
    %2575 = vmatprep.subr.bf16.mxu0 0
    %2576 = vmatpush1.bf16.msra.mxu0 0
    %2577 = vmatprep.subr.bf16.mxu0 0
    %2578 = vmatpush1.bf16.msra.mxu0 0
    %2579 = vmatprep.subr.bf16.mxu0 0
    %2580 = vmatpush1.bf16.msra.mxu0 0
    %2581 = vmatprep.subr.bf16.mxu0 0
    %2582 = vmatpush1.bf16.msra.mxu0 0
    %2583 = vmatprep.subr.bf16.mxu0 0
    %2584 = vmatpush1.bf16.msra.mxu0 0
    %2585 = vmatprep.subr.bf16.mxu0 0
    %2586 = vmatpush1.bf16.msra.mxu0 0
    %2587 = vmatprep.mubr.bf16.mxu0 0
    %2588 = vmatmul.mubr.bf16.gmra.mrb[0].mxu0 %v2008
    %v2589 = vpop.f32.mrb[0].mxu0
    %v2590 = vadd.f32 %v2093, %v2589
    %v2591 = vpop.f32.mrb[0].mxu0
    %v2592 = vadd.f32 %v2097, %v2591
    %v2593 = vpop.f32.mrb[0].mxu0
    %v2594 = vadd.f32 %v2093, %v2593
    %v2595 = vpop.f32.mrb[0].mxu0
    %v2596 = vadd.f32 %v2097, %v2595
    %2597 = vmatprep.mubr.bf16.mxu0 0
    %2598 = vmatmul.mubr.bf16.gmra.mrb[0].mxu0 %v2009
    %v2599 = vpop.f32.mrb[0].mxu0
    %v2600 = vadd.f32 %v2093, %v2599
    %v2601 = vpop.f32.mrb[0].mxu0
    %v2602 = vadd.f32 %v2097, %v2601
    %v2603 = vpop.f32.mrb[0].mxu0
    %v2604 = vadd.f32 %v2093, %v2603
    %v2605 = vpop.f32.mrb[0].mxu0
    %v2606 = vadd.f32 %v2097, %v2605
    %2607 = vmatprep.mubr.bf16.mxu0 0
    %2608 = vmatmul.mubr.bf16.gmra.mrb[0].mxu0 %v2010
    %v2609 = vpop.f32.mrb[0].mxu0
    %v2610 = vadd.f32 %v2093, %v2609
    %v2611 = vpop.f32.mrb[0].mxu0
    %v2612 = vadd.f32 %v2097, %v2611
    %v2613 = vpop.f32.mrb[0].mxu0
    %v2614 = vadd.f32 %v2093, %v2613
    %v2615 = vpop.f32.mrb[0].mxu0
    %v2616 = vadd.f32 %v2097, %v2615
    %2617 = vmatprep.mubr.bf16.mxu0 0
    %2618 = vmatmul.mubr.bf16.gmra.mrb[0].mxu0 %v2011
    %v2619 = vpop.f32.mrb[0].mxu0
    %v2620 = vadd.f32 %v2093, %v2619
    %v2621 = vpop.f32.mrb[0].mxu0
    %v2622 = vadd.f32 %v2097, %v2621
    %v2623 = vpop.f32.mrb[0].mxu0
    %v2624 = vadd.f32 %v2093, %v2623
    %v2625 = vpop.f32.mrb[0].mxu0
    %v2626 = vadd.f32 %v2097, %v2625
    %2627 = vmatprep.mubr.bf16.mxu0 0
    %2628 = vmatmul.mubr.bf16.gmra.mrb[0].mxu0 %v2012
    %v2629 = vpop.f32.mrb[0].mxu0
    %v2630 = vadd.f32 %v2093, %v2629
    %v2631 = vpop.f32.mrb[0].mxu0
    %v2632 = vadd.f32 %v2097, %v2631
    %v2633 = vpop.f32.mrb[0].mxu0
    %v2634 = vadd.f32 %v2093, %v2633
    %v2635 = vpop.f32.mrb[0].mxu0
    %v2636 = vadd.f32 %v2097, %v2635
    %2637 = vmatprep.mubr.bf16.mxu0 0
    %2638 = vmatmul.mubr.bf16.gmra.mrb[0].mxu0 %v2013
    %v2639 = vpop.f32.mrb[0].mxu0
    %v2640 = vadd.f32 %v2093, %v2639
    %v2641 = vpop.f32.mrb[0].mxu0
    %v2642 = vadd.f32 %v2097, %v2641
    %v2643 = vpop.f32.mrb[0].mxu0
    %v2644 = vadd.f32 %v2093, %v2643
    %v2645 = vpop.f32.mrb[0].mxu0
    %v2646 = vadd.f32 %v2097, %v2645
    %2647 = vmatprep.mubr.bf16.mxu0 0
    %2648 = vmatmul.mubr.bf16.gmra.mrb[0].mxu0 %v2014
    %v2649 = vpop.f32.mrb[0].mxu0
    %v2650 = vadd.f32 %v2093, %v2649
    %v2651 = vpop.f32.mrb[0].mxu0
    %v2652 = vadd.f32 %v2097, %v2651
    %v2653 = vpop.f32.mrb[0].mxu0
    %v2654 = vadd.f32 %v2093, %v2653
    %v2655 = vpop.f32.mrb[0].mxu0
    %v2656 = vadd.f32 %v2097, %v2655
    %2657 = vmatprep.mubr.bf16.mxu0 0
    %2658 = vmatmul.mubr.bf16.gmra.mrb[0].mxu0 %v2015
    %v2659 = vpop.f32.mrb[0].mxu0
    %v2660 = vadd.f32 %v2093, %v2659
    %v2661 = vpop.f32.mrb[0].mxu0
    %v2662 = vadd.f32 %v2097, %v2661
    %v2663 = vpop.f32.mrb[0].mxu0
    %v2664 = vadd.f32 %v2093, %v2663
    %v2665 = vpop.f32.mrb[0].mxu0
    %v2666 = vadd.f32 %v2097, %v2665
    %2667 = vdwg.mxu0
    %2668 = vmatprep.subr.bf16.mxu0 %v2319
    %2669 = vmatpush1.bf16.msra.mxu0 %v2318
    %2670 = vmatprep.subr.bf16.mxu0 %v2327
    %2671 = vmatpush1.bf16.msra.mxu0 %v2326
    %2672 = vmatprep.subr.bf16.mxu0 %v2335
    %2673 = vmatpush1.bf16.msra.mxu0 %v2334
    %2674 = vmatprep.subr.bf16.mxu0 %v2343
    %2675 = vmatpush1.bf16.msra.mxu0 %v2342
    %2676 = vmatprep.subr.bf16.mxu0 %v2351
    %2677 = vmatpush1.bf16.msra.mxu0 %v2350
    %2678 = vmatprep.subr.bf16.mxu0 %v2359
    %2679 = vmatpush1.bf16.msra.mxu0 %v2358
    %2680 = vmatprep.subr.bf16.mxu0 %v2367
    %2681 = vmatpush1.bf16.msra.mxu0 %v2366
    %2682 = vmatprep.subr.bf16.mxu0 %v2375
    %2683 = vmatpush1.bf16.msra.mxu0 %v2374
    %2684 = vmatprep.subr.bf16.mxu0 0
    %2685 = vmatpush1.bf16.msra.mxu0 0
    %2686 = vmatprep.subr.bf16.mxu0 0
    %2687 = vmatpush1.bf16.msra.mxu0 0
    %2688 = vmatprep.subr.bf16.mxu0 0
    %2689 = vmatpush1.bf16.msra.mxu0 0
    %2690 = vmatprep.subr.bf16.mxu0 0
    %2691 = vmatpush1.bf16.msra.mxu0 0
    %2692 = vmatprep.subr.bf16.mxu0 0
    %2693 = vmatpush1.bf16.msra.mxu0 0
    %2694 = vmatprep.subr.bf16.mxu0 0
    %2695 = vmatpush1.bf16.msra.mxu0 0
    %2696 = vmatprep.subr.bf16.mxu0 0
    %2697 = vmatpush1.bf16.msra.mxu0 0
    %2698 = vmatprep.subr.bf16.mxu0 0
    %2699 = vmatpush1.bf16.msra.mxu0 0
    %2700 = vmatprep.mubr.bf16.mxu0 0
    %2701 = vmatmul.mubr.bf16.gmra.mrb[0].mxu0 %v2008
    %v2702 = vpop.f32.mrb[0].mxu0
    %v2703 = vadd.f32 %v2101, %v2702
    %v2704 = vpop.f32.mrb[0].mxu0
    %v2705 = vadd.f32 %v2105, %v2704
    %v2706 = vpop.f32.mrb[0].mxu0
    %v2707 = vadd.f32 %v2101, %v2706
    %v2708 = vpop.f32.mrb[0].mxu0
    %v2709 = vadd.f32 %v2105, %v2708
    %2710 = vmatprep.mubr.bf16.mxu0 0
    %2711 = vmatmul.mubr.bf16.gmra.mrb[0].mxu0 %v2009
    %v2712 = vpop.f32.mrb[0].mxu0
    %v2713 = vadd.f32 %v2101, %v2712
    %v2714 = vpop.f32.mrb[0].mxu0
    %v2715 = vadd.f32 %v2105, %v2714
    %v2716 = vpop.f32.mrb[0].mxu0
    %v2717 = vadd.f32 %v2101, %v2716
    %v2718 = vpop.f32.mrb[0].mxu0
    %v2719 = vadd.f32 %v2105, %v2718
    %2720 = vmatprep.mubr.bf16.mxu0 0
    %2721 = vmatmul.mubr.bf16.gmra.mrb[0].mxu0 %v2010
    %v2722 = vpop.f32.mrb[0].mxu0
    %v2723 = vadd.f32 %v2101, %v2722
    %v2724 = vpop.f32.mrb[0].mxu0
    %v2725 = vadd.f32 %v2105, %v2724
    %v2726 = vpop.f32.mrb[0].mxu0
    %v2727 = vadd.f32 %v2101, %v2726
    %v2728 = vpop.f32.mrb[0].mxu0
    %v2729 = vadd.f32 %v2105, %v2728
    %2730 = vmatprep.mubr.bf16.mxu0 0
    %2731 = vmatmul.mubr.bf16.gmra.mrb[0].mxu0 %v2011
    %v2732 = vpop.f32.mrb[0].mxu0
    %v2733 = vadd.f32 %v2101, %v2732
    %v2734 = vpop.f32.mrb[0].mxu0
    %v2735 = vadd.f32 %v2105, %v2734
    %v2736 = vpop.f32.mrb[0].mxu0
    %v2737 = vadd.f32 %v2101, %v2736
    %v2738 = vpop.f32.mrb[0].mxu0
    %v2739 = vadd.f32 %v2105, %v2738
    %2740 = vmatprep.mubr.bf16.mxu0 0
    %2741 = vmatmul.mubr.bf16.gmra.mrb[0].mxu0 %v2012
    %v2742 = vpop.f32.mrb[0].mxu0
    %v2743 = vadd.f32 %v2101, %v2742
    %v2744 = vpop.f32.mrb[0].mxu0
    %v2745 = vadd.f32 %v2105, %v2744
    %v2746 = vpop.f32.mrb[0].mxu0
    %v2747 = vadd.f32 %v2101, %v2746
    %v2748 = vpop.f32.mrb[0].mxu0
    %v2749 = vadd.f32 %v2105, %v2748
    %2750 = vmatprep.mubr.bf16.mxu0 0
    %2751 = vmatmul.mubr.bf16.gmra.mrb[0].mxu0 %v2013
    %v2752 = vpop.f32.mrb[0].mxu0
    %v2753 = vadd.f32 %v2101, %v2752
    %v2754 = vpop.f32.mrb[0].mxu0
    %v2755 = vadd.f32 %v2105, %v2754
    %v2756 = vpop.f32.mrb[0].mxu0
    %v2757 = vadd.f32 %v2101, %v2756
    %v2758 = vpop.f32.mrb[0].mxu0
    %v2759 = vadd.f32 %v2105, %v2758
    %2760 = vmatprep.mubr.bf16.mxu0 0
    %2761 = vmatmul.mubr.bf16.gmra.mrb[0].mxu0 %v2014
    %v2762 = vpop.f32.mrb[0].mxu0
    %v2763 = vadd.f32 %v2101, %v2762
    %v2764 = vpop.f32.mrb[0].mxu0
    %v2765 = vadd.f32 %v2105, %v2764
    %v2766 = vpop.f32.mrb[0].mxu0
    %v2767 = vadd.f32 %v2101, %v2766
    %v2768 = vpop.f32.mrb[0].mxu0
    %v2769 = vadd.f32 %v2105, %v2768
    %2770 = vmatprep.mubr.bf16.mxu0 0
    %2771 = vmatmul.mubr.bf16.gmra.mrb[0].mxu0 %v2015
    %v2772 = vpop.f32.mrb[0].mxu0
    %v2773 = vadd.f32 %v2101, %v2772
    %v2774 = vpop.f32.mrb[0].mxu0
    %v2775 = vadd.f32 %v2105, %v2774
    %v2776 = vpop.f32.mrb[0].mxu0
    %v2777 = vadd.f32 %v2101, %v2776
    %v2778 = vpop.f32.mrb[0].mxu0
    %v2779 = vadd.f32 %v2105, %v2778
    %2780 = vdwg.mxu0
    %2781 = vmatprep.subr.bf16.mxu0 %v2321
    %2782 = vmatpush1.bf16.msra.mxu0 %v2320
    %2783 = vmatprep.subr.bf16.mxu0 %v2329
    %2784 = vmatpush1.bf16.msra.mxu0 %v2328
    %2785 = vmatprep.subr.bf16.mxu0 %v2337
    %2786 = vmatpush1.bf16.msra.mxu0 %v2336
    %2787 = vmatprep.subr.bf16.mxu0 %v2345
    %2788 = vmatpush1.bf16.msra.mxu0 %v2344
    %2789 = vmatprep.subr.bf16.mxu0 %v2353
    %2790 = vmatpush1.bf16.msra.mxu0 %v2352
    %2791 = vmatprep.subr.bf16.mxu0 %v2361
    %2792 = vmatpush1.bf16.msra.mxu0 %v2360
    %2793 = vmatprep.subr.bf16.mxu0 %v2369
    %2794 = vmatpush1.bf16.msra.mxu0 %v2368
    %2795 = vmatprep.subr.bf16.mxu0 %v2377
    %2796 = vmatpush1.bf16.msra.mxu0 %v2376
    %2797 = vmatprep.subr.bf16.mxu0 0
    %2798 = vmatpush1.bf16.msra.mxu0 0
    %2799 = vmatprep.subr.bf16.mxu0 0
    %2800 = vmatpush1.bf16.msra.mxu0 0
    %2801 = vmatprep.subr.bf16.mxu0 0
    %2802 = vmatpush1.bf16.msra.mxu0 0
    %2803 = vmatprep.subr.bf16.mxu0 0
    %2804 = vmatpush1.bf16.msra.mxu0 0
    %2805 = vmatprep.subr.bf16.mxu0 0
    %2806 = vmatpush1.bf16.msra.mxu0 0
    %2807 = vmatprep.subr.bf16.mxu0 0
    %2808 = vmatpush1.bf16.msra.mxu0 0
    %2809 = vmatprep.subr.bf16.mxu0 0
    %2810 = vmatpush1.bf16.msra.mxu0 0
    %2811 = vmatprep.subr.bf16.mxu0 0
    %2812 = vmatpush1.bf16.msra.mxu0 0
    %2813 = vmatprep.mubr.bf16.mxu0 0
    %2814 = vmatmul.mubr.bf16.gmra.mrb[0].mxu0 %v2008
    %v2815 = vpop.f32.mrb[0].mxu0
    %v2816 = vadd.f32 %v2109, %v2815
    %v2817 = vpop.f32.mrb[0].mxu0
    %v2818 = vadd.f32 %v2113, %v2817
    %v2819 = vpop.f32.mrb[0].mxu0
    %v2820 = vadd.f32 %v2109, %v2819
    %v2821 = vpop.f32.mrb[0].mxu0
    %v2822 = vadd.f32 %v2113, %v2821
    %2823 = vmatprep.mubr.bf16.mxu0 0
    %2824 = vmatmul.mubr.bf16.gmra.mrb[0].mxu0 %v2009
    %v2825 = vpop.f32.mrb[0].mxu0
    %v2826 = vadd.f32 %v2109, %v2825
    %v2827 = vpop.f32.mrb[0].mxu0
    %v2828 = vadd.f32 %v2113, %v2827
    %v2829 = vpop.f32.mrb[0].mxu0
    %v2830 = vadd.f32 %v2109, %v2829
    %v2831 = vpop.f32.mrb[0].mxu0
    %v2832 = vadd.f32 %v2113, %v2831
    %2833 = vmatprep.mubr.bf16.mxu0 0
    %2834 = vmatmul.mubr.bf16.gmra.mrb[0].mxu0 %v2010
    %v2835 = vpop.f32.mrb[0].mxu0
    %v2836 = vadd.f32 %v2109, %v2835
    %v2837 = vpop.f32.mrb[0].mxu0
    %v2838 = vadd.f32 %v2113, %v2837
    %v2839 = vpop.f32.mrb[0].mxu0
    %v2840 = vadd.f32 %v2109, %v2839
    %v2841 = vpop.f32.mrb[0].mxu0
    %v2842 = vadd.f32 %v2113, %v2841
    %2843 = vmatprep.mubr.bf16.mxu0 0
    %2844 = vmatmul.mubr.bf16.gmra.mrb[0].mxu0 %v2011
    %v2845 = vpop.f32.mrb[0].mxu0
    %v2846 = vadd.f32 %v2109, %v2845
    %v2847 = vpop.f32.mrb[0].mxu0
    %v2848 = vadd.f32 %v2113, %v2847
    %v2849 = vpop.f32.mrb[0].mxu0
    %v2850 = vadd.f32 %v2109, %v2849
    %v2851 = vpop.f32.mrb[0].mxu0
    %v2852 = vadd.f32 %v2113, %v2851
    %2853 = vmatprep.mubr.bf16.mxu0 0
    %2854 = vmatmul.mubr.bf16.gmra.mrb[0].mxu0 %v2012
    %v2855 = vpop.f32.mrb[0].mxu0
    %v2856 = vadd.f32 %v2109, %v2855
    %v2857 = vpop.f32.mrb[0].mxu0
    %v2858 = vadd.f32 %v2113, %v2857
    %v2859 = vpop.f32.mrb[0].mxu0
    %v2860 = vadd.f32 %v2109, %v2859
    %v2861 = vpop.f32.mrb[0].mxu0
    %v2862 = vadd.f32 %v2113, %v2861
    %2863 = vmatprep.mubr.bf16.mxu0 0
    %2864 = vmatmul.mubr.bf16.gmra.mrb[0].mxu0 %v2013
    %v2865 = vpop.f32.mrb[0].mxu0
    %v2866 = vadd.f32 %v2109, %v2865
    %v2867 = vpop.f32.mrb[0].mxu0
    %v2868 = vadd.f32 %v2113, %v2867
    %v2869 = vpop.f32.mrb[0].mxu0
    %v2870 = vadd.f32 %v2109, %v2869
    %v2871 = vpop.f32.mrb[0].mxu0
    %v2872 = vadd.f32 %v2113, %v2871
    %2873 = vmatprep.mubr.bf16.mxu0 0
    %2874 = vmatmul.mubr.bf16.gmra.mrb[0].mxu0 %v2014
    %v2875 = vpop.f32.mrb[0].mxu0
    %v2876 = vadd.f32 %v2109, %v2875
    %v2877 = vpop.f32.mrb[0].mxu0
    %v2878 = vadd.f32 %v2113, %v2877
    %v2879 = vpop.f32.mrb[0].mxu0
    %v2880 = vadd.f32 %v2109, %v2879
    %v2881 = vpop.f32.mrb[0].mxu0
    %v2882 = vadd.f32 %v2113, %v2881
    %2883 = vmatprep.mubr.bf16.mxu0 0
    %2884 = vmatmul.mubr.bf16.gmra.mrb[0].mxu0 %v2015
    %v2885 = vpop.f32.mrb[0].mxu0
    %v2886 = vadd.f32 %v2109, %v2885
    %v2887 = vpop.f32.mrb[0].mxu0
    %v2888 = vadd.f32 %v2113, %v2887
    %v2889 = vpop.f32.mrb[0].mxu0
    %v2890 = vadd.f32 %v2109, %v2889
    %v2891 = vpop.f32.mrb[0].mxu0
    %v2892 = vadd.f32 %v2113, %v2891
    %2893 = vdwg.mxu0
    %v2894 = vmul.f32 %v2477, %v569
    %v2895 = vmul.f32 %v2479, %v569
    %v2896 = vmul.f32 %v2590, %v569
    %v2897 = vmul.f32 %v2592, %v569
    %v2898 = vmul.f32 %v2703, %v569
    %v2899 = vmul.f32 %v2705, %v569
    %v2900 = vmul.f32 %v2816, %v569
    %v2901 = vmul.f32 %v2818, %v569
    %v2902 = vmul.f32 %v2481, %v574
    %v2903 = vmul.f32 %v2483, %v574
    %v2904 = vmul.f32 %v2594, %v574
    %v2905 = vmul.f32 %v2596, %v574
    %v2906 = vmul.f32 %v2707, %v574
    %v2907 = vmul.f32 %v2709, %v574
    %v2908 = vmul.f32 %v2820, %v574
    %v2909 = vmul.f32 %v2822, %v574
    %v2910 = vmul.f32 %v2487, %v579
    %v2911 = vmul.f32 %v2489, %v579
    %v2912 = vmul.f32 %v2600, %v579
    %v2913 = vmul.f32 %v2602, %v579
    %v2914 = vmul.f32 %v2713, %v579
    %v2915 = vmul.f32 %v2715, %v579
    %v2916 = vmul.f32 %v2826, %v579
    %v2917 = vmul.f32 %v2828, %v579
    %v2918 = vmul.f32 %v2491, %v584
    %v2919 = vmul.f32 %v2493, %v584
    %v2920 = vmul.f32 %v2604, %v584
    %v2921 = vmul.f32 %v2606, %v584
    %v2922 = vmul.f32 %v2717, %v584
    %v2923 = vmul.f32 %v2719, %v584
    %v2924 = vmul.f32 %v2830, %v584
    %v2925 = vmul.f32 %v2832, %v584
    %v2926 = vmul.f32 %v2497, %v589
    %v2927 = vmul.f32 %v2499, %v589
    %v2928 = vmul.f32 %v2610, %v589
    %v2929 = vmul.f32 %v2612, %v589
    %v2930 = vmul.f32 %v2723, %v589
    %v2931 = vmul.f32 %v2725, %v589
    %v2932 = vmul.f32 %v2836, %v589
    %v2933 = vmul.f32 %v2838, %v589
    %v2934 = vmul.f32 %v2501, %v594
    %v2935 = vmul.f32 %v2503, %v594
    %v2936 = vmul.f32 %v2614, %v594
    %v2937 = vmul.f32 %v2616, %v594
    %v2938 = vmul.f32 %v2727, %v594
    %v2939 = vmul.f32 %v2729, %v594
    %v2940 = vmul.f32 %v2840, %v594
    %v2941 = vmul.f32 %v2842, %v594
    %v2942 = vmul.f32 %v2507, %v599
    %v2943 = vmul.f32 %v2509, %v599
    %v2944 = vmul.f32 %v2620, %v599
    %v2945 = vmul.f32 %v2622, %v599
    %v2946 = vmul.f32 %v2733, %v599
    %v2947 = vmul.f32 %v2735, %v599
    %v2948 = vmul.f32 %v2846, %v599
    %v2949 = vmul.f32 %v2848, %v599
    %v2950 = vmul.f32 %v2511, %v604
    %v2951 = vmul.f32 %v2513, %v604
    %v2952 = vmul.f32 %v2624, %v604
    %v2953 = vmul.f32 %v2626, %v604
    %v2954 = vmul.f32 %v2737, %v604
    %v2955 = vmul.f32 %v2739, %v604
    %v2956 = vmul.f32 %v2850, %v604
    %v2957 = vmul.f32 %v2852, %v604
    %v2958 = vmul.f32 %v2517, %v609
    %v2959 = vmul.f32 %v2519, %v609
    %v2960 = vmul.f32 %v2630, %v609
    %v2961 = vmul.f32 %v2632, %v609
    %v2962 = vmul.f32 %v2743, %v609
    %v2963 = vmul.f32 %v2745, %v609
    %v2964 = vmul.f32 %v2856, %v609
    %v2965 = vmul.f32 %v2858, %v609
    %v2966 = vmul.f32 %v2521, %v614
    %v2967 = vmul.f32 %v2523, %v614
    %v2968 = vmul.f32 %v2634, %v614
    %v2969 = vmul.f32 %v2636, %v614
    %v2970 = vmul.f32 %v2747, %v614
    %v2971 = vmul.f32 %v2749, %v614
    %v2972 = vmul.f32 %v2860, %v614
    %v2973 = vmul.f32 %v2862, %v614
    %v2974 = vmul.f32 %v2527, %v619
    %v2975 = vmul.f32 %v2529, %v619
    %v2976 = vmul.f32 %v2640, %v619
    %v2977 = vmul.f32 %v2642, %v619
    %v2978 = vmul.f32 %v2753, %v619
    %v2979 = vmul.f32 %v2755, %v619
    %v2980 = vmul.f32 %v2866, %v619
    %v2981 = vmul.f32 %v2868, %v619
    %v2982 = vmul.f32 %v2531, %v624
    %v2983 = vmul.f32 %v2533, %v624
    %v2984 = vmul.f32 %v2644, %v624
    %v2985 = vmul.f32 %v2646, %v624
    %v2986 = vmul.f32 %v2757, %v624
    %v2987 = vmul.f32 %v2759, %v624
    %v2988 = vmul.f32 %v2870, %v624
    %v2989 = vmul.f32 %v2872, %v624
    %v2990 = vmul.f32 %v2537, %v629
    %v2991 = vmul.f32 %v2539, %v629
    %v2992 = vmul.f32 %v2650, %v629
    %v2993 = vmul.f32 %v2652, %v629
    %v2994 = vmul.f32 %v2763, %v629
    %v2995 = vmul.f32 %v2765, %v629
    %v2996 = vmul.f32 %v2876, %v629
    %v2997 = vmul.f32 %v2878, %v629
    %v2998 = vmul.f32 %v2541, %v634
    %v2999 = vmul.f32 %v2543, %v634
    %v3000 = vmul.f32 %v2654, %v634
    %v3001 = vmul.f32 %v2656, %v634
    %v3002 = vmul.f32 %v2767, %v634
    %v3003 = vmul.f32 %v2769, %v634
    %v3004 = vmul.f32 %v2880, %v634
    %v3005 = vmul.f32 %v2882, %v634
    %v3006 = vmul.f32 %v2547, %v639
    %v3007 = vmul.f32 %v2549, %v639
    %v3008 = vmul.f32 %v2660, %v639
    %v3009 = vmul.f32 %v2662, %v639
    %v3010 = vmul.f32 %v2773, %v639
    %v3011 = vmul.f32 %v2775, %v639
    %v3012 = vmul.f32 %v2886, %v639
    %v3013 = vmul.f32 %v2888, %v639
    %v3014 = vmul.f32 %v2551, %v644
    %v3015 = vmul.f32 %v2553, %v644
    %v3016 = vmul.f32 %v2664, %v644
    %v3017 = vmul.f32 %v2666, %v644
    %v3018 = vmul.f32 %v2777, %v644
    %v3019 = vmul.f32 %v2779, %v644
    %v3020 = vmul.f32 %v2890, %v644
    %v3021 = vmul.f32 %v2892, %v644
    %v3022 = vadd.f32 %v2894, %v438
    %v3023 = vadd.f32 %v2895, %v439
    %v3024 = vadd.f32 %v2896, %v440
    %v3025 = vadd.f32 %v2897, %v441
    %v3026 = vadd.f32 %v2898, %v442
    %v3027 = vadd.f32 %v2899, %v443
    %v3028 = vadd.f32 %v2900, %v444
    %v3029 = vadd.f32 %v2901, %v445
    %v3030 = vadd.f32 %v2902, %v446
    %v3031 = vadd.f32 %v2903, %v447
    %v3032 = vadd.f32 %v2904, %v448
    %v3033 = vadd.f32 %v2905, %v449
    %v3034 = vadd.f32 %v2906, %v450
    %v3035 = vadd.f32 %v2907, %v451
    %v3036 = vadd.f32 %v2908, %v452
    %v3037 = vadd.f32 %v2909, %v453
    %v3038 = vadd.f32 %v2910, %v454
    %v3039 = vadd.f32 %v2911, %v455
    %v3040 = vadd.f32 %v2912, %v456
    %v3041 = vadd.f32 %v2913, %v457
    %v3042 = vadd.f32 %v2914, %v458
    %v3043 = vadd.f32 %v2915, %v459
    %v3044 = vadd.f32 %v2916, %v460
    %v3045 = vadd.f32 %v2917, %v461
    %v3046 = vadd.f32 %v2918, %v462
    %v3047 = vadd.f32 %v2919, %v463
    %v3048 = vadd.f32 %v2920, %v464
    %v3049 = vadd.f32 %v2921, %v465
    %v3050 = vadd.f32 %v2922, %v466
    %v3051 = vadd.f32 %v2923, %v467
    %v3052 = vadd.f32 %v2924, %v468
    %v3053 = vadd.f32 %v2925, %v469
    %v3054 = vadd.f32 %v2926, %v470
    %v3055 = vadd.f32 %v2927, %v471
    %v3056 = vadd.f32 %v2928, %v472
    %v3057 = vadd.f32 %v2929, %v473
    %v3058 = vadd.f32 %v2930, %v474
    %v3059 = vadd.f32 %v2931, %v475
    %v3060 = vadd.f32 %v2932, %v476
    %v3061 = vadd.f32 %v2933, %v477
    %v3062 = vadd.f32 %v2934, %v478
    %v3063 = vadd.f32 %v2935, %v479
    %v3064 = vadd.f32 %v2936, %v480
    %v3065 = vadd.f32 %v2937, %v481
    %v3066 = vadd.f32 %v2938, %v482
    %v3067 = vadd.f32 %v2939, %v483
    %v3068 = vadd.f32 %v2940, %v484
    %v3069 = vadd.f32 %v2941, %v485
    %v3070 = vadd.f32 %v2942, %v486
    %v3071 = vadd.f32 %v2943, %v487
    %v3072 = vadd.f32 %v2944, %v488
    %v3073 = vadd.f32 %v2945, %v489
    %v3074 = vadd.f32 %v2946, %v490
    %v3075 = vadd.f32 %v2947, %v491
    %v3076 = vadd.f32 %v2948, %v492
    %v3077 = vadd.f32 %v2949, %v493
    %v3078 = vadd.f32 %v2950, %v494
    %v3079 = vadd.f32 %v2951, %v495
    %v3080 = vadd.f32 %v2952, %v496
    %v3081 = vadd.f32 %v2953, %v497
    %v3082 = vadd.f32 %v2954, %v498
    %v3083 = vadd.f32 %v2955, %v499
    %v3084 = vadd.f32 %v2956, %v500
    %v3085 = vadd.f32 %v2957, %v501
    %v3086 = vadd.f32 %v2958, %v502
    %v3087 = vadd.f32 %v2959, %v503
    %v3088 = vadd.f32 %v2960, %v504
    %v3089 = vadd.f32 %v2961, %v505
    %v3090 = vadd.f32 %v2962, %v506
    %v3091 = vadd.f32 %v2963, %v507
    %v3092 = vadd.f32 %v2964, %v508
    %v3093 = vadd.f32 %v2965, %v509
    %v3094 = vadd.f32 %v2966, %v510
    %v3095 = vadd.f32 %v2967, %v511
    %v3096 = vadd.f32 %v2968, %v512
    %v3097 = vadd.f32 %v2969, %v513
    %v3098 = vadd.f32 %v2970, %v514
    %v3099 = vadd.f32 %v2971, %v515
    %v3100 = vadd.f32 %v2972, %v516
    %v3101 = vadd.f32 %v2973, %v517
    %v3102 = vadd.f32 %v2974, %v518
    %v3103 = vadd.f32 %v2975, %v519
    %v3104 = vadd.f32 %v2976, %v520
    %v3105 = vadd.f32 %v2977, %v521
    %v3106 = vadd.f32 %v2978, %v522
    %v3107 = vadd.f32 %v2979, %v523
    %v3108 = vadd.f32 %v2980, %v524
    %v3109 = vadd.f32 %v2981, %v525
    %v3110 = vadd.f32 %v2982, %v526
    %v3111 = vadd.f32 %v2983, %v527
    %v3112 = vadd.f32 %v2984, %v528
    %v3113 = vadd.f32 %v2985, %v529
    %v3114 = vadd.f32 %v2986, %v530
    %v3115 = vadd.f32 %v2987, %v531
    %v3116 = vadd.f32 %v2988, %v532
    %v3117 = vadd.f32 %v2989, %v533
    %v3118 = vadd.f32 %v2990, %v534
    %v3119 = vadd.f32 %v2991, %v535
    %v3120 = vadd.f32 %v2992, %v536
    %v3121 = vadd.f32 %v2993, %v537
    %v3122 = vadd.f32 %v2994, %v538
    %v3123 = vadd.f32 %v2995, %v539
    %v3124 = vadd.f32 %v2996, %v540
    %v3125 = vadd.f32 %v2997, %v541
    %v3126 = vadd.f32 %v2998, %v542
    %v3127 = vadd.f32 %v2999, %v543
    %v3128 = vadd.f32 %v3000, %v544
    %v3129 = vadd.f32 %v3001, %v545
    %v3130 = vadd.f32 %v3002, %v546
    %v3131 = vadd.f32 %v3003, %v547
    %v3132 = vadd.f32 %v3004, %v548
    %v3133 = vadd.f32 %v3005, %v549
    %v3134 = vadd.f32 %v3006, %v550
    %v3135 = vadd.f32 %v3007, %v551
    %v3136 = vadd.f32 %v3008, %v552
    %v3137 = vadd.f32 %v3009, %v553
    %v3138 = vadd.f32 %v3010, %v554
    %v3139 = vadd.f32 %v3011, %v555
    %v3140 = vadd.f32 %v3012, %v556
    %v3141 = vadd.f32 %v3013, %v557
    %v3142 = vadd.f32 %v3014, %v558
    %v3143 = vadd.f32 %v3015, %v559
    %v3144 = vadd.f32 %v3016, %v560
    %v3145 = vadd.f32 %v3017, %v561
    %v3146 = vadd.f32 %v3018, %v562
    %v3147 = vadd.f32 %v3019, %v563
    %v3148 = vadd.f32 %v3020, %v564
    %v3149 = vadd.f32 %v3021, %v565
    %v3150 = vmul.f32 %v3022, %v3022
    %v3151 = vmul.f32 %v3023, %v3023
    %v3152 = vmul.f32 %v3024, %v3024
    %v3153 = vmul.f32 %v3025, %v3025
    %v3154 = vmul.f32 %v3026, %v3026
    %v3155 = vmul.f32 %v3027, %v3027
    %v3156 = vmul.f32 %v3028, %v3028
    %v3157 = vmul.f32 %v3029, %v3029
    %v3158 = vmul.f32 %v3030, %v3030
    %v3159 = vmul.f32 %v3031, %v3031
    %v3160 = vmul.f32 %v3032, %v3032
    %v3161 = vmul.f32 %v3033, %v3033
    %v3162 = vmul.f32 %v3034, %v3034
    %v3163 = vmul.f32 %v3035, %v3035
    %v3164 = vmul.f32 %v3036, %v3036
    %v3165 = vmul.f32 %v3037, %v3037
    %v3166 = vmul.f32 %v3038, %v3038
    %v3167 = vmul.f32 %v3039, %v3039
    %v3168 = vmul.f32 %v3040, %v3040
    %v3169 = vmul.f32 %v3041, %v3041
    %v3170 = vmul.f32 %v3042, %v3042
    %v3171 = vmul.f32 %v3043, %v3043
    %v3172 = vmul.f32 %v3044, %v3044
    %v3173 = vmul.f32 %v3045, %v3045
    %v3174 = vmul.f32 %v3046, %v3046
    %v3175 = vmul.f32 %v3047, %v3047
    %v3176 = vmul.f32 %v3048, %v3048
    %v3177 = vmul.f32 %v3049, %v3049
    %v3178 = vmul.f32 %v3050, %v3050
    %v3179 = vmul.f32 %v3051, %v3051
    %v3180 = vmul.f32 %v3052, %v3052
    %v3181 = vmul.f32 %v3053, %v3053
    %v3182 = vmul.f32 %v3054, %v3054
    %v3183 = vmul.f32 %v3055, %v3055
    %v3184 = vmul.f32 %v3056, %v3056
    %v3185 = vmul.f32 %v3057, %v3057
    %v3186 = vmul.f32 %v3058, %v3058
    %v3187 = vmul.f32 %v3059, %v3059
    %v3188 = vmul.f32 %v3060, %v3060
    %v3189 = vmul.f32 %v3061, %v3061
    %v3190 = vmul.f32 %v3062, %v3062
    %v3191 = vmul.f32 %v3063, %v3063
    %v3192 = vmul.f32 %v3064, %v3064
    %v3193 = vmul.f32 %v3065, %v3065
    %v3194 = vmul.f32 %v3066, %v3066
    %v3195 = vmul.f32 %v3067, %v3067
    %v3196 = vmul.f32 %v3068, %v3068
    %v3197 = vmul.f32 %v3069, %v3069
    %v3198 = vmul.f32 %v3070, %v3070
    %v3199 = vmul.f32 %v3071, %v3071
    %v3200 = vmul.f32 %v3072, %v3072
    %v3201 = vmul.f32 %v3073, %v3073
    %v3202 = vmul.f32 %v3074, %v3074
    %v3203 = vmul.f32 %v3075, %v3075
    %v3204 = vmul.f32 %v3076, %v3076
    %v3205 = vmul.f32 %v3077, %v3077
    %v3206 = vmul.f32 %v3078, %v3078
    %v3207 = vmul.f32 %v3079, %v3079
    %v3208 = vmul.f32 %v3080, %v3080
    %v3209 = vmul.f32 %v3081, %v3081
    %v3210 = vmul.f32 %v3082, %v3082
    %v3211 = vmul.f32 %v3083, %v3083
    %v3212 = vmul.f32 %v3084, %v3084
    %v3213 = vmul.f32 %v3085, %v3085
    %v3214 = vmul.f32 %v3086, %v3086
    %v3215 = vmul.f32 %v3087, %v3087
    %v3216 = vmul.f32 %v3088, %v3088
    %v3217 = vmul.f32 %v3089, %v3089
    %v3218 = vmul.f32 %v3090, %v3090
    %v3219 = vmul.f32 %v3091, %v3091
    %v3220 = vmul.f32 %v3092, %v3092
    %v3221 = vmul.f32 %v3093, %v3093
    %v3222 = vmul.f32 %v3094, %v3094
    %v3223 = vmul.f32 %v3095, %v3095
    %v3224 = vmul.f32 %v3096, %v3096
    %v3225 = vmul.f32 %v3097, %v3097
    %v3226 = vmul.f32 %v3098, %v3098
    %v3227 = vmul.f32 %v3099, %v3099
    %v3228 = vmul.f32 %v3100, %v3100
    %v3229 = vmul.f32 %v3101, %v3101
    %v3230 = vmul.f32 %v3102, %v3102
    %v3231 = vmul.f32 %v3103, %v3103
    %v3232 = vmul.f32 %v3104, %v3104
    %v3233 = vmul.f32 %v3105, %v3105
    %v3234 = vmul.f32 %v3106, %v3106
    %v3235 = vmul.f32 %v3107, %v3107
    %v3236 = vmul.f32 %v3108, %v3108
    %v3237 = vmul.f32 %v3109, %v3109
    %v3238 = vmul.f32 %v3110, %v3110
    %v3239 = vmul.f32 %v3111, %v3111
    %v3240 = vmul.f32 %v3112, %v3112
    %v3241 = vmul.f32 %v3113, %v3113
    %v3242 = vmul.f32 %v3114, %v3114
    %v3243 = vmul.f32 %v3115, %v3115
    %v3244 = vmul.f32 %v3116, %v3116
    %v3245 = vmul.f32 %v3117, %v3117
    %v3246 = vmul.f32 %v3118, %v3118
    %v3247 = vmul.f32 %v3119, %v3119
    %v3248 = vmul.f32 %v3120, %v3120
    %v3249 = vmul.f32 %v3121, %v3121
    %v3250 = vmul.f32 %v3122, %v3122
    %v3251 = vmul.f32 %v3123, %v3123
    %v3252 = vmul.f32 %v3124, %v3124
    %v3253 = vmul.f32 %v3125, %v3125
    %v3254 = vmul.f32 %v3126, %v3126
    %v3255 = vmul.f32 %v3127, %v3127
    %v3256 = vmul.f32 %v3128, %v3128
    %v3257 = vmul.f32 %v3129, %v3129
    %v3258 = vmul.f32 %v3130, %v3130
    %v3259 = vmul.f32 %v3131, %v3131
    %v3260 = vmul.f32 %v3132, %v3132
    %v3261 = vmul.f32 %v3133, %v3133
    %v3262 = vmul.f32 %v3134, %v3134
    %v3263 = vmul.f32 %v3135, %v3135
    %v3264 = vmul.f32 %v3136, %v3136
    %v3265 = vmul.f32 %v3137, %v3137
    %v3266 = vmul.f32 %v3138, %v3138
    %v3267 = vmul.f32 %v3139, %v3139
    %v3268 = vmul.f32 %v3140, %v3140
    %v3269 = vmul.f32 %v3141, %v3141
    %v3270 = vmul.f32 %v3142, %v3142
    %v3271 = vmul.f32 %v3143, %v3143
    %v3272 = vmul.f32 %v3144, %v3144
    %v3273 = vmul.f32 %v3145, %v3145
    %v3274 = vmul.f32 %v3146, %v3146
    %v3275 = vmul.f32 %v3147, %v3147
    %v3276 = vmul.f32 %v3148, %v3148
    %v3277 = vmul.f32 %v3149, %v3149
    %v3278 = vadd.f32 %v3150, %v3151
    %v3279 = vadd.f32 %v3278, %v3152
    %v3280 = vadd.f32 %v3279, %v3153
    %v3281 = vadd.f32 %v3280, %v3154
    %v3282 = vadd.f32 %v3281, %v3155
    %v3283 = vadd.f32 %v3282, %v3156
    %v3284 = vadd.f32 %v3283, %v3157
    %3285 = vadd.xlane.f32.xlu0 %v3284
    %v3286 = vpop.xlane.xlu0 %3285
    %v3287 = vadd.f32 %v3158, %v3159
    %v3288 = vadd.f32 %v3287, %v3160
    %v3289 = vadd.f32 %v3288, %v3161
    %v3290 = vadd.f32 %v3289, %v3162
    %v3291 = vadd.f32 %v3290, %v3163
    %v3292 = vadd.f32 %v3291, %v3164
    %v3293 = vadd.f32 %v3292, %v3165
    %3294 = vadd.xlane.f32.xlu0 %v3293
    %v3295 = vpop.xlane.xlu0 %3294
    %v3296 = vadd.f32 %v3166, %v3167
    %v3297 = vadd.f32 %v3296, %v3168
    %v3298 = vadd.f32 %v3297, %v3169
    %v3299 = vadd.f32 %v3298, %v3170
    %v3300 = vadd.f32 %v3299, %v3171
    %v3301 = vadd.f32 %v3300, %v3172
    %v3302 = vadd.f32 %v3301, %v3173
    %3303 = vadd.xlane.f32.xlu0 %v3302
    %v3304 = vpop.xlane.xlu0 %3303
    %v3305 = vadd.f32 %v3174, %v3175
    %v3306 = vadd.f32 %v3305, %v3176
    %v3307 = vadd.f32 %v3306, %v3177
    %v3308 = vadd.f32 %v3307, %v3178
    %v3309 = vadd.f32 %v3308, %v3179
    %v3310 = vadd.f32 %v3309, %v3180
    %v3311 = vadd.f32 %v3310, %v3181
    %3312 = vadd.xlane.f32.xlu0 %v3311
    %v3313 = vpop.xlane.xlu0 %3312
    %v3314 = vadd.f32 %v3182, %v3183
    %v3315 = vadd.f32 %v3314, %v3184
    %v3316 = vadd.f32 %v3315, %v3185
    %v3317 = vadd.f32 %v3316, %v3186
    %v3318 = vadd.f32 %v3317, %v3187
    %v3319 = vadd.f32 %v3318, %v3188
    %v3320 = vadd.f32 %v3319, %v3189
    %3321 = vadd.xlane.f32.xlu0 %v3320
    %v3322 = vpop.xlane.xlu0 %3321
    %v3323 = vadd.f32 %v3190, %v3191
    %v3324 = vadd.f32 %v3323, %v3192
    %v3325 = vadd.f32 %v3324, %v3193
    %v3326 = vadd.f32 %v3325, %v3194
    %v3327 = vadd.f32 %v3326, %v3195
    %v3328 = vadd.f32 %v3327, %v3196
    %v3329 = vadd.f32 %v3328, %v3197
    %3330 = vadd.xlane.f32.xlu0 %v3329
    %v3331 = vpop.xlane.xlu0 %3330
    %v3332 = vadd.f32 %v3198, %v3199
    %v3333 = vadd.f32 %v3332, %v3200
    %v3334 = vadd.f32 %v3333, %v3201
    %v3335 = vadd.f32 %v3334, %v3202
    %v3336 = vadd.f32 %v3335, %v3203
    %v3337 = vadd.f32 %v3336, %v3204
    %v3338 = vadd.f32 %v3337, %v3205
    %3339 = vadd.xlane.f32.xlu0 %v3338
    %v3340 = vpop.xlane.xlu0 %3339
    %v3341 = vadd.f32 %v3206, %v3207
    %v3342 = vadd.f32 %v3341, %v3208
    %v3343 = vadd.f32 %v3342, %v3209
    %v3344 = vadd.f32 %v3343, %v3210
    %v3345 = vadd.f32 %v3344, %v3211
    %v3346 = vadd.f32 %v3345, %v3212
    %v3347 = vadd.f32 %v3346, %v3213
    %3348 = vadd.xlane.f32.xlu0 %v3347
    %v3349 = vpop.xlane.xlu0 %3348
    %v3350 = vadd.f32 %v3214, %v3215
    %v3351 = vadd.f32 %v3350, %v3216
    %v3352 = vadd.f32 %v3351, %v3217
    %v3353 = vadd.f32 %v3352, %v3218
    %v3354 = vadd.f32 %v3353, %v3219
    %v3355 = vadd.f32 %v3354, %v3220
    %v3356 = vadd.f32 %v3355, %v3221
    %3357 = vadd.xlane.f32.xlu0 %v3356
    %v3358 = vpop.xlane.xlu0 %3357
    %v3359 = vadd.f32 %v3222, %v3223
    %v3360 = vadd.f32 %v3359, %v3224
    %v3361 = vadd.f32 %v3360, %v3225
    %v3362 = vadd.f32 %v3361, %v3226
    %v3363 = vadd.f32 %v3362, %v3227
    %v3364 = vadd.f32 %v3363, %v3228
    %v3365 = vadd.f32 %v3364, %v3229
    %3366 = vadd.xlane.f32.xlu0 %v3365
    %v3367 = vpop.xlane.xlu0 %3366
    %v3368 = vadd.f32 %v3230, %v3231
    %v3369 = vadd.f32 %v3368, %v3232
    %v3370 = vadd.f32 %v3369, %v3233
    %v3371 = vadd.f32 %v3370, %v3234
    %v3372 = vadd.f32 %v3371, %v3235
    %v3373 = vadd.f32 %v3372, %v3236
    %v3374 = vadd.f32 %v3373, %v3237
    %3375 = vadd.xlane.f32.xlu0 %v3374
    %v3376 = vpop.xlane.xlu0 %3375
    %v3377 = vadd.f32 %v3238, %v3239
    %v3378 = vadd.f32 %v3377, %v3240
    %v3379 = vadd.f32 %v3378, %v3241
    %v3380 = vadd.f32 %v3379, %v3242
    %v3381 = vadd.f32 %v3380, %v3243
    %v3382 = vadd.f32 %v3381, %v3244
    %v3383 = vadd.f32 %v3382, %v3245
    %3384 = vadd.xlane.f32.xlu0 %v3383
    %v3385 = vpop.xlane.xlu0 %3384
    %v3386 = vadd.f32 %v3246, %v3247
    %v3387 = vadd.f32 %v3386, %v3248
    %v3388 = vadd.f32 %v3387, %v3249
    %v3389 = vadd.f32 %v3388, %v3250
    %v3390 = vadd.f32 %v3389, %v3251
    %v3391 = vadd.f32 %v3390, %v3252
    %v3392 = vadd.f32 %v3391, %v3253
    %3393 = vadd.xlane.f32.xlu0 %v3392
    %v3394 = vpop.xlane.xlu0 %3393
    %v3395 = vadd.f32 %v3254, %v3255
    %v3396 = vadd.f32 %v3395, %v3256
    %v3397 = vadd.f32 %v3396, %v3257
    %v3398 = vadd.f32 %v3397, %v3258
    %v3399 = vadd.f32 %v3398, %v3259
    %v3400 = vadd.f32 %v3399, %v3260
    %v3401 = vadd.f32 %v3400, %v3261
    %3402 = vadd.xlane.f32.xlu0 %v3401
    %v3403 = vpop.xlane.xlu0 %3402
    %v3404 = vadd.f32 %v3262, %v3263
    %v3405 = vadd.f32 %v3404, %v3264
    %v3406 = vadd.f32 %v3405, %v3265
    %v3407 = vadd.f32 %v3406, %v3266
    %v3408 = vadd.f32 %v3407, %v3267
    %v3409 = vadd.f32 %v3408, %v3268
    %v3410 = vadd.f32 %v3409, %v3269
    %3411 = vadd.xlane.f32.xlu0 %v3410
    %v3412 = vpop.xlane.xlu0 %3411
    %v3413 = vadd.f32 %v3270, %v3271
    %v3414 = vadd.f32 %v3413, %v3272
    %v3415 = vadd.f32 %v3414, %v3273
    %v3416 = vadd.f32 %v3415, %v3274
    %v3417 = vadd.f32 %v3416, %v3275
    %v3418 = vadd.f32 %v3417, %v3276
    %v3419 = vadd.f32 %v3418, %v3277
    %3420 = vadd.xlane.f32.xlu0 %v3419
    %v3421 = vpop.xlane.xlu0 %3420
    %vm3422 = vcmask 7168
    %3423 = vst.msk [vmem:[%s8] sm:$0xff] %vm3422, %v3286
    %3424 = vst.msk [vmem:[%s8 + $0x8] sm:$0xff] %vm3422, %v3295
    %3425 = vst.msk [vmem:[%s8 + $0x10] sm:$0xff] %vm3422, %v3304
    %3426 = vst.msk [vmem:[%s8 + $0x18] sm:$0xff] %vm3422, %v3313
    %3427 = vst.msk [vmem:[%s8 + $0x20] sm:$0xff] %vm3422, %v3322
    %3428 = vst.msk [vmem:[%s8 + $0x28] sm:$0xff] %vm3422, %v3331
    %3429 = vst.msk [vmem:[%s8 + $0x30] sm:$0xff] %vm3422, %v3340
    %3430 = vst.msk [vmem:[%s8 + $0x38] sm:$0xff] %vm3422, %v3349
    %3431 = vst.msk [vmem:[%s8 + $0x40] sm:$0xff] %vm3422, %v3358
    %3432 = vst.msk [vmem:[%s8 + $0x48] sm:$0xff] %vm3422, %v3367
    %3433 = vst.msk [vmem:[%s8 + $0x50] sm:$0xff] %vm3422, %v3376
    %3434 = vst.msk [vmem:[%s8 + $0x58] sm:$0xff] %vm3422, %v3385
    %3435 = vst.msk [vmem:[%s8 + $0x60] sm:$0xff] %vm3422, %v3394
    %3436 = vst.msk [vmem:[%s8 + $0x68] sm:$0xff] %vm3422, %v3403
    %3437 = vst.msk [vmem:[%s8 + $0x70] sm:$0xff] %vm3422, %v3412
    %3438 = vst.msk [vmem:[%s8 + $0x78] sm:$0xff] %vm3422, %v3421
    // Predicated region
    $region50: #{tpu_custom_call.1} parent=1 // pred_check
      _
    $region51: #{tpu_custom_call.1} parent=1 // pred_check_branch
      %3440 = sbr.rel (0) target = $region53
    $region52: #{tpu_custom_call.1} parent=1 // pred_region
      _
    $region53: #{tpu_custom_call.1} parent=1 // pred_fallthru
      _
    // Predicated region
    $region54: #{tpu_custom_call.1} parent=1 // pred_check
      _
    $region55: #{tpu_custom_call.1} parent=1 // pred_check_branch
      %3442 = sbr.rel (0) target = $region57
    $region56: #{tpu_custom_call.1} parent=1 // pred_region
      _
    $region57: #{tpu_custom_call.1} parent=1 // pred_fallthru
      _
    %3443 = vsyncpa [#allocation3], 1
    %3444 = vsyncpa [#allocation5], 1
    %3445 = vsyncpa [#allocation8], 1

</llo_original>
